<compile_context>
chip_gen: v7x
topology: tpu7x:2x2x1
jax: 0.10.0
libtpu: 0.0.40
codegen_flags: <defaults>
</compile_context>

<pallas_src>
import functools

import jax
import jax.numpy as jnp
from jax.experimental import pallas as pl
from jax.experimental.pallas import tpu as pltpu

IN_X = 2                   # features carried by x
IN_E = 3                   # features carried by edge_attr
H = 32                     # hidden width
OUT = 2                    # output width

R = 8                      # nodes packed per row (block-diagonal replication)
CHUNK_NODES = 512          # nodes per inner compute chunk (64 packed rows)
MAX_BLOCK_NODES = 4096     # nodes per grid step (outer DMA block)

MATMUL_PRECISION = jax.lax.Precision.HIGHEST   # exact f32 matmul passes


def _round_up(a, b):
    return (a + b - 1) // b * b


def _node_mlp_kernel(xr_ref, er_ref, w1x_ref, w1e_ref, w2_ref, w3_ref,
                     b1_ref, b2_ref, b3_ref, o_ref, *,
                     rows_per_chunk, n_chunks):
    """One grid step = `n_chunks` inner chunks of `rows_per_chunk` packed rows.

    Packed-row layout: row m, lane group r (size 2/3/32/2) holds node m*R + r.
    All weights are block-diagonal over r, so each matmul is per-node exact.
    """
    def dot(a, b):
        return jnp.dot(a, b, preferred_element_type=jnp.float32,
                       precision=MATMUL_PRECISION)

    @pl.loop(0, n_chunks)
    def _(c):
        r0 = pl.multiple_of(c * rows_per_chunk, rows_per_chunk)
        rows = pl.ds(r0, rows_per_chunk)
        xr = xr_ref[rows, :]                                   # [rows, 2R]
        er = er_ref[rows, :]                                   # [rows, 3R]
        h1 = dot(xr, w1x_ref[...]) + dot(er, w1e_ref[...]) + b1_ref[...]
        h1 = jnp.maximum(h1, 0.0)                              # [rows, 32R]
        h2 = jnp.maximum(dot(h1, w2_ref[...]) + b2_ref[...], 0.0)
        out = dot(h2, w3_ref[...]) + b3_ref[...]               # [rows, 2R]
        o_ref[rows, :] = out.astype(o_ref.dtype)


def node_model_forward(x, edge_index, edge_attr, params):
    """Pallas implementation of NodeModel.forward.

    x:          [N, 2]  f32
    edge_index: [2, E]  int32 (unused, mirrors the reference signature)
    edge_attr:  [N, 3]  f32
    returns:    [N, 2]  f32
    """
    del edge_index  # unused in the reference forward as well
    w1, b1, w2, b2, w3, b3 = params
    N = x.shape[0]

    # ---- tiling: big grid blocks, inner chunk loop, >=2 grid steps when
    # ---- possible so v7x's two TensorCores both get work.
    chunk = min(CHUNK_NODES, _round_up(max(N, 1), 8 * R))     # nodes / chunk
    n_chunks_total = pl.cdiv(N, chunk)
    if n_chunks_total >= 2:
        chunks_per_block = min(MAX_BLOCK_NODES // chunk,
                               (n_chunks_total + 1) // 2)
    else:
        chunks_per_block = 1
    block_nodes = chunks_per_block * chunk
    n_pad = _round_up(N, block_nodes)
    grid = (n_pad // block_nodes,)
    rows_per_chunk = chunk // R
    block_rows = block_nodes // R

    # ---- inputs: zero-pad only if N is unaligned, then FREE row-major
    # ---- reshape [n,2]->[n/R,2R] / [n,3]->[n/R,3R] (no transpose copies).
    xf = x.astype(jnp.float32)
    ef = edge_attr.astype(jnp.float32)
    if n_pad != N:
        xf = jnp.pad(xf, ((0, n_pad - N), (0, 0)))
        ef = jnp.pad(ef, ((0, n_pad - N), (0, 0)))
    xr = xf.reshape(n_pad // R, IN_X * R)
    er = ef.reshape(n_pad // R, IN_E * R)

    # ---- block-diagonal weights (exact: off-diagonal blocks are 0.0), tiny
    # ---- and resident in VMEM across all grid steps.
    eye = jnp.eye(R, dtype=jnp.float32)
    w1x_bd = jnp.kron(eye, w1[:IN_X, :].astype(jnp.float32))   # [2R, 32R]
    w1e_bd = jnp.kron(eye, w1[IN_X:, :].astype(jnp.float32))   # [3R, 32R]
    w2_bd = jnp.kron(eye, w2.astype(jnp.float32))              # [32R, 32R]
    w3_bd = jnp.kron(eye, w3.astype(jnp.float32))              # [32R, 2R]
    b1_t = jnp.tile(b1.astype(jnp.float32), R).reshape(1, H * R)
    b2_t = jnp.tile(b2.astype(jnp.float32), R).reshape(1, H * R)
    b3_t = jnp.tile(b3.astype(jnp.float32), R).reshape(1, OUT * R)

    kernel = functools.partial(_node_mlp_kernel,
                               rows_per_chunk=rows_per_chunk,
                               n_chunks=chunks_per_block)

    rep = lambda s: pl.BlockSpec(s, lambda i: (0, 0))   # grid-invariant operand

    out_packed = pl.pallas_call(
        kernel,
        out_shape=jax.ShapeDtypeStruct((n_pad // R, OUT * R), jnp.float32),
        grid_spec=pltpu.PrefetchScalarGridSpec(
            num_scalar_prefetch=0,
            grid=grid,
            in_specs=[
                pl.BlockSpec((block_rows, IN_X * R), lambda i: (i, 0)),  # xr
                pl.BlockSpec((block_rows, IN_E * R), lambda i: (i, 0)),  # er
                rep((IN_X * R, H * R)),    # W1[x-part] block-diag
                rep((IN_E * R, H * R)),    # W1[e-part] block-diag
                rep((H * R, H * R)),       # W2 block-diag
                rep((H * R, OUT * R)),     # W3 block-diag
                rep((1, H * R)),           # b1 tiled
                rep((1, H * R)),           # b2 tiled
                rep((1, OUT * R)),         # b3 tiled
            ],
            out_specs=pl.BlockSpec((block_rows, OUT * R), lambda i: (i, 0)),
        ),
        compiler_params=pltpu.CompilerParams(
            dimension_semantics=("parallel",)),   # node blocks shard across TCs
    )(xr, er, w1x_bd, w1e_bd, w2_bd, w3_bd, b1_t, b2_t, b3_t)

    out = out_packed.reshape(n_pad, OUT)          # free reshape back to [N, 2]
    return out[:N] if n_pad != N else out


def init_params(key):
    """Deterministic Linear(5,32) / Linear(32,32) / Linear(32,2) parameters."""
    ks = jax.random.split(key, 6)

    def linear(kw, kb, fan_in, fan_out):
        bound = 1.0 / jnp.sqrt(fan_in)
        w = jax.random.uniform(kw, (fan_in, fan_out), jnp.float32, -bound, bound)
        b = jax.random.uniform(kb, (fan_out,), jnp.float32, -bound, bound)
        return w, b

    w1, b1 = linear(ks[0], ks[1], IN_X + IN_E, H)
    w2, b2 = linear(ks[2], ks[3], H, H)
    w3, b3 = linear(ks[4], ks[5], H, OUT)
    return (w1, b1, w2, b2, w3, b3)


def _reference(x, edge_attr, params):
    """Pure-JAX reference matching the PyTorch forward (f32, HIGHEST)."""
    w1, b1, w2, b2, w3, b3 = params
    h = jnp.concatenate([x, edge_attr], axis=1)
    h = jnp.maximum(jnp.dot(h, w1, precision=MATMUL_PRECISION) + b1, 0.0)
    h = jnp.maximum(jnp.dot(h, w2, precision=MATMUL_PRECISION) + b2, 0.0)
    return jnp.dot(h, w3, precision=MATMUL_PRECISION) + b3


if __name__ == "__main__":
    key = jax.random.PRNGKey(0)
    k_x, k_e, k_idx, k_p = jax.random.split(key, 4)
    params = init_params(k_p)
    fwd = jax.jit(node_model_forward)

    def check(n, kx, ke):
        xi = jax.random.normal(kx, (n, IN_X), jnp.float32)
        ei = jax.random.normal(ke, (n, IN_E), jnp.float32)
        idx = jax.random.randint(k_idx, (2, n), 0, n, jnp.int32)
        out = jax.block_until_ready(fwd(xi, idx, ei, params))
        ref = _reference(xi, ei, params)
        assert out.shape == (n, OUT)
        assert jnp.allclose(out, ref, atol=1e-5, rtol=1e-5)

    # Small demo shape (matches the module's tiny feature widths).
    check(16, k_x, k_e)
    # Non-aligned N: exercises padding + a 2-step "parallel" grid.
    k_x2, k_e2 = jax.random.split(k_x)
    check(700, k_x2, k_e2)
    # Larger N: exercises the multi-chunk inner loop inside each grid step.
    k_x3, k_e3 = jax.random.split(k_e)
    check(2500, k_x3, k_e3)

    print("KERNEL_OK")
</pallas_src>

<mosaic_0001>
module attributes {stable_mosaic.version = 11 : i64} {
  func.func @_node_mlp_kernel(%arg0: i32, %arg1: memref<8x16xf32, #tpu.memory_space<vmem>>, %arg2: memref<8x24xf32, #tpu.memory_space<vmem>>, %arg3: memref<16x256xf32, #tpu.memory_space<vmem>>, %arg4: memref<24x256xf32, #tpu.memory_space<vmem>>, %arg5: memref<256x256xf32, #tpu.memory_space<vmem>>, %arg6: memref<256x16xf32, #tpu.memory_space<vmem>>, %arg7: memref<1x256xf32, #tpu.memory_space<vmem>>, %arg8: memref<1x256xf32, #tpu.memory_space<vmem>>, %arg9: memref<1x16xf32, #tpu.memory_space<vmem>>, %arg10: memref<8x16xf32, #tpu.memory_space<vmem>>) attributes {dimension_semantics = [#tpu.dimension_semantics<parallel>], iteration_bounds = array<i64: 1>, scalar_prefetch = 0 : i64, scratch_operands = 0 : i64, tpu.core_type = #tpu.core_type<tc>, window_params = [{transform_indices = @transform_0, window_bounds = array<i64: 8, 16>}, {transform_indices = @transform_1, window_bounds = array<i64: 8, 24>}, {pipeline_mode = #tpu.pipeline_mode<synchronous>, transform_indices = @transform_2, window_bounds = array<i64: 16, 256>}, {pipeline_mode = #tpu.pipeline_mode<synchronous>, transform_indices = @transform_3, window_bounds = array<i64: 24, 256>}, {pipeline_mode = #tpu.pipeline_mode<synchronous>, transform_indices = @transform_4, window_bounds = array<i64: 256, 256>}, {pipeline_mode = #tpu.pipeline_mode<synchronous>, transform_indices = @transform_5, window_bounds = array<i64: 256, 16>}, {pipeline_mode = #tpu.pipeline_mode<synchronous>, transform_indices = @transform_6, window_bounds = array<i64: 1, 256>}, {pipeline_mode = #tpu.pipeline_mode<synchronous>, transform_indices = @transform_7, window_bounds = array<i64: 1, 256>}, {pipeline_mode = #tpu.pipeline_mode<synchronous>, transform_indices = @transform_8, window_bounds = array<i64: 1, 16>}, {transform_indices = @transform_9, window_bounds = array<i64: 8, 16>}]} {
    %c0_i32 = arith.constant 0 : i32
    %c1_i32 = arith.constant 1 : i32
    %0 = arith.muli %c0_i32, %c1_i32 : i32
    %c0_i32_0 = arith.constant 0 : i32
    %1 = arith.addi %c0_i32_0, %0 : i32
    %c8_i32 = arith.constant 8 : i32
    %2 = arith.muli %1, %c8_i32 : i32
    %3 = tpu.assume_multiple %2, 8 : i32
    %4 = arith.index_cast %3 : i32 to index
    %c0 = arith.constant 0 : index
    %5 = vector.load %arg1[%4, %c0] : memref<8x16xf32, #tpu.memory_space<vmem>>, vector<8x16xf32>
    %6 = arith.index_cast %3 : i32 to index
    %c0_1 = arith.constant 0 : index
    %7 = vector.load %arg2[%6, %c0_1] : memref<8x24xf32, #tpu.memory_space<vmem>>, vector<8x24xf32>
    %c0_2 = arith.constant 0 : index
    %c0_3 = arith.constant 0 : index
    %8 = vector.load %arg3[%c0_2, %c0_3] : memref<16x256xf32, #tpu.memory_space<vmem>>, vector<16x256xf32>
    %cst = arith.constant dense<0.000000e+00> : vector<8x256xf32>
    %9 = tpu.matmul %5, %8, %cst {dimension_numbers = #tpu.dot_dimension_numbers<[1], [0], [0], [1], [0, 0, 1, 1], [], []>, precision = #tpu.contract_precision<fp32>} : vector<8x16xf32>, vector<16x256xf32>, vector<8x256xf32> -> vector<8x256xf32>
    %c0_4 = arith.constant 0 : index
    %c0_5 = arith.constant 0 : index
    %10 = vector.load %arg4[%c0_4, %c0_5] : memref<24x256xf32, #tpu.memory_space<vmem>>, vector<24x256xf32>
    %cst_6 = arith.constant dense<0.000000e+00> : vector<8x256xf32>
    %11 = tpu.matmul %7, %10, %cst_6 {dimension_numbers = #tpu.dot_dimension_numbers<[1], [0], [0], [1], [0, 0, 1, 1], [], []>, precision = #tpu.contract_precision<fp32>} : vector<8x24xf32>, vector<24x256xf32>, vector<8x256xf32> -> vector<8x256xf32>
    %12 = arith.addf %9, %11 : vector<8x256xf32>
    %c0_7 = arith.constant 0 : index
    %c0_8 = arith.constant 0 : index
    %13 = vector.load %arg7[%c0_7, %c0_8] : memref<1x256xf32, #tpu.memory_space<vmem>>, vector<1x256xf32>
    %14 = vector.broadcast %13 : vector<1x256xf32> to vector<8x256xf32>
    %15 = arith.addf %12, %14 : vector<8x256xf32>
    %cst_9 = arith.constant 0.000000e+00 : f32
    %16 = vector.broadcast %cst_9 : f32 to vector<8x256xf32>
    %17 = arith.maximumf %15, %16 : vector<8x256xf32>
    %c0_10 = arith.constant 0 : index
    %c0_11 = arith.constant 0 : index
    %18 = vector.load %arg5[%c0_10, %c0_11] : memref<256x256xf32, #tpu.memory_space<vmem>>, vector<256x256xf32>
    %cst_12 = arith.constant dense<0.000000e+00> : vector<8x256xf32>
    %19 = tpu.matmul %17, %18, %cst_12 {dimension_numbers = #tpu.dot_dimension_numbers<[1], [0], [0], [1], [0, 0, 1, 1], [], []>, precision = #tpu.contract_precision<fp32>} : vector<8x256xf32>, vector<256x256xf32>, vector<8x256xf32> -> vector<8x256xf32>
    %c0_13 = arith.constant 0 : index
    %c0_14 = arith.constant 0 : index
    %20 = vector.load %arg8[%c0_13, %c0_14] : memref<1x256xf32, #tpu.memory_space<vmem>>, vector<1x256xf32>
    %21 = vector.broadcast %20 : vector<1x256xf32> to vector<8x256xf32>
    %22 = arith.addf %19, %21 : vector<8x256xf32>
    %cst_15 = arith.constant 0.000000e+00 : f32
    %23 = vector.broadcast %cst_15 : f32 to vector<8x256xf32>
    %24 = arith.maximumf %22, %23 : vector<8x256xf32>
    %c0_16 = arith.constant 0 : index
    %c0_17 = arith.constant 0 : index
    %25 = vector.load %arg6[%c0_16, %c0_17] : memref<256x16xf32, #tpu.memory_space<vmem>>, vector<256x16xf32>
    %cst_18 = arith.constant dense<0.000000e+00> : vector<8x16xf32>
    %26 = tpu.matmul %24, %25, %cst_18 {dimension_numbers = #tpu.dot_dimension_numbers<[1], [0], [0], [1], [0, 0, 1, 1], [], []>, precision = #tpu.contract_precision<fp32>} : vector<8x256xf32>, vector<256x16xf32>, vector<8x16xf32> -> vector<8x16xf32>
    %c0_19 = arith.constant 0 : index
    %c0_20 = arith.constant 0 : index
    %27 = vector.load %arg9[%c0_19, %c0_20] : memref<1x16xf32, #tpu.memory_space<vmem>>, vector<1x16xf32>
    %28 = vector.broadcast %27 : vector<1x16xf32> to vector<8x16xf32>
    %29 = arith.addf %26, %28 : vector<8x16xf32>
    %30 = arith.index_cast %3 : i32 to index
    %c0_21 = arith.constant 0 : index
    %31 = vector.load %arg10[%30, %c0_21] : memref<8x16xf32, #tpu.memory_space<vmem>>, vector<8x16xf32>
    tpu.vector_store %arg10[%30, %c0_21], %29 {strides = array<i32>} : memref<8x16xf32, #tpu.memory_space<vmem>>, vector<8x16xf32>,
    %c1_i32_22 = arith.constant 1 : i32
    return
  }
  func.func @transform_0(%arg0: i32) -> (i32, i32) {
    %c0_i32 = arith.constant 0 : i32
    %c0_i32_0 = arith.constant 0 : i32
    return %arg0, %c0_i32 : i32, i32
  }
  func.func @transform_1(%arg0: i32) -> (i32, i32) {
    %c0_i32 = arith.constant 0 : i32
    %c0_i32_0 = arith.constant 0 : i32
    return %arg0, %c0_i32 : i32, i32
  }
  func.func @transform_2(%arg0: i32) -> (i32, i32) {
    %c0_i32 = arith.constant 0 : i32
    %c0_i32_0 = arith.constant 0 : i32
    %c0_i32_1 = arith.constant 0 : i32
    return %c0_i32, %c0_i32_0 : i32, i32
  }
  func.func @transform_3(%arg0: i32) -> (i32, i32) {
    %c0_i32 = arith.constant 0 : i32
    %c0_i32_0 = arith.constant 0 : i32
    %c0_i32_1 = arith.constant 0 : i32
    return %c0_i32, %c0_i32_0 : i32, i32
  }
  func.func @transform_4(%arg0: i32) -> (i32, i32) {
    %c0_i32 = arith.constant 0 : i32
    %c0_i32_0 = arith.constant 0 : i32
    %c0_i32_1 = arith.constant 0 : i32
    return %c0_i32, %c0_i32_0 : i32, i32
  }
  func.func @transform_5(%arg0: i32) -> (i32, i32) {
    %c0_i32 = arith.constant 0 : i32
    %c0_i32_0 = arith.constant 0 : i32
    %c0_i32_1 = arith.constant 0 : i32
    return %c0_i32, %c0_i32_0 : i32, i32
  }
  func.func @transform_6(%arg0: i32) -> (i32, i32) {
    %c0_i32 = arith.constant 0 : i32
    %c0_i32_0 = arith.constant 0 : i32
    %c0_i32_1 = arith.constant 0 : i32
    return %c0_i32, %c0_i32_0 : i32, i32
  }
  func.func @transform_7(%arg0: i32) -> (i32, i32) {
    %c0_i32 = arith.constant 0 : i32
    %c0_i32_0 = arith.constant 0 : i32
    %c0_i32_1 = arith.constant 0 : i32
    return %c0_i32, %c0_i32_0 : i32, i32
  }
  func.func @transform_8(%arg0: i32) -> (i32, i32) {
    %c0_i32 = arith.constant 0 : i32
    %c0_i32_0 = arith.constant 0 : i32
    %c0_i32_1 = arith.constant 0 : i32
    return %c0_i32, %c0_i32_0 : i32, i32
  }
  func.func @transform_9(%arg0: i32) -> (i32, i32) {
    %c0_i32 = arith.constant 0 : i32
    %c0_i32_0 = arith.constant 0 : i32
    return %arg0, %c0_i32 : i32, i32
  }
}

</mosaic_0001>

<llo_original>
// kernel: tile.19
$region0: #{tile.19}
  %s0 = inlined_call_operand.vmem [shape: f32[8,32], index: 0, kind: input, shape index: {}]
  %s1 = inlined_call_operand.vmem [shape: f32[1,256], index: 1, kind: output, shape index: {}]
  $region1: #{tile.19} parent=0
    #allocation0 [shape = 'u8[8192]{0}', space=vmem, size = 0x2000, scoped, tag = 'scoped mem for output reshape']
    %s2 = smov 3
    %v3 = vld [vmem:[%s0] ss:$4 sm:%s2]
    %vm4 = vcmask 261120
    %5 = vst.msk [vmem:[#allocation0] ss:$8 sm:$0x3] %vm4, %v3
    %s6 = scalar_lea.vmem %s0, 3
    %s7 = smov 3
    %v8 = vld [vmem:[%s6] ss:$4 sm:%s7]
    %9 = vrot.lane.b32.xlu0 %v8, 96
    %v10 = vpop.permute.xlu0 %9
    %vm11 = vcmask 1048320
    %12 = vst.msk [vmem:[#allocation0] ss:$8 sm:$0x3] %vm11, %v10
    %s13 = scalar_lea.vmem %s0, 2
    %s14 = smov 3
    %v15 = vld [vmem:[%s13] ss:$4 sm:%s14]
    %16 = vrot.lane.b32.xlu0 %v15, 64
    %v17 = vpop.permute.xlu0 %16
    %vm18 = vcmask 785920
    %19 = vst.msk [vmem:[#allocation0] ss:$8 sm:$0x3] %vm18, %v17
    %s20 = scalar_lea.vmem %s0, 1
    %s21 = smov 3
    %v22 = vld [vmem:[%s20] ss:$4 sm:%s21]
    %23 = vrot.lane.b32.xlu0 %v22, 32
    %v24 = vpop.permute.xlu0 %23
    %vm25 = vcmask 523520
    %26 = vst.msk [vmem:[#allocation0] ss:$8 sm:$0x3] %vm25, %v24
    %s28 = sshllo.u32 0, 1
    %v30 = vld [vmem:[#allocation0] sm:%s28]
    %s31 = sshllo.u32 0, 1
    %32 = vst [vmem:[%s1] sm:%s31] %v30
    %s33 = scalar_lea.vmem [#allocation0], 8
    %v34 = vld [vmem:[%s33] sm:%s28]
    %s35 = sshllo.u32 0, 1
    %s36 = scalar_lea.vmem %s1, 1
    %37 = vst [vmem:[%s36] sm:%s35] %v34

// kernel: tile.18
$region0: #{tile.18}
  #allocation0 [shape = 's32[1]{0}', space=sflag, size = 0x4, scoped, tag = 'scoped memory for tile.18']
  %s0 = inlined_call_operand.vmem [shape: f32[32], index: 0, kind: input, shape index: {}]
  %s1 = inlined_call_operand.vmem [shape: f32[8,32], index: 1, kind: output, shape index: {}]
  // Predicated region
  $region2: #{tile.18} parent=0 // pred_check
    _
  $region3: #{tile.18} parent=0 // pred_check_branch
    %3 = sbr.rel (0) target = $region5
  $region4: #{tile.18} parent=0 // pred_region
    _
  $region5: #{tile.18} parent=0 // pred_fallthru
    _
  %v4 = vld [vmem:[%s0] ss:$0 sm:$0xff]
  %5 = vst [vmem:[%s1] sm:$0xff] %v4

// kernel: tile.28
$region0: #{tile.28}
  #allocation0 [shape = 's32[1]{0}', space=sflag, size = 0x4, scoped, tag = 'scoped memory for tile.28']
  %s0 = inlined_call_operand.vmem [shape: f32[2], index: 0, kind: input, shape index: {}]
  %s1 = inlined_call_operand.vmem [shape: f32[8,2], index: 1, kind: output, shape index: {}]
  // Predicated region
  $region2: #{tile.28} parent=0 // pred_check
    _
  $region3: #{tile.28} parent=0 // pred_check_branch
    %3 = sbr.rel (0) target = $region5
  $region4: #{tile.28} parent=0 // pred_region
    _
  $region5: #{tile.28} parent=0 // pred_fallthru
    _
  %v4 = vld [vmem:[%s0] ss:$0 sm:$0xff]
  %5 = vst [vmem:[%s1] sm:$0xff] %v4

// kernel: tile.29
$region0: #{tile.29}
  %s0 = inlined_call_operand.vmem [shape: f32[8,2], index: 0, kind: input, shape index: {}]
  %s1 = inlined_call_operand.vmem [shape: f32[1,16], index: 1, kind: output, shape index: {}]
  $region1: #{tile.29} parent=0
    #allocation0 [shape = 'u8[4096]{0}', space=vmem, size = 0x1000, scoped, tag = 'scoped mem for output reshape']
    %v2 = vld [vmem:[%s0] sm:$0x1]
    %vm3 = vcmask 15360
    %4 = vst.msk [vmem:[#allocation0] sm:$0x1] %vm3, %v2
    %s5 = scalar_lea.vmem %s0, 7
    %v6 = vld [vmem:[%s5] sm:$0x1]
    %7 = vrot.lane.b32.xlu0 %v6, 14
    %v8 = vpop.permute.xlu0 %7
    %vm9 = vcmask 130160
    %10 = vst.msk [vmem:[#allocation0] sm:$0x1] %vm9, %v8
    %s11 = scalar_lea.vmem %s0, 6
    %v12 = vld [vmem:[%s11] sm:$0x1]
    %13 = vrot.lane.b32.xlu0 %v12, 12
    %v14 = vpop.permute.xlu0 %13
    %vm15 = vcmask 113760
    %16 = vst.msk [vmem:[#allocation0] sm:$0x1] %vm15, %v14
    %s17 = scalar_lea.vmem %s0, 5
    %v18 = vld [vmem:[%s17] sm:$0x1]
    %19 = vrot.lane.b32.xlu0 %v18, 10
    %v20 = vpop.permute.xlu0 %19
    %vm21 = vcmask 97360
    %22 = vst.msk [vmem:[#allocation0] sm:$0x1] %vm21, %v20
    %s23 = scalar_lea.vmem %s0, 4
    %v24 = vld [vmem:[%s23] sm:$0x1]
    %25 = vrot.lane.b32.xlu0 %v24, 8
    %v26 = vpop.permute.xlu0 %25
    %vm27 = vcmask 80960
    %28 = vst.msk [vmem:[#allocation0] sm:$0x1] %vm27, %v26
    %s29 = scalar_lea.vmem %s0, 3
    %v30 = vld [vmem:[%s29] sm:$0x1]
    %31 = vrot.lane.b32.xlu0 %v30, 6
    %v32 = vpop.permute.xlu0 %31
    %vm33 = vcmask 64560
    %34 = vst.msk [vmem:[#allocation0] sm:$0x1] %vm33, %v32
    %s35 = scalar_lea.vmem %s0, 2
    %v36 = vld [vmem:[%s35] sm:$0x1]
    %37 = vrot.lane.b32.xlu0 %v36, 4
    %v38 = vpop.permute.xlu0 %37
    %vm39 = vcmask 48160
    %40 = vst.msk [vmem:[#allocation0] sm:$0x1] %vm39, %v38
    %s41 = scalar_lea.vmem %s0, 1
    %v42 = vld [vmem:[%s41] sm:$0x1]
    %43 = vrot.lane.b32.xlu0 %v42, 2
    %v44 = vpop.permute.xlu0 %43
    %vm45 = vcmask 31760
    %46 = vst.msk [vmem:[#allocation0] sm:$0x1] %vm45, %v44
    %s48 = sshllo.u32 0, 1
    %v50 = vld [vmem:[#allocation0] sm:%s48]
    %s51 = sshllo.u32 0, 1
    %52 = vst [vmem:[%s1] sm:%s51] %v50

// kernel: node_model_forward.1
$region0: #{node_model_forward.1}
  #allocation0 [shape = 'u32[]', space=smem, size = 0x4, offset = 0x4, fixed_abs, tag = 'smem constant byte address 0x4 - core index']
  #allocation1 [shape = 'u32[144,128]{1,0:T(1,128)}', space=vmem, size = 0x12000, scoped, tag = 'internal scratch']
  %s0 = inlined_call_operand.vmem [shape: f32[8,16], index: 0, kind: input, shape index: {}]
  %s1 = inlined_call_operand.vmem [shape: f32[8,24], index: 1, kind: input, shape index: {}]
  %s2 = inlined_call_operand.vmem [shape: f32[16,256], index: 2, kind: input, shape index: {}]
  %s3 = inlined_call_operand.vmem [shape: f32[24,256], index: 3, kind: input, shape index: {}]
  %s4 = inlined_call_operand.vmem [shape: f32[256,256], index: 4, kind: input, shape index: {}]
  %s5 = inlined_call_operand.vmem [shape: f32[256,16], index: 5, kind: input, shape index: {}]
  %s6 = inlined_call_operand.vmem [shape: f32[1,256], index: 6, kind: input, shape index: {}]
  %s7 = inlined_call_operand.vmem [shape: f32[1,256], index: 7, kind: input, shape index: {}]
  %s8 = inlined_call_operand.vmem [shape: f32[1,16], index: 8, kind: input, shape index: {}]
  %s9 = inlined_call_operand.vmem [shape: f32[8,16], index: 9, kind: output, shape index: {}]
  %s10 = sld [smem:[#allocation0]]
  $region46: #{node_model_forward.1} parent=0
    _
  %s12 = ssub.s32 1, %s10
  %s13 = scalar_select 0, %s12, %s10
  // Predicated region
  $region2: #{node_model_forward.1} parent=0 // pred_check
    _
  $region3: #{node_model_forward.1} parent=0 // pred_check_branch
    %15 = sbr.rel (0) target = $region5
  $region4: #{node_model_forward.1} parent=0 // pred_region
    _
  $region5: #{node_model_forward.1} parent=0 // pred_fallthru
    _
  // Predicated region
  $region6: #{node_model_forward.1} parent=0 // pred_check
    _
  $region7: #{node_model_forward.1} parent=0 // pred_check_branch
    %17 = sbr.rel (0) target = $region9
  $region8: #{node_model_forward.1} parent=0 // pred_region
    _
  $region9: #{node_model_forward.1} parent=0 // pred_fallthru
    _
  // Predicated region
  $region10: #{node_model_forward.1} parent=0 // pred_check
    _
  $region11: #{node_model_forward.1} parent=0 // pred_check_branch
    %19 = sbr.rel (0) target = $region13
  $region12: #{node_model_forward.1} parent=0 // pred_region
    _
  $region13: #{node_model_forward.1} parent=0 // pred_fallthru
    _
  // Predicated region
  $region14: #{node_model_forward.1} parent=0 // pred_check
    _
  $region15: #{node_model_forward.1} parent=0 // pred_check_branch
    %21 = sbr.rel (0) target = $region17
  $region16: #{node_model_forward.1} parent=0 // pred_region
    _
  $region17: #{node_model_forward.1} parent=0 // pred_fallthru
    _
  // Predicated region
  $region18: #{node_model_forward.1} parent=0 // pred_check
    _
  $region19: #{node_model_forward.1} parent=0 // pred_check_branch
    %23 = sbr.rel (0) target = $region21
  $region20: #{node_model_forward.1} parent=0 // pred_region
    _
  $region21: #{node_model_forward.1} parent=0 // pred_fallthru
    _
  // Predicated region
  $region22: #{node_model_forward.1} parent=0 // pred_check
    _
  $region23: #{node_model_forward.1} parent=0 // pred_check_branch
    %25 = sbr.rel (0) target = $region25
  $region24: #{node_model_forward.1} parent=0 // pred_region
    _
  $region25: #{node_model_forward.1} parent=0 // pred_fallthru
    _
  // Predicated region
  $region26: #{node_model_forward.1} parent=0 // pred_check
    _
  $region27: #{node_model_forward.1} parent=0 // pred_check_branch
    %27 = sbr.rel (0) target = $region29
  $region28: #{node_model_forward.1} parent=0 // pred_region
    _
  $region29: #{node_model_forward.1} parent=0 // pred_fallthru
    _
  // Predicated region
  $region30: #{node_model_forward.1} parent=0 // pred_check
    _
  $region31: #{node_model_forward.1} parent=0 // pred_check_branch
    %29 = sbr.rel (0) target = $region33
  $region32: #{node_model_forward.1} parent=0 // pred_region
    _
  $region33: #{node_model_forward.1} parent=0 // pred_fallthru
    _
  // Predicated region
  $region34: #{node_model_forward.1} parent=0 // pred_check
    _
  $region35: #{node_model_forward.1} parent=0 // pred_check_branch
    %31 = sbr.rel (0) target = $region37
  $region36: #{node_model_forward.1} parent=0 // pred_region
    _
  $region37: #{node_model_forward.1} parent=0 // pred_fallthru
    _
  %v32 = vld [vmem:[%s0] sm:$0xff]
  %v33 = vld [vmem:[%s1] sm:$0xff]
  %v34 = vld [vmem:[%s2] sm:$0xff]
  %v35 = vld [vmem:[%s2 + $0x8] sm:$0xff]
  %v36 = vld [vmem:[%s2 + $0x10] sm:$0xff]
  %v37 = vld [vmem:[%s2 + $0x18] sm:$0xff]
  %v38 = vld [vmem:[%s3] sm:$0xff]
  %v39 = vld [vmem:[%s3 + $0x8] sm:$0xff]
  %v40 = vld [vmem:[%s3 + $0x10] sm:$0xff]
  %v41 = vld [vmem:[%s3 + $0x18] sm:$0xff]
  %v42 = vld [vmem:[%s3 + $0x20] sm:$0xff]
  %v43 = vld [vmem:[%s3 + $0x28] sm:$0xff]
  %vm44 = vcmask 195584
  %v46 = vsel %vm44, %v33, 0
  %v48 = vand.u32 %v39, 4294901760
  %49 = vmatprep.subr.mxu0 %v48
  %v50 = vand.u32 %v38, 4294901760
  %51 = vmatpush1.msra.mxu0 %v50
  %v52 = vand.u32 %v41, 4294901760
  %53 = vmatprep.subr.mxu0 %v52
  %v54 = vand.u32 %v40, 4294901760
  %55 = vmatpush1.msra.mxu0 %v54
  %v56 = vand.u32 %v43, 4294901760
  %57 = vmatprep.subr.mxu0 %v56
  %v58 = vand.u32 %v42, 4294901760
  %59 = vmatpush1.msra.mxu0 %v58
  %60 = vmatprep.subr.mxu0 0.0
  %61 = vmatpush1.msra.mxu0 0.0
  %62 = vmatprep.subr.mxu0 0.0
  %63 = vmatpush1.msra.mxu0 0.0
  %64 = vmatprep.subr.mxu0 0.0
  %65 = vmatpush1.msra.mxu0 0.0
  %66 = vmatprep.subr.mxu0 0.0
  %67 = vmatpush1.msra.mxu0 0.0
  %68 = vmatprep.subr.mxu0 0.0
  %69 = vmatpush1.msra.mxu0 0.0
  %70 = vmatprep.subr.mxu0 0.0
  %71 = vmatpush1.msra.mxu0 0.0
  %72 = vmatprep.subr.mxu0 0.0
  %73 = vmatpush1.msra.mxu0 0.0
  %74 = vmatprep.subr.mxu0 0.0
  %75 = vmatpush1.msra.mxu0 0.0
  %76 = vmatprep.subr.mxu0 0.0
  %77 = vmatpush1.msra.mxu0 0.0
  %78 = vmatprep.subr.mxu0 0.0
  %79 = vmatpush1.msra.mxu0 0.0
  %80 = vmatprep.subr.mxu0 0.0
  %81 = vmatpush1.msra.mxu0 0.0
  %82 = vmatprep.subr.mxu0 0.0
  %83 = vmatpush1.msra.mxu0 0.0
  %84 = vmatprep.subr.mxu0 0.0
  %85 = vmatpush1.msra.mxu0 0.0
  %86 = vmatprep.subr.mxu0 0.0
  %87 = vmatpush1.msra.mxu0 0.0
  %88 = vmatprep.subr.mxu0 0.0
  %89 = vmatpush1.msra.mxu0 0.0
  %90 = vmatprep.subr.mxu0 0.0
  %91 = vmatpush1.msra.mxu0 0.0
  %92 = vmatprep.subr.mxu0 0.0
  %93 = vmatpush1.msra.mxu0 0.0
  %94 = vmatprep.subr.mxu0 0.0
  %95 = vmatpush1.msra.mxu0 0.0
  %96 = vmatprep.subr.mxu0 0.0
  %97 = vmatpush1.msra.mxu0 0.0
  %98 = vmatprep.subr.mxu0 0.0
  %99 = vmatpush1.msra.mxu0 0.0
  %100 = vmatprep.subr.mxu0 0.0
  %101 = vmatpush1.msra.mxu0 0.0
  %102 = vmatprep.subr.mxu0 0.0
  %103 = vmatpush1.msra.mxu0 0.0
  %104 = vmatprep.subr.mxu0 0.0
  %105 = vmatpush1.msra.mxu0 0.0
  %106 = vmatprep.subr.mxu0 0.0
  %107 = vmatpush1.msra.mxu0 0.0
  %108 = vmatprep.subr.mxu0 0.0
  %109 = vmatpush1.msra.mxu0 0.0
  %110 = vmatprep.subr.mxu0 0.0
  %111 = vmatpush1.msra.mxu0 0.0
  %112 = vmatprep.subr.mxu0 0.0
  %113 = vmatpush1.msra.mxu0 0.0
  %114 = vmatprep.subr.mxu0 0.0
  %115 = vmatpush1.msra.mxu0 0.0
  %116 = vmatprep.subr.mxu0 0.0
  %117 = vmatpush1.msra.mxu0 0.0
  %118 = vmatprep.mubr.f32.mxu0 0.0
  %v119 = vand.u32 %v46, 4294901760
  %v120 = vsub.f32 %v46, %v119
  %v121 = vand.u32 %v120, 4294901760
  %v122 = vsub.f32 %v120, %v121
  %v123 = vand.u32 %v122, 4294901760
  %124 = vmatmul.mubr.f32.gmra.mrb[0].mxu0 %v123
  %v125 = vpop.f32.mrb[0].mxu0
  %v126 = vadd.f32 0.0, %v125
  %v127 = vpop.f32.mrb[0].mxu0
  %v128 = vadd.f32 0.0, %v127
  %129 = vdwg.mxu0
  %v130 = vand.u32 %v39, 4294901760
  %v131 = vsub.f32 %v39, %v130
  %v132 = vand.u32 %v131, 4294901760
  %v133 = vsub.f32 %v131, %v132
  %v134 = vand.u32 %v133, 4294901760
  %135 = vmatprep.subr.mxu0 %v134
  %v136 = vand.u32 %v38, 4294901760
  %v137 = vsub.f32 %v38, %v136
  %v138 = vand.u32 %v137, 4294901760
  %v139 = vsub.f32 %v137, %v138
  %v140 = vand.u32 %v139, 4294901760
  %141 = vmatpush1.msra.mxu0 %v140
  %v142 = vand.u32 %v41, 4294901760
  %v143 = vsub.f32 %v41, %v142
  %v144 = vand.u32 %v143, 4294901760
  %v145 = vsub.f32 %v143, %v144
  %v146 = vand.u32 %v145, 4294901760
  %147 = vmatprep.subr.mxu0 %v146
  %v148 = vand.u32 %v40, 4294901760
  %v149 = vsub.f32 %v40, %v148
  %v150 = vand.u32 %v149, 4294901760
  %v151 = vsub.f32 %v149, %v150
  %v152 = vand.u32 %v151, 4294901760
  %153 = vmatpush1.msra.mxu0 %v152
  %v154 = vand.u32 %v43, 4294901760
  %v155 = vsub.f32 %v43, %v154
  %v156 = vand.u32 %v155, 4294901760
  %v157 = vsub.f32 %v155, %v156
  %v158 = vand.u32 %v157, 4294901760
  %159 = vmatprep.subr.mxu0 %v158
  %v160 = vand.u32 %v42, 4294901760
  %v161 = vsub.f32 %v42, %v160
  %v162 = vand.u32 %v161, 4294901760
  %v163 = vsub.f32 %v161, %v162
  %v164 = vand.u32 %v163, 4294901760
  %165 = vmatpush1.msra.mxu0 %v164
  %166 = vmatprep.subr.mxu0 0.0
  %167 = vmatpush1.msra.mxu0 0.0
  %168 = vmatprep.subr.mxu0 0.0
  %169 = vmatpush1.msra.mxu0 0.0
  %170 = vmatprep.subr.mxu0 0.0
  %171 = vmatpush1.msra.mxu0 0.0
  %172 = vmatprep.subr.mxu0 0.0
  %173 = vmatpush1.msra.mxu0 0.0
  %174 = vmatprep.subr.mxu0 0.0
  %175 = vmatpush1.msra.mxu0 0.0
  %176 = vmatprep.subr.mxu0 0.0
  %177 = vmatpush1.msra.mxu0 0.0
  %178 = vmatprep.subr.mxu0 0.0
  %179 = vmatpush1.msra.mxu0 0.0
  %180 = vmatprep.subr.mxu0 0.0
  %181 = vmatpush1.msra.mxu0 0.0
  %182 = vmatprep.subr.mxu0 0.0
  %183 = vmatpush1.msra.mxu0 0.0
  %184 = vmatprep.subr.mxu0 0.0
  %185 = vmatpush1.msra.mxu0 0.0
  %186 = vmatprep.subr.mxu0 0.0
  %187 = vmatpush1.msra.mxu0 0.0
  %188 = vmatprep.subr.mxu0 0.0
  %189 = vmatpush1.msra.mxu0 0.0
  %190 = vmatprep.subr.mxu0 0.0
  %191 = vmatpush1.msra.mxu0 0.0
  %192 = vmatprep.subr.mxu0 0.0
  %193 = vmatpush1.msra.mxu0 0.0
  %194 = vmatprep.subr.mxu0 0.0
  %195 = vmatpush1.msra.mxu0 0.0
  %196 = vmatprep.subr.mxu0 0.0
  %197 = vmatpush1.msra.mxu0 0.0
  %198 = vmatprep.subr.mxu0 0.0
  %199 = vmatpush1.msra.mxu0 0.0
  %200 = vmatprep.subr.mxu0 0.0
  %201 = vmatpush1.msra.mxu0 0.0
  %202 = vmatprep.subr.mxu0 0.0
  %203 = vmatpush1.msra.mxu0 0.0
  %204 = vmatprep.subr.mxu0 0.0
  %205 = vmatpush1.msra.mxu0 0.0
  %206 = vmatprep.subr.mxu0 0.0
  %207 = vmatpush1.msra.mxu0 0.0
  %208 = vmatprep.subr.mxu0 0.0
  %209 = vmatpush1.msra.mxu0 0.0
  %210 = vmatprep.subr.mxu0 0.0
  %211 = vmatpush1.msra.mxu0 0.0
  %212 = vmatprep.subr.mxu0 0.0
  %213 = vmatpush1.msra.mxu0 0.0
  %214 = vmatprep.subr.mxu0 0.0
  %215 = vmatpush1.msra.mxu0 0.0
  %216 = vmatprep.subr.mxu0 0.0
  %217 = vmatpush1.msra.mxu0 0.0
  %218 = vmatprep.subr.mxu0 0.0
  %219 = vmatpush1.msra.mxu0 0.0
  %220 = vmatprep.subr.mxu0 0.0
  %221 = vmatpush1.msra.mxu0 0.0
  %222 = vmatprep.subr.mxu0 0.0
  %223 = vmatpush1.msra.mxu0 0.0
  %224 = vmatprep.mubr.f32.mxu0 0.0
  %v225 = vand.u32 %v46, 4294901760
  %226 = vmatmul.mubr.f32.gmra.mrb[0].mxu0 %v225
  %v227 = vpop.f32.mrb[0].mxu0
  %v228 = vadd.f32 %v126, %v227
  %v229 = vpop.f32.mrb[0].mxu0
  %v230 = vadd.f32 %v128, %v229
  %231 = vdwg.mxu0
  %v232 = vand.u32 %v39, 4294901760
  %v233 = vsub.f32 %v39, %v232
  %234 = vmatprep.subr.mxu0 %v233
  %v235 = vand.u32 %v38, 4294901760
  %v236 = vsub.f32 %v38, %v235
  %237 = vmatpush1.msra.mxu0 %v236
  %v238 = vand.u32 %v41, 4294901760
  %v239 = vsub.f32 %v41, %v238
  %240 = vmatprep.subr.mxu0 %v239
  %v241 = vand.u32 %v40, 4294901760
  %v242 = vsub.f32 %v40, %v241
  %243 = vmatpush1.msra.mxu0 %v242
  %v244 = vand.u32 %v43, 4294901760
  %v245 = vsub.f32 %v43, %v244
  %246 = vmatprep.subr.mxu0 %v245
  %v247 = vand.u32 %v42, 4294901760
  %v248 = vsub.f32 %v42, %v247
  %249 = vmatpush1.msra.mxu0 %v248
  %250 = vmatprep.subr.mxu0 0.0
  %251 = vmatpush1.msra.mxu0 0.0
  %252 = vmatprep.subr.mxu0 0.0
  %253 = vmatpush1.msra.mxu0 0.0
  %254 = vmatprep.subr.mxu0 0.0
  %255 = vmatpush1.msra.mxu0 0.0
  %256 = vmatprep.subr.mxu0 0.0
  %257 = vmatpush1.msra.mxu0 0.0
  %258 = vmatprep.subr.mxu0 0.0
  %259 = vmatpush1.msra.mxu0 0.0
  %260 = vmatprep.subr.mxu0 0.0
  %261 = vmatpush1.msra.mxu0 0.0
  %262 = vmatprep.subr.mxu0 0.0
  %263 = vmatpush1.msra.mxu0 0.0
  %264 = vmatprep.subr.mxu0 0.0
  %265 = vmatpush1.msra.mxu0 0.0
  %266 = vmatprep.subr.mxu0 0.0
  %267 = vmatpush1.msra.mxu0 0.0
  %268 = vmatprep.subr.mxu0 0.0
  %269 = vmatpush1.msra.mxu0 0.0
  %270 = vmatprep.subr.mxu0 0.0
  %271 = vmatpush1.msra.mxu0 0.0
  %272 = vmatprep.subr.mxu0 0.0
  %273 = vmatpush1.msra.mxu0 0.0
  %274 = vmatprep.subr.mxu0 0.0
  %275 = vmatpush1.msra.mxu0 0.0
  %276 = vmatprep.subr.mxu0 0.0
  %277 = vmatpush1.msra.mxu0 0.0
  %278 = vmatprep.subr.mxu0 0.0
  %279 = vmatpush1.msra.mxu0 0.0
  %280 = vmatprep.subr.mxu0 0.0
  %281 = vmatpush1.msra.mxu0 0.0
  %282 = vmatprep.subr.mxu0 0.0
  %283 = vmatpush1.msra.mxu0 0.0
  %284 = vmatprep.subr.mxu0 0.0
  %285 = vmatpush1.msra.mxu0 0.0
  %286 = vmatprep.subr.mxu0 0.0
  %287 = vmatpush1.msra.mxu0 0.0
  %288 = vmatprep.subr.mxu0 0.0
  %289 = vmatpush1.msra.mxu0 0.0
  %290 = vmatprep.subr.mxu0 0.0
  %291 = vmatpush1.msra.mxu0 0.0
  %292 = vmatprep.subr.mxu0 0.0
  %293 = vmatpush1.msra.mxu0 0.0
  %294 = vmatprep.subr.mxu0 0.0
  %295 = vmatpush1.msra.mxu0 0.0
  %296 = vmatprep.subr.mxu0 0.0
  %297 = vmatpush1.msra.mxu0 0.0
  %298 = vmatprep.subr.mxu0 0.0
  %299 = vmatpush1.msra.mxu0 0.0
  %300 = vmatprep.subr.mxu0 0.0
  %301 = vmatpush1.msra.mxu0 0.0
  %302 = vmatprep.subr.mxu0 0.0
  %303 = vmatpush1.msra.mxu0 0.0
  %304 = vmatprep.subr.mxu0 0.0
  %305 = vmatpush1.msra.mxu0 0.0
  %306 = vmatprep.subr.mxu0 0.0
  %307 = vmatpush1.msra.mxu0 0.0
  %308 = vmatprep.mubr.f32.mxu0 0.0
  %v309 = vand.u32 %v46, 4294901760
  %v310 = vsub.f32 %v46, %v309
  %311 = vmatmul.mubr.f32.gmra.mrb[0].mxu0 %v310
  %v312 = vpop.f32.mrb[0].mxu0
  %v313 = vadd.f32 %v228, %v312
  %v314 = vpop.f32.mrb[0].mxu0
  %v315 = vadd.f32 %v230, %v314
  %316 = vdwg.mxu0
  %v317 = vand.u32 %v39, 4294901760
  %318 = vmatprep.subr.mxu0 %v317
  %v319 = vand.u32 %v38, 4294901760
  %320 = vmatpush1.msra.mxu0 %v319
  %v321 = vand.u32 %v41, 4294901760
  %322 = vmatprep.subr.mxu0 %v321
  %v323 = vand.u32 %v40, 4294901760
  %324 = vmatpush1.msra.mxu0 %v323
  %v325 = vand.u32 %v43, 4294901760
  %326 = vmatprep.subr.mxu0 %v325
  %v327 = vand.u32 %v42, 4294901760
  %328 = vmatpush1.msra.mxu0 %v327
  %329 = vmatprep.subr.mxu0 0.0
  %330 = vmatpush1.msra.mxu0 0.0
  %331 = vmatprep.subr.mxu0 0.0
  %332 = vmatpush1.msra.mxu0 0.0
  %333 = vmatprep.subr.mxu0 0.0
  %334 = vmatpush1.msra.mxu0 0.0
  %335 = vmatprep.subr.mxu0 0.0
  %336 = vmatpush1.msra.mxu0 0.0
  %337 = vmatprep.subr.mxu0 0.0
  %338 = vmatpush1.msra.mxu0 0.0
  %339 = vmatprep.subr.mxu0 0.0
  %340 = vmatpush1.msra.mxu0 0.0
  %341 = vmatprep.subr.mxu0 0.0
  %342 = vmatpush1.msra.mxu0 0.0
  %343 = vmatprep.subr.mxu0 0.0
  %344 = vmatpush1.msra.mxu0 0.0
  %345 = vmatprep.subr.mxu0 0.0
  %346 = vmatpush1.msra.mxu0 0.0
  %347 = vmatprep.subr.mxu0 0.0
  %348 = vmatpush1.msra.mxu0 0.0
  %349 = vmatprep.subr.mxu0 0.0
  %350 = vmatpush1.msra.mxu0 0.0
  %351 = vmatprep.subr.mxu0 0.0
  %352 = vmatpush1.msra.mxu0 0.0
  %353 = vmatprep.subr.mxu0 0.0
  %354 = vmatpush1.msra.mxu0 0.0
  %355 = vmatprep.subr.mxu0 0.0
  %356 = vmatpush1.msra.mxu0 0.0
  %357 = vmatprep.subr.mxu0 0.0
  %358 = vmatpush1.msra.mxu0 0.0
  %359 = vmatprep.subr.mxu0 0.0
  %360 = vmatpush1.msra.mxu0 0.0
  %361 = vmatprep.subr.mxu0 0.0
  %362 = vmatpush1.msra.mxu0 0.0
  %363 = vmatprep.subr.mxu0 0.0
  %364 = vmatpush1.msra.mxu0 0.0
  %365 = vmatprep.subr.mxu0 0.0
  %366 = vmatpush1.msra.mxu0 0.0
  %367 = vmatprep.subr.mxu0 0.0
  %368 = vmatpush1.msra.mxu0 0.0
  %369 = vmatprep.subr.mxu0 0.0
  %370 = vmatpush1.msra.mxu0 0.0
  %371 = vmatprep.subr.mxu0 0.0
  %372 = vmatpush1.msra.mxu0 0.0
  %373 = vmatprep.subr.mxu0 0.0
  %374 = vmatpush1.msra.mxu0 0.0
  %375 = vmatprep.subr.mxu0 0.0
  %376 = vmatpush1.msra.mxu0 0.0
  %377 = vmatprep.subr.mxu0 0.0
  %378 = vmatpush1.msra.mxu0 0.0
  %379 = vmatprep.subr.mxu0 0.0
  %380 = vmatpush1.msra.mxu0 0.0
  %381 = vmatprep.subr.mxu0 0.0
  %382 = vmatpush1.msra.mxu0 0.0
  %383 = vmatprep.subr.mxu0 0.0
  %384 = vmatpush1.msra.mxu0 0.0
  %385 = vmatprep.subr.mxu0 0.0
  %386 = vmatpush1.msra.mxu0 0.0
  %387 = vmatprep.mubr.f32.mxu0 0.0
  %v388 = vand.u32 %v46, 4294901760
  %v389 = vsub.f32 %v46, %v388
  %v390 = vand.u32 %v389, 4294901760
  %391 = vmatmul.mubr.f32.gmra.mrb[0].mxu0 %v390
  %v392 = vpop.f32.mrb[0].mxu0
  %v393 = vadd.f32 %v313, %v392
  %v394 = vpop.f32.mrb[0].mxu0
  %v395 = vadd.f32 %v315, %v394
  %396 = vdwg.mxu0
  %v397 = vand.u32 %v39, 4294901760
  %v398 = vsub.f32 %v39, %v397
  %v399 = vand.u32 %v398, 4294901760
  %400 = vmatprep.subr.mxu0 %v399
  %v401 = vand.u32 %v38, 4294901760
  %v402 = vsub.f32 %v38, %v401
  %v403 = vand.u32 %v402, 4294901760
  %404 = vmatpush1.msra.mxu0 %v403
  %v405 = vand.u32 %v41, 4294901760
  %v406 = vsub.f32 %v41, %v405
  %v407 = vand.u32 %v406, 4294901760
  %408 = vmatprep.subr.mxu0 %v407
  %v409 = vand.u32 %v40, 4294901760
  %v410 = vsub.f32 %v40, %v409
  %v411 = vand.u32 %v410, 4294901760
  %412 = vmatpush1.msra.mxu0 %v411
  %v413 = vand.u32 %v43, 4294901760
  %v414 = vsub.f32 %v43, %v413
  %v415 = vand.u32 %v414, 4294901760
  %416 = vmatprep.subr.mxu0 %v415
  %v417 = vand.u32 %v42, 4294901760
  %v418 = vsub.f32 %v42, %v417
  %v419 = vand.u32 %v418, 4294901760
  %420 = vmatpush1.msra.mxu0 %v419
  %421 = vmatprep.subr.mxu0 0.0
  %422 = vmatpush1.msra.mxu0 0.0
  %423 = vmatprep.subr.mxu0 0.0
  %424 = vmatpush1.msra.mxu0 0.0
  %425 = vmatprep.subr.mxu0 0.0
  %426 = vmatpush1.msra.mxu0 0.0
  %427 = vmatprep.subr.mxu0 0.0
  %428 = vmatpush1.msra.mxu0 0.0
  %429 = vmatprep.subr.mxu0 0.0
  %430 = vmatpush1.msra.mxu0 0.0
  %431 = vmatprep.subr.mxu0 0.0
  %432 = vmatpush1.msra.mxu0 0.0
  %433 = vmatprep.subr.mxu0 0.0
  %434 = vmatpush1.msra.mxu0 0.0
  %435 = vmatprep.subr.mxu0 0.0
  %436 = vmatpush1.msra.mxu0 0.0
  %437 = vmatprep.subr.mxu0 0.0
  %438 = vmatpush1.msra.mxu0 0.0
  %439 = vmatprep.subr.mxu0 0.0
  %440 = vmatpush1.msra.mxu0 0.0
  %441 = vmatprep.subr.mxu0 0.0
  %442 = vmatpush1.msra.mxu0 0.0
  %443 = vmatprep.subr.mxu0 0.0
  %444 = vmatpush1.msra.mxu0 0.0
  %445 = vmatprep.subr.mxu0 0.0
  %446 = vmatpush1.msra.mxu0 0.0
  %447 = vmatprep.subr.mxu0 0.0
  %448 = vmatpush1.msra.mxu0 0.0
  %449 = vmatprep.subr.mxu0 0.0
  %450 = vmatpush1.msra.mxu0 0.0
  %451 = vmatprep.subr.mxu0 0.0
  %452 = vmatpush1.msra.mxu0 0.0
  %453 = vmatprep.subr.mxu0 0.0
  %454 = vmatpush1.msra.mxu0 0.0
  %455 = vmatprep.subr.mxu0 0.0
  %456 = vmatpush1.msra.mxu0 0.0
  %457 = vmatprep.subr.mxu0 0.0
  %458 = vmatpush1.msra.mxu0 0.0
  %459 = vmatprep.subr.mxu0 0.0
  %460 = vmatpush1.msra.mxu0 0.0
  %461 = vmatprep.subr.mxu0 0.0
  %462 = vmatpush1.msra.mxu0 0.0
  %463 = vmatprep.subr.mxu0 0.0
  %464 = vmatpush1.msra.mxu0 0.0
  %465 = vmatprep.subr.mxu0 0.0
  %466 = vmatpush1.msra.mxu0 0.0
  %467 = vmatprep.subr.mxu0 0.0
  %468 = vmatpush1.msra.mxu0 0.0
  %469 = vmatprep.subr.mxu0 0.0
  %470 = vmatpush1.msra.mxu0 0.0
  %471 = vmatprep.subr.mxu0 0.0
  %472 = vmatpush1.msra.mxu0 0.0
  %473 = vmatprep.subr.mxu0 0.0
  %474 = vmatpush1.msra.mxu0 0.0
  %475 = vmatprep.subr.mxu0 0.0
  %476 = vmatpush1.msra.mxu0 0.0
  %477 = vmatprep.subr.mxu0 0.0
  %478 = vmatpush1.msra.mxu0 0.0
  %479 = vmatprep.mubr.f32.mxu0 0.0
  %v480 = vand.u32 %v46, 4294901760
  %481 = vmatmul.mubr.f32.gmra.mrb[0].mxu0 %v480
  %v482 = vpop.f32.mrb[0].mxu0
  %v483 = vadd.f32 %v393, %v482
  %v484 = vpop.f32.mrb[0].mxu0
  %v485 = vadd.f32 %v395, %v484
  %486 = vdwg.mxu0
  %v487 = vand.u32 %v39, 4294901760
  %488 = vmatprep.subr.mxu0 %v487
  %v489 = vand.u32 %v38, 4294901760
  %490 = vmatpush1.msra.mxu0 %v489
  %v491 = vand.u32 %v41, 4294901760
  %492 = vmatprep.subr.mxu0 %v491
  %v493 = vand.u32 %v40, 4294901760
  %494 = vmatpush1.msra.mxu0 %v493
  %v495 = vand.u32 %v43, 4294901760
  %496 = vmatprep.subr.mxu0 %v495
  %v497 = vand.u32 %v42, 4294901760
  %498 = vmatpush1.msra.mxu0 %v497
  %499 = vmatprep.subr.mxu0 0.0
  %500 = vmatpush1.msra.mxu0 0.0
  %501 = vmatprep.subr.mxu0 0.0
  %502 = vmatpush1.msra.mxu0 0.0
  %503 = vmatprep.subr.mxu0 0.0
  %504 = vmatpush1.msra.mxu0 0.0
  %505 = vmatprep.subr.mxu0 0.0
  %506 = vmatpush1.msra.mxu0 0.0
  %507 = vmatprep.subr.mxu0 0.0
  %508 = vmatpush1.msra.mxu0 0.0
  %509 = vmatprep.subr.mxu0 0.0
  %510 = vmatpush1.msra.mxu0 0.0
  %511 = vmatprep.subr.mxu0 0.0
  %512 = vmatpush1.msra.mxu0 0.0
  %513 = vmatprep.subr.mxu0 0.0
  %514 = vmatpush1.msra.mxu0 0.0
  %515 = vmatprep.subr.mxu0 0.0
  %516 = vmatpush1.msra.mxu0 0.0
  %517 = vmatprep.subr.mxu0 0.0
  %518 = vmatpush1.msra.mxu0 0.0
  %519 = vmatprep.subr.mxu0 0.0
  %520 = vmatpush1.msra.mxu0 0.0
  %521 = vmatprep.subr.mxu0 0.0
  %522 = vmatpush1.msra.mxu0 0.0
  %523 = vmatprep.subr.mxu0 0.0
  %524 = vmatpush1.msra.mxu0 0.0
  %525 = vmatprep.subr.mxu0 0.0
  %526 = vmatpush1.msra.mxu0 0.0
  %527 = vmatprep.subr.mxu0 0.0
  %528 = vmatpush1.msra.mxu0 0.0
  %529 = vmatprep.subr.mxu0 0.0
  %530 = vmatpush1.msra.mxu0 0.0
  %531 = vmatprep.subr.mxu0 0.0
  %532 = vmatpush1.msra.mxu0 0.0
  %533 = vmatprep.subr.mxu0 0.0
  %534 = vmatpush1.msra.mxu0 0.0
  %535 = vmatprep.subr.mxu0 0.0
  %536 = vmatpush1.msra.mxu0 0.0
  %537 = vmatprep.subr.mxu0 0.0
  %538 = vmatpush1.msra.mxu0 0.0
  %539 = vmatprep.subr.mxu0 0.0
  %540 = vmatpush1.msra.mxu0 0.0
  %541 = vmatprep.subr.mxu0 0.0
  %542 = vmatpush1.msra.mxu0 0.0
  %543 = vmatprep.subr.mxu0 0.0
  %544 = vmatpush1.msra.mxu0 0.0
  %545 = vmatprep.subr.mxu0 0.0
  %546 = vmatpush1.msra.mxu0 0.0
  %547 = vmatprep.subr.mxu0 0.0
  %548 = vmatpush1.msra.mxu0 0.0
  %549 = vmatprep.subr.mxu0 0.0
  %550 = vmatpush1.msra.mxu0 0.0
  %551 = vmatprep.subr.mxu0 0.0
  %552 = vmatpush1.msra.mxu0 0.0
  %553 = vmatprep.subr.mxu0 0.0
  %554 = vmatpush1.msra.mxu0 0.0
  %555 = vmatprep.subr.mxu0 0.0
  %556 = vmatpush1.msra.mxu0 0.0
  %557 = vmatprep.mubr.f32.mxu0 0.0
  %v558 = vand.u32 %v46, 4294901760
  %559 = vmatmul.mubr.f32.gmra.mrb[0].mxu0 %v558
  %v560 = vpop.f32.mrb[0].mxu0
  %v561 = vadd.f32 %v483, %v560
  %v562 = vpop.f32.mrb[0].mxu0
  %v563 = vadd.f32 %v485, %v562
  %564 = vdwg.mxu0
  %vm565 = vcmask 130048
  %v567 = vsel %vm565, %v32, 0
  %v569 = vand.u32 %v35, 4294901760
  %570 = vmatprep.subr.mxu0 %v569
  %v571 = vand.u32 %v34, 4294901760
  %572 = vmatpush1.msra.mxu0 %v571
  %v573 = vand.u32 %v37, 4294901760
  %574 = vmatprep.subr.mxu0 %v573
  %v575 = vand.u32 %v36, 4294901760
  %576 = vmatpush1.msra.mxu0 %v575
  %577 = vmatprep.subr.mxu0 0.0
  %578 = vmatpush1.msra.mxu0 0.0
  %579 = vmatprep.subr.mxu0 0.0
  %580 = vmatpush1.msra.mxu0 0.0
  %581 = vmatprep.subr.mxu0 0.0
  %582 = vmatpush1.msra.mxu0 0.0
  %583 = vmatprep.subr.mxu0 0.0
  %584 = vmatpush1.msra.mxu0 0.0
  %585 = vmatprep.subr.mxu0 0.0
  %586 = vmatpush1.msra.mxu0 0.0
  %587 = vmatprep.subr.mxu0 0.0
  %588 = vmatpush1.msra.mxu0 0.0
  %589 = vmatprep.subr.mxu0 0.0
  %590 = vmatpush1.msra.mxu0 0.0
  %591 = vmatprep.subr.mxu0 0.0
  %592 = vmatpush1.msra.mxu0 0.0
  %593 = vmatprep.subr.mxu0 0.0
  %594 = vmatpush1.msra.mxu0 0.0
  %595 = vmatprep.subr.mxu0 0.0
  %596 = vmatpush1.msra.mxu0 0.0
  %597 = vmatprep.subr.mxu0 0.0
  %598 = vmatpush1.msra.mxu0 0.0
  %599 = vmatprep.subr.mxu0 0.0
  %600 = vmatpush1.msra.mxu0 0.0
  %601 = vmatprep.subr.mxu0 0.0
  %602 = vmatpush1.msra.mxu0 0.0
  %603 = vmatprep.subr.mxu0 0.0
  %604 = vmatpush1.msra.mxu0 0.0
  %605 = vmatprep.subr.mxu0 0.0
  %606 = vmatpush1.msra.mxu0 0.0
  %607 = vmatprep.subr.mxu0 0.0
  %608 = vmatpush1.msra.mxu0 0.0
  %609 = vmatprep.subr.mxu0 0.0
  %610 = vmatpush1.msra.mxu0 0.0
  %611 = vmatprep.subr.mxu0 0.0
  %612 = vmatpush1.msra.mxu0 0.0
  %613 = vmatprep.subr.mxu0 0.0
  %614 = vmatpush1.msra.mxu0 0.0
  %615 = vmatprep.subr.mxu0 0.0
  %616 = vmatpush1.msra.mxu0 0.0
  %617 = vmatprep.subr.mxu0 0.0
  %618 = vmatpush1.msra.mxu0 0.0
  %619 = vmatprep.subr.mxu0 0.0
  %620 = vmatpush1.msra.mxu0 0.0
  %621 = vmatprep.subr.mxu0 0.0
  %622 = vmatpush1.msra.mxu0 0.0
  %623 = vmatprep.subr.mxu0 0.0
  %624 = vmatpush1.msra.mxu0 0.0
  %625 = vmatprep.subr.mxu0 0.0
  %626 = vmatpush1.msra.mxu0 0.0
  %627 = vmatprep.subr.mxu0 0.0
  %628 = vmatpush1.msra.mxu0 0.0
  %629 = vmatprep.subr.mxu0 0.0
  %630 = vmatpush1.msra.mxu0 0.0
  %631 = vmatprep.subr.mxu0 0.0
  %632 = vmatpush1.msra.mxu0 0.0
  %633 = vmatprep.subr.mxu0 0.0
  %634 = vmatpush1.msra.mxu0 0.0
  %635 = vmatprep.subr.mxu0 0.0
  %636 = vmatpush1.msra.mxu0 0.0
  %637 = vmatprep.mubr.f32.mxu0 0.0
  %v638 = vand.u32 %v567, 4294901760
  %v639 = vsub.f32 %v567, %v638
  %v640 = vand.u32 %v639, 4294901760
  %v641 = vsub.f32 %v639, %v640
  %v642 = vand.u32 %v641, 4294901760
  %643 = vmatmul.mubr.f32.gmra.mrb[0].mxu0 %v642
  %v644 = vpop.f32.mrb[0].mxu0
  %v645 = vadd.f32 %v561, %v644
  %v646 = vpop.f32.mrb[0].mxu0
  %v647 = vadd.f32 %v563, %v646
  %648 = vdwg.mxu0
  %v649 = vand.u32 %v35, 4294901760
  %v650 = vsub.f32 %v35, %v649
  %v651 = vand.u32 %v650, 4294901760
  %v652 = vsub.f32 %v650, %v651
  %v653 = vand.u32 %v652, 4294901760
  %654 = vmatprep.subr.mxu0 %v653
  %v655 = vand.u32 %v34, 4294901760
  %v656 = vsub.f32 %v34, %v655
  %v657 = vand.u32 %v656, 4294901760
  %v658 = vsub.f32 %v656, %v657
  %v659 = vand.u32 %v658, 4294901760
  %660 = vmatpush1.msra.mxu0 %v659
  %v661 = vand.u32 %v37, 4294901760
  %v662 = vsub.f32 %v37, %v661
  %v663 = vand.u32 %v662, 4294901760
  %v664 = vsub.f32 %v662, %v663
  %v665 = vand.u32 %v664, 4294901760
  %666 = vmatprep.subr.mxu0 %v665
  %v667 = vand.u32 %v36, 4294901760
  %v668 = vsub.f32 %v36, %v667
  %v669 = vand.u32 %v668, 4294901760
  %v670 = vsub.f32 %v668, %v669
  %v671 = vand.u32 %v670, 4294901760
  %672 = vmatpush1.msra.mxu0 %v671
  %673 = vmatprep.subr.mxu0 0.0
  %674 = vmatpush1.msra.mxu0 0.0
  %675 = vmatprep.subr.mxu0 0.0
  %676 = vmatpush1.msra.mxu0 0.0
  %677 = vmatprep.subr.mxu0 0.0
  %678 = vmatpush1.msra.mxu0 0.0
  %679 = vmatprep.subr.mxu0 0.0
  %680 = vmatpush1.msra.mxu0 0.0
  %681 = vmatprep.subr.mxu0 0.0
  %682 = vmatpush1.msra.mxu0 0.0
  %683 = vmatprep.subr.mxu0 0.0
  %684 = vmatpush1.msra.mxu0 0.0
  %685 = vmatprep.subr.mxu0 0.0
  %686 = vmatpush1.msra.mxu0 0.0
  %687 = vmatprep.subr.mxu0 0.0
  %688 = vmatpush1.msra.mxu0 0.0
  %689 = vmatprep.subr.mxu0 0.0
  %690 = vmatpush1.msra.mxu0 0.0
  %691 = vmatprep.subr.mxu0 0.0
  %692 = vmatpush1.msra.mxu0 0.0
  %693 = vmatprep.subr.mxu0 0.0
  %694 = vmatpush1.msra.mxu0 0.0
  %695 = vmatprep.subr.mxu0 0.0
  %696 = vmatpush1.msra.mxu0 0.0
  %697 = vmatprep.subr.mxu0 0.0
  %698 = vmatpush1.msra.mxu0 0.0
  %699 = vmatprep.subr.mxu0 0.0
  %700 = vmatpush1.msra.mxu0 0.0
  %701 = vmatprep.subr.mxu0 0.0
  %702 = vmatpush1.msra.mxu0 0.0
  %703 = vmatprep.subr.mxu0 0.0
  %704 = vmatpush1.msra.mxu0 0.0
  %705 = vmatprep.subr.mxu0 0.0
  %706 = vmatpush1.msra.mxu0 0.0
  %707 = vmatprep.subr.mxu0 0.0
  %708 = vmatpush1.msra.mxu0 0.0
  %709 = vmatprep.subr.mxu0 0.0
  %710 = vmatpush1.msra.mxu0 0.0
  %711 = vmatprep.subr.mxu0 0.0
  %712 = vmatpush1.msra.mxu0 0.0
  %713 = vmatprep.subr.mxu0 0.0
  %714 = vmatpush1.msra.mxu0 0.0
  %715 = vmatprep.subr.mxu0 0.0
  %716 = vmatpush1.msra.mxu0 0.0
  %717 = vmatprep.subr.mxu0 0.0
  %718 = vmatpush1.msra.mxu0 0.0
  %719 = vmatprep.subr.mxu0 0.0
  %720 = vmatpush1.msra.mxu0 0.0
  %721 = vmatprep.subr.mxu0 0.0
  %722 = vmatpush1.msra.mxu0 0.0
  %723 = vmatprep.subr.mxu0 0.0
  %724 = vmatpush1.msra.mxu0 0.0
  %725 = vmatprep.subr.mxu0 0.0
  %726 = vmatpush1.msra.mxu0 0.0
  %727 = vmatprep.subr.mxu0 0.0
  %728 = vmatpush1.msra.mxu0 0.0
  %729 = vmatprep.subr.mxu0 0.0
  %730 = vmatpush1.msra.mxu0 0.0
  %731 = vmatprep.subr.mxu0 0.0
  %732 = vmatpush1.msra.mxu0 0.0
  %733 = vmatprep.mubr.f32.mxu0 0.0
  %v734 = vand.u32 %v567, 4294901760
  %735 = vmatmul.mubr.f32.gmra.mrb[0].mxu0 %v734
  %v736 = vpop.f32.mrb[0].mxu0
  %v737 = vadd.f32 %v645, %v736
  %v738 = vpop.f32.mrb[0].mxu0
  %v739 = vadd.f32 %v647, %v738
  %740 = vdwg.mxu0
  %v741 = vand.u32 %v35, 4294901760
  %v742 = vsub.f32 %v35, %v741
  %743 = vmatprep.subr.mxu0 %v742
  %v744 = vand.u32 %v34, 4294901760
  %v745 = vsub.f32 %v34, %v744
  %746 = vmatpush1.msra.mxu0 %v745
  %v747 = vand.u32 %v37, 4294901760
  %v748 = vsub.f32 %v37, %v747
  %749 = vmatprep.subr.mxu0 %v748
  %v750 = vand.u32 %v36, 4294901760
  %v751 = vsub.f32 %v36, %v750
  %752 = vmatpush1.msra.mxu0 %v751
  %753 = vmatprep.subr.mxu0 0.0
  %754 = vmatpush1.msra.mxu0 0.0
  %755 = vmatprep.subr.mxu0 0.0
  %756 = vmatpush1.msra.mxu0 0.0
  %757 = vmatprep.subr.mxu0 0.0
  %758 = vmatpush1.msra.mxu0 0.0
  %759 = vmatprep.subr.mxu0 0.0
  %760 = vmatpush1.msra.mxu0 0.0
  %761 = vmatprep.subr.mxu0 0.0
  %762 = vmatpush1.msra.mxu0 0.0
  %763 = vmatprep.subr.mxu0 0.0
  %764 = vmatpush1.msra.mxu0 0.0
  %765 = vmatprep.subr.mxu0 0.0
  %766 = vmatpush1.msra.mxu0 0.0
  %767 = vmatprep.subr.mxu0 0.0
  %768 = vmatpush1.msra.mxu0 0.0
  %769 = vmatprep.subr.mxu0 0.0
  %770 = vmatpush1.msra.mxu0 0.0
  %771 = vmatprep.subr.mxu0 0.0
  %772 = vmatpush1.msra.mxu0 0.0
  %773 = vmatprep.subr.mxu0 0.0
  %774 = vmatpush1.msra.mxu0 0.0
  %775 = vmatprep.subr.mxu0 0.0
  %776 = vmatpush1.msra.mxu0 0.0
  %777 = vmatprep.subr.mxu0 0.0
  %778 = vmatpush1.msra.mxu0 0.0
  %779 = vmatprep.subr.mxu0 0.0
  %780 = vmatpush1.msra.mxu0 0.0
  %781 = vmatprep.subr.mxu0 0.0
  %782 = vmatpush1.msra.mxu0 0.0
  %783 = vmatprep.subr.mxu0 0.0
  %784 = vmatpush1.msra.mxu0 0.0
  %785 = vmatprep.subr.mxu0 0.0
  %786 = vmatpush1.msra.mxu0 0.0
  %787 = vmatprep.subr.mxu0 0.0
  %788 = vmatpush1.msra.mxu0 0.0
  %789 = vmatprep.subr.mxu0 0.0
  %790 = vmatpush1.msra.mxu0 0.0
  %791 = vmatprep.subr.mxu0 0.0
  %792 = vmatpush1.msra.mxu0 0.0
  %793 = vmatprep.subr.mxu0 0.0
  %794 = vmatpush1.msra.mxu0 0.0
  %795 = vmatprep.subr.mxu0 0.0
  %796 = vmatpush1.msra.mxu0 0.0
  %797 = vmatprep.subr.mxu0 0.0
  %798 = vmatpush1.msra.mxu0 0.0
  %799 = vmatprep.subr.mxu0 0.0
  %800 = vmatpush1.msra.mxu0 0.0
  %801 = vmatprep.subr.mxu0 0.0
  %802 = vmatpush1.msra.mxu0 0.0
  %803 = vmatprep.subr.mxu0 0.0
  %804 = vmatpush1.msra.mxu0 0.0
  %805 = vmatprep.subr.mxu0 0.0
  %806 = vmatpush1.msra.mxu0 0.0
  %807 = vmatprep.subr.mxu0 0.0
  %808 = vmatpush1.msra.mxu0 0.0
  %809 = vmatprep.subr.mxu0 0.0
  %810 = vmatpush1.msra.mxu0 0.0
  %811 = vmatprep.subr.mxu0 0.0
  %812 = vmatpush1.msra.mxu0 0.0
  %813 = vmatprep.mubr.f32.mxu0 0.0
  %v814 = vand.u32 %v567, 4294901760
  %v815 = vsub.f32 %v567, %v814
  %816 = vmatmul.mubr.f32.gmra.mrb[0].mxu0 %v815
  %v817 = vpop.f32.mrb[0].mxu0
  %v818 = vadd.f32 %v737, %v817
  %v819 = vpop.f32.mrb[0].mxu0
  %v820 = vadd.f32 %v739, %v819
  %821 = vdwg.mxu0
  %v822 = vand.u32 %v35, 4294901760
  %823 = vmatprep.subr.mxu0 %v822
  %v824 = vand.u32 %v34, 4294901760
  %825 = vmatpush1.msra.mxu0 %v824
  %v826 = vand.u32 %v37, 4294901760
  %827 = vmatprep.subr.mxu0 %v826
  %v828 = vand.u32 %v36, 4294901760
  %829 = vmatpush1.msra.mxu0 %v828
  %830 = vmatprep.subr.mxu0 0.0
  %831 = vmatpush1.msra.mxu0 0.0
  %832 = vmatprep.subr.mxu0 0.0
  %833 = vmatpush1.msra.mxu0 0.0
  %834 = vmatprep.subr.mxu0 0.0
  %835 = vmatpush1.msra.mxu0 0.0
  %836 = vmatprep.subr.mxu0 0.0
  %837 = vmatpush1.msra.mxu0 0.0
  %838 = vmatprep.subr.mxu0 0.0
  %839 = vmatpush1.msra.mxu0 0.0
  %840 = vmatprep.subr.mxu0 0.0
  %841 = vmatpush1.msra.mxu0 0.0
  %842 = vmatprep.subr.mxu0 0.0
  %843 = vmatpush1.msra.mxu0 0.0
  %844 = vmatprep.subr.mxu0 0.0
  %845 = vmatpush1.msra.mxu0 0.0
  %846 = vmatprep.subr.mxu0 0.0
  %847 = vmatpush1.msra.mxu0 0.0
  %848 = vmatprep.subr.mxu0 0.0
  %849 = vmatpush1.msra.mxu0 0.0
  %850 = vmatprep.subr.mxu0 0.0
  %851 = vmatpush1.msra.mxu0 0.0
  %852 = vmatprep.subr.mxu0 0.0
  %853 = vmatpush1.msra.mxu0 0.0
  %854 = vmatprep.subr.mxu0 0.0
  %855 = vmatpush1.msra.mxu0 0.0
  %856 = vmatprep.subr.mxu0 0.0
  %857 = vmatpush1.msra.mxu0 0.0
  %858 = vmatprep.subr.mxu0 0.0
  %859 = vmatpush1.msra.mxu0 0.0
  %860 = vmatprep.subr.mxu0 0.0
  %861 = vmatpush1.msra.mxu0 0.0
  %862 = vmatprep.subr.mxu0 0.0
  %863 = vmatpush1.msra.mxu0 0.0
  %864 = vmatprep.subr.mxu0 0.0
  %865 = vmatpush1.msra.mxu0 0.0
  %866 = vmatprep.subr.mxu0 0.0
  %867 = vmatpush1.msra.mxu0 0.0
  %868 = vmatprep.subr.mxu0 0.0
  %869 = vmatpush1.msra.mxu0 0.0
  %870 = vmatprep.subr.mxu0 0.0
  %871 = vmatpush1.msra.mxu0 0.0
  %872 = vmatprep.subr.mxu0 0.0
  %873 = vmatpush1.msra.mxu0 0.0
  %874 = vmatprep.subr.mxu0 0.0
  %875 = vmatpush1.msra.mxu0 0.0
  %876 = vmatprep.subr.mxu0 0.0
  %877 = vmatpush1.msra.mxu0 0.0
  %878 = vmatprep.subr.mxu0 0.0
  %879 = vmatpush1.msra.mxu0 0.0
  %880 = vmatprep.subr.mxu0 0.0
  %881 = vmatpush1.msra.mxu0 0.0
  %882 = vmatprep.subr.mxu0 0.0
  %883 = vmatpush1.msra.mxu0 0.0
  %884 = vmatprep.subr.mxu0 0.0
  %885 = vmatpush1.msra.mxu0 0.0
  %886 = vmatprep.subr.mxu0 0.0
  %887 = vmatpush1.msra.mxu0 0.0
  %888 = vmatprep.subr.mxu0 0.0
  %889 = vmatpush1.msra.mxu0 0.0
  %890 = vmatprep.mubr.f32.mxu0 0.0
  %v891 = vand.u32 %v567, 4294901760
  %v892 = vsub.f32 %v567, %v891
  %v893 = vand.u32 %v892, 4294901760
  %894 = vmatmul.mubr.f32.gmra.mrb[0].mxu0 %v893
  %v895 = vpop.f32.mrb[0].mxu0
  %v896 = vadd.f32 %v818, %v895
  %v897 = vpop.f32.mrb[0].mxu0
  %v898 = vadd.f32 %v820, %v897
  %899 = vdwg.mxu0
  %v900 = vand.u32 %v35, 4294901760
  %v901 = vsub.f32 %v35, %v900
  %v902 = vand.u32 %v901, 4294901760
  %903 = vmatprep.subr.mxu0 %v902
  %v904 = vand.u32 %v34, 4294901760
  %v905 = vsub.f32 %v34, %v904
  %v906 = vand.u32 %v905, 4294901760
  %907 = vmatpush1.msra.mxu0 %v906
  %v908 = vand.u32 %v37, 4294901760
  %v909 = vsub.f32 %v37, %v908
  %v910 = vand.u32 %v909, 4294901760
  %911 = vmatprep.subr.mxu0 %v910
  %v912 = vand.u32 %v36, 4294901760
  %v913 = vsub.f32 %v36, %v912
  %v914 = vand.u32 %v913, 4294901760
  %915 = vmatpush1.msra.mxu0 %v914
  %916 = vmatprep.subr.mxu0 0.0
  %917 = vmatpush1.msra.mxu0 0.0
  %918 = vmatprep.subr.mxu0 0.0
  %919 = vmatpush1.msra.mxu0 0.0
  %920 = vmatprep.subr.mxu0 0.0
  %921 = vmatpush1.msra.mxu0 0.0
  %922 = vmatprep.subr.mxu0 0.0
  %923 = vmatpush1.msra.mxu0 0.0
  %924 = vmatprep.subr.mxu0 0.0
  %925 = vmatpush1.msra.mxu0 0.0
  %926 = vmatprep.subr.mxu0 0.0
  %927 = vmatpush1.msra.mxu0 0.0
  %928 = vmatprep.subr.mxu0 0.0
  %929 = vmatpush1.msra.mxu0 0.0
  %930 = vmatprep.subr.mxu0 0.0
  %931 = vmatpush1.msra.mxu0 0.0
  %932 = vmatprep.subr.mxu0 0.0
  %933 = vmatpush1.msra.mxu0 0.0
  %934 = vmatprep.subr.mxu0 0.0
  %935 = vmatpush1.msra.mxu0 0.0
  %936 = vmatprep.subr.mxu0 0.0
  %937 = vmatpush1.msra.mxu0 0.0
  %938 = vmatprep.subr.mxu0 0.0
  %939 = vmatpush1.msra.mxu0 0.0
  %940 = vmatprep.subr.mxu0 0.0
  %941 = vmatpush1.msra.mxu0 0.0
  %942 = vmatprep.subr.mxu0 0.0
  %943 = vmatpush1.msra.mxu0 0.0
  %944 = vmatprep.subr.mxu0 0.0
  %945 = vmatpush1.msra.mxu0 0.0
  %946 = vmatprep.subr.mxu0 0.0
  %947 = vmatpush1.msra.mxu0 0.0
  %948 = vmatprep.subr.mxu0 0.0
  %949 = vmatpush1.msra.mxu0 0.0
  %950 = vmatprep.subr.mxu0 0.0
  %951 = vmatpush1.msra.mxu0 0.0
  %952 = vmatprep.subr.mxu0 0.0
  %953 = vmatpush1.msra.mxu0 0.0
  %954 = vmatprep.subr.mxu0 0.0
  %955 = vmatpush1.msra.mxu0 0.0
  %956 = vmatprep.subr.mxu0 0.0
  %957 = vmatpush1.msra.mxu0 0.0
  %958 = vmatprep.subr.mxu0 0.0
  %959 = vmatpush1.msra.mxu0 0.0
  %960 = vmatprep.subr.mxu0 0.0
  %961 = vmatpush1.msra.mxu0 0.0
  %962 = vmatprep.subr.mxu0 0.0
  %963 = vmatpush1.msra.mxu0 0.0
  %964 = vmatprep.subr.mxu0 0.0
  %965 = vmatpush1.msra.mxu0 0.0
  %966 = vmatprep.subr.mxu0 0.0
  %967 = vmatpush1.msra.mxu0 0.0
  %968 = vmatprep.subr.mxu0 0.0
  %969 = vmatpush1.msra.mxu0 0.0
  %970 = vmatprep.subr.mxu0 0.0
  %971 = vmatpush1.msra.mxu0 0.0
  %972 = vmatprep.subr.mxu0 0.0
  %973 = vmatpush1.msra.mxu0 0.0
  %974 = vmatprep.subr.mxu0 0.0
  %975 = vmatpush1.msra.mxu0 0.0
  %976 = vmatprep.mubr.f32.mxu0 0.0
  %v977 = vand.u32 %v567, 4294901760
  %978 = vmatmul.mubr.f32.gmra.mrb[0].mxu0 %v977
  %v979 = vpop.f32.mrb[0].mxu0
  %v980 = vadd.f32 %v896, %v979
  %v981 = vpop.f32.mrb[0].mxu0
  %v982 = vadd.f32 %v898, %v981
  %983 = vdwg.mxu0
  %v984 = vand.u32 %v35, 4294901760
  %985 = vmatprep.subr.mxu0 %v984
  %v986 = vand.u32 %v34, 4294901760
  %987 = vmatpush1.msra.mxu0 %v986
  %v988 = vand.u32 %v37, 4294901760
  %989 = vmatprep.subr.mxu0 %v988
  %v990 = vand.u32 %v36, 4294901760
  %991 = vmatpush1.msra.mxu0 %v990
  %992 = vmatprep.subr.mxu0 0.0
  %993 = vmatpush1.msra.mxu0 0.0
  %994 = vmatprep.subr.mxu0 0.0
  %995 = vmatpush1.msra.mxu0 0.0
  %996 = vmatprep.subr.mxu0 0.0
  %997 = vmatpush1.msra.mxu0 0.0
  %998 = vmatprep.subr.mxu0 0.0
  %999 = vmatpush1.msra.mxu0 0.0
  %1000 = vmatprep.subr.mxu0 0.0
  %1001 = vmatpush1.msra.mxu0 0.0
  %1002 = vmatprep.subr.mxu0 0.0
  %1003 = vmatpush1.msra.mxu0 0.0
  %1004 = vmatprep.subr.mxu0 0.0
  %1005 = vmatpush1.msra.mxu0 0.0
  %1006 = vmatprep.subr.mxu0 0.0
  %1007 = vmatpush1.msra.mxu0 0.0
  %1008 = vmatprep.subr.mxu0 0.0
  %1009 = vmatpush1.msra.mxu0 0.0
  %1010 = vmatprep.subr.mxu0 0.0
  %1011 = vmatpush1.msra.mxu0 0.0
  %1012 = vmatprep.subr.mxu0 0.0
  %1013 = vmatpush1.msra.mxu0 0.0
  %1014 = vmatprep.subr.mxu0 0.0
  %1015 = vmatpush1.msra.mxu0 0.0
  %1016 = vmatprep.subr.mxu0 0.0
  %1017 = vmatpush1.msra.mxu0 0.0
  %1018 = vmatprep.subr.mxu0 0.0
  %1019 = vmatpush1.msra.mxu0 0.0
  %1020 = vmatprep.subr.mxu0 0.0
  %1021 = vmatpush1.msra.mxu0 0.0
  %1022 = vmatprep.subr.mxu0 0.0
  %1023 = vmatpush1.msra.mxu0 0.0
  %1024 = vmatprep.subr.mxu0 0.0
  %1025 = vmatpush1.msra.mxu0 0.0
  %1026 = vmatprep.subr.mxu0 0.0
  %1027 = vmatpush1.msra.mxu0 0.0
  %1028 = vmatprep.subr.mxu0 0.0
  %1029 = vmatpush1.msra.mxu0 0.0
  %1030 = vmatprep.subr.mxu0 0.0
  %1031 = vmatpush1.msra.mxu0 0.0
  %1032 = vmatprep.subr.mxu0 0.0
  %1033 = vmatpush1.msra.mxu0 0.0
  %1034 = vmatprep.subr.mxu0 0.0
  %1035 = vmatpush1.msra.mxu0 0.0
  %1036 = vmatprep.subr.mxu0 0.0
  %1037 = vmatpush1.msra.mxu0 0.0
  %1038 = vmatprep.subr.mxu0 0.0
  %1039 = vmatpush1.msra.mxu0 0.0
  %1040 = vmatprep.subr.mxu0 0.0
  %1041 = vmatpush1.msra.mxu0 0.0
  %1042 = vmatprep.subr.mxu0 0.0
  %1043 = vmatpush1.msra.mxu0 0.0
  %1044 = vmatprep.subr.mxu0 0.0
  %1045 = vmatpush1.msra.mxu0 0.0
  %1046 = vmatprep.subr.mxu0 0.0
  %1047 = vmatpush1.msra.mxu0 0.0
  %1048 = vmatprep.subr.mxu0 0.0
  %1049 = vmatpush1.msra.mxu0 0.0
  %1050 = vmatprep.subr.mxu0 0.0
  %1051 = vmatpush1.msra.mxu0 0.0
  %1052 = vmatprep.mubr.f32.mxu0 0.0
  %v1053 = vand.u32 %v567, 4294901760
  %1054 = vmatmul.mubr.f32.gmra.mrb[0].mxu0 %v1053
  %v1055 = vpop.f32.mrb[0].mxu0
  %v1056 = vadd.f32 %v980, %v1055
  %v1057 = vpop.f32.mrb[0].mxu0
  %v1058 = vadd.f32 %v982, %v1057
  %1059 = vdwg.mxu0
  %v1060 = vld [vmem:[%s6] sm:$0x3]
  %v1062 = vlaneseq
  %v1063 = vshrl.u32 %v1062, 7
  %v1064 = vsub.s32 0, %v1063
  %v1065 = vrot.slane %v1060, %v1064
  %v1066 = vlaneseq
  %v1067 = vshrl.u32 %v1066, 7
  %v1068 = vsub.s32 1, %v1067
  %v1069 = vrot.slane %v1060, %v1068
  %v1072 = vadd.f32 %v1056, %v1065
  %v1073 = vadd.f32 %v1058, %v1069
  %v1074 = vmax.f32 %v1072, 0.0
  %v1075 = vmax.f32 %v1073, 0.0
  %v1076 = vld [vmem:[%s4] sm:$0xff]
  %v1077 = vld [vmem:[%s4 + $0x8] sm:$0xff]
  %v1078 = vld [vmem:[%s4 + $0x10] sm:$0xff]
  %v1079 = vld [vmem:[%s4 + $0x18] sm:$0xff]
  %v1080 = vld [vmem:[%s4 + $0x20] sm:$0xff]
  %v1081 = vld [vmem:[%s4 + $0x28] sm:$0xff]
  %v1082 = vld [vmem:[%s4 + $0x30] sm:$0xff]
  %v1083 = vld [vmem:[%s4 + $0x38] sm:$0xff]
  %v1084 = vld [vmem:[%s4 + $0x40] sm:$0xff]
  %v1085 = vld [vmem:[%s4 + $0x48] sm:$0xff]
  %v1086 = vld [vmem:[%s4 + $0x50] sm:$0xff]
  %v1087 = vld [vmem:[%s4 + $0x58] sm:$0xff]
  %v1088 = vld [vmem:[%s4 + $0x60] sm:$0xff]
  %v1089 = vld [vmem:[%s4 + $0x68] sm:$0xff]
  %v1090 = vld [vmem:[%s4 + $0x70] sm:$0xff]
  %v1091 = vld [vmem:[%s4 + $0x78] sm:$0xff]
  %v1092 = vld [vmem:[%s4 + $0x80] sm:$0xff]
  %v1093 = vld [vmem:[%s4 + $0x88] sm:$0xff]
  %v1094 = vld [vmem:[%s4 + $0x90] sm:$0xff]
  %v1095 = vld [vmem:[%s4 + $0x98] sm:$0xff]
  %v1096 = vld [vmem:[%s4 + $0xa0] sm:$0xff]
  %v1097 = vld [vmem:[%s4 + $0xa8] sm:$0xff]
  %v1098 = vld [vmem:[%s4 + $0xb0] sm:$0xff]
  %v1099 = vld [vmem:[%s4 + $0xb8] sm:$0xff]
  %v1100 = vld [vmem:[%s4 + $0xc0] sm:$0xff]
  %v1101 = vld [vmem:[%s4 + $0xc8] sm:$0xff]
  %v1102 = vld [vmem:[%s4 + $0xd0] sm:$0xff]
  %v1103 = vld [vmem:[%s4 + $0xd8] sm:$0xff]
  %v1104 = vld [vmem:[%s4 + $0xe0] sm:$0xff]
  %v1105 = vld [vmem:[%s4 + $0xe8] sm:$0xff]
  %v1106 = vld [vmem:[%s4 + $0xf0] sm:$0xff]
  %v1107 = vld [vmem:[%s4 + $0xf8] sm:$0xff]
  %v1108 = vld [vmem:[%s4 + $0x100] sm:$0xff]
  %v1109 = vld [vmem:[%s4 + $0x108] sm:$0xff]
  %v1110 = vld [vmem:[%s4 + $0x110] sm:$0xff]
  %v1111 = vld [vmem:[%s4 + $0x118] sm:$0xff]
  %v1112 = vld [vmem:[%s4 + $0x120] sm:$0xff]
  %v1113 = vld [vmem:[%s4 + $0x128] sm:$0xff]
  %v1114 = vld [vmem:[%s4 + $0x130] sm:$0xff]
  %v1115 = vld [vmem:[%s4 + $0x138] sm:$0xff]
  %v1116 = vld [vmem:[%s4 + $0x140] sm:$0xff]
  %v1117 = vld [vmem:[%s4 + $0x148] sm:$0xff]
  %v1118 = vld [vmem:[%s4 + $0x150] sm:$0xff]
  %v1119 = vld [vmem:[%s4 + $0x158] sm:$0xff]
  %v1120 = vld [vmem:[%s4 + $0x160] sm:$0xff]
  %v1121 = vld [vmem:[%s4 + $0x168] sm:$0xff]
  %v1122 = vld [vmem:[%s4 + $0x170] sm:$0xff]
  %v1123 = vld [vmem:[%s4 + $0x178] sm:$0xff]
  %v1124 = vld [vmem:[%s4 + $0x180] sm:$0xff]
  %v1125 = vld [vmem:[%s4 + $0x188] sm:$0xff]
  %v1126 = vld [vmem:[%s4 + $0x190] sm:$0xff]
  %v1127 = vld [vmem:[%s4 + $0x198] sm:$0xff]
  %v1128 = vld [vmem:[%s4 + $0x1a0] sm:$0xff]
  %v1129 = vld [vmem:[%s4 + $0x1a8] sm:$0xff]
  %v1130 = vld [vmem:[%s4 + $0x1b0] sm:$0xff]
  %v1131 = vld [vmem:[%s4 + $0x1b8] sm:$0xff]
  %v1132 = vld [vmem:[%s4 + $0x1c0] sm:$0xff]
  %v1133 = vld [vmem:[%s4 + $0x1c8] sm:$0xff]
  %v1134 = vld [vmem:[%s4 + $0x1d0] sm:$0xff]
  %v1135 = vld [vmem:[%s4 + $0x1d8] sm:$0xff]
  %v1136 = vld [vmem:[%s4 + $0x1e0] sm:$0xff]
  %v1137 = vld [vmem:[%s4 + $0x1e8] sm:$0xff]
  %v1138 = vld [vmem:[%s4 + $0x1f0] sm:$0xff]
  %v1139 = vld [vmem:[%s4 + $0x1f8] sm:$0xff]
  %v1140 = vld [vmem:[%s7] sm:$0x3]
  %v1142 = vlaneseq
  %v1143 = vshrl.u32 %v1142, 7
  %v1144 = vsub.s32 0, %v1143
  %v1145 = vrot.slane %v1140, %v1144
  %v1146 = vlaneseq
  %v1147 = vshrl.u32 %v1146, 7
  %v1148 = vsub.s32 1, %v1147
  %v1149 = vrot.slane %v1140, %v1148
  %v1152 = vand.u32 %v1077, 4294901760
  %1153 = vmatprep.subr.mxu0 %v1152
  %v1154 = vand.u32 %v1076, 4294901760
  %1155 = vmatpush1.msra.mxu0 %v1154
  %v1156 = vand.u32 %v1079, 4294901760
  %1157 = vmatprep.subr.mxu0 %v1156
  %v1158 = vand.u32 %v1078, 4294901760
  %1159 = vmatpush1.msra.mxu0 %v1158
  %v1160 = vand.u32 %v1081, 4294901760
  %1161 = vmatprep.subr.mxu0 %v1160
  %v1162 = vand.u32 %v1080, 4294901760
  %1163 = vmatpush1.msra.mxu0 %v1162
  %v1164 = vand.u32 %v1083, 4294901760
  %1165 = vmatprep.subr.mxu0 %v1164
  %v1166 = vand.u32 %v1082, 4294901760
  %1167 = vmatpush1.msra.mxu0 %v1166
  %v1168 = vand.u32 %v1085, 4294901760
  %1169 = vmatprep.subr.mxu0 %v1168
  %v1170 = vand.u32 %v1084, 4294901760
  %1171 = vmatpush1.msra.mxu0 %v1170
  %v1172 = vand.u32 %v1087, 4294901760
  %1173 = vmatprep.subr.mxu0 %v1172
  %v1174 = vand.u32 %v1086, 4294901760
  %1175 = vmatpush1.msra.mxu0 %v1174
  %v1176 = vand.u32 %v1089, 4294901760
  %1177 = vmatprep.subr.mxu0 %v1176
  %v1178 = vand.u32 %v1088, 4294901760
  %1179 = vmatpush1.msra.mxu0 %v1178
  %v1180 = vand.u32 %v1091, 4294901760
  %1181 = vmatprep.subr.mxu0 %v1180
  %v1182 = vand.u32 %v1090, 4294901760
  %1183 = vmatpush1.msra.mxu0 %v1182
  %v1184 = vand.u32 %v1093, 4294901760
  %1185 = vmatprep.subr.mxu0 %v1184
  %v1186 = vand.u32 %v1092, 4294901760
  %1187 = vmatpush1.msra.mxu0 %v1186
  %v1188 = vand.u32 %v1095, 4294901760
  %1189 = vmatprep.subr.mxu0 %v1188
  %v1190 = vand.u32 %v1094, 4294901760
  %1191 = vmatpush1.msra.mxu0 %v1190
  %v1192 = vand.u32 %v1097, 4294901760
  %1193 = vmatprep.subr.mxu0 %v1192
  %v1194 = vand.u32 %v1096, 4294901760
  %1195 = vmatpush1.msra.mxu0 %v1194
  %v1196 = vand.u32 %v1099, 4294901760
  %1197 = vmatprep.subr.mxu0 %v1196
  %v1198 = vand.u32 %v1098, 4294901760
  %1199 = vmatpush1.msra.mxu0 %v1198
  %v1200 = vand.u32 %v1101, 4294901760
  %1201 = vmatprep.subr.mxu0 %v1200
  %v1202 = vand.u32 %v1100, 4294901760
  %1203 = vmatpush1.msra.mxu0 %v1202
  %v1204 = vand.u32 %v1103, 4294901760
  %1205 = vmatprep.subr.mxu0 %v1204
  %v1206 = vand.u32 %v1102, 4294901760
  %1207 = vmatpush1.msra.mxu0 %v1206
  %v1208 = vand.u32 %v1105, 4294901760
  %1209 = vmatprep.subr.mxu0 %v1208
  %v1210 = vand.u32 %v1104, 4294901760
  %1211 = vmatpush1.msra.mxu0 %v1210
  %v1212 = vand.u32 %v1107, 4294901760
  %1213 = vmatprep.subr.mxu0 %v1212
  %v1214 = vand.u32 %v1106, 4294901760
  %1215 = vmatpush1.msra.mxu0 %v1214
  %v1216 = vand.u32 %v1109, 4294901760
  %1217 = vmatprep.subr.mxu0 %v1216
  %v1218 = vand.u32 %v1108, 4294901760
  %1219 = vmatpush1.msra.mxu0 %v1218
  %v1220 = vand.u32 %v1111, 4294901760
  %1221 = vmatprep.subr.mxu0 %v1220
  %v1222 = vand.u32 %v1110, 4294901760
  %1223 = vmatpush1.msra.mxu0 %v1222
  %v1224 = vand.u32 %v1113, 4294901760
  %1225 = vmatprep.subr.mxu0 %v1224
  %v1226 = vand.u32 %v1112, 4294901760
  %1227 = vmatpush1.msra.mxu0 %v1226
  %v1228 = vand.u32 %v1115, 4294901760
  %1229 = vmatprep.subr.mxu0 %v1228
  %v1230 = vand.u32 %v1114, 4294901760
  %1231 = vmatpush1.msra.mxu0 %v1230
  %v1232 = vand.u32 %v1117, 4294901760
  %1233 = vmatprep.subr.mxu0 %v1232
  %v1234 = vand.u32 %v1116, 4294901760
  %1235 = vmatpush1.msra.mxu0 %v1234
  %v1236 = vand.u32 %v1119, 4294901760
  %1237 = vmatprep.subr.mxu0 %v1236
  %v1238 = vand.u32 %v1118, 4294901760
  %1239 = vmatpush1.msra.mxu0 %v1238
  %v1240 = vand.u32 %v1121, 4294901760
  %1241 = vmatprep.subr.mxu0 %v1240
  %v1242 = vand.u32 %v1120, 4294901760
  %1243 = vmatpush1.msra.mxu0 %v1242
  %v1244 = vand.u32 %v1123, 4294901760
  %1245 = vmatprep.subr.mxu0 %v1244
  %v1246 = vand.u32 %v1122, 4294901760
  %1247 = vmatpush1.msra.mxu0 %v1246
  %v1248 = vand.u32 %v1125, 4294901760
  %1249 = vmatprep.subr.mxu0 %v1248
  %v1250 = vand.u32 %v1124, 4294901760
  %1251 = vmatpush1.msra.mxu0 %v1250
  %v1252 = vand.u32 %v1127, 4294901760
  %1253 = vmatprep.subr.mxu0 %v1252
  %v1254 = vand.u32 %v1126, 4294901760
  %1255 = vmatpush1.msra.mxu0 %v1254
  %v1256 = vand.u32 %v1129, 4294901760
  %1257 = vmatprep.subr.mxu0 %v1256
  %v1258 = vand.u32 %v1128, 4294901760
  %1259 = vmatpush1.msra.mxu0 %v1258
  %v1260 = vand.u32 %v1131, 4294901760
  %1261 = vmatprep.subr.mxu0 %v1260
  %v1262 = vand.u32 %v1130, 4294901760
  %1263 = vmatpush1.msra.mxu0 %v1262
  %v1264 = vand.u32 %v1133, 4294901760
  %1265 = vmatprep.subr.mxu0 %v1264
  %v1266 = vand.u32 %v1132, 4294901760
  %1267 = vmatpush1.msra.mxu0 %v1266
  %v1268 = vand.u32 %v1135, 4294901760
  %1269 = vmatprep.subr.mxu0 %v1268
  %v1270 = vand.u32 %v1134, 4294901760
  %1271 = vmatpush1.msra.mxu0 %v1270
  %v1272 = vand.u32 %v1137, 4294901760
  %1273 = vmatprep.subr.mxu0 %v1272
  %v1274 = vand.u32 %v1136, 4294901760
  %1275 = vmatpush1.msra.mxu0 %v1274
  %v1276 = vand.u32 %v1139, 4294901760
  %1277 = vmatprep.subr.mxu0 %v1276
  %v1278 = vand.u32 %v1138, 4294901760
  %1279 = vmatpush1.msra.mxu0 %v1278
  %v1280 = vand.u32 %v1075, 4294901760
  %v1281 = vsub.f32 %v1075, %v1280
  %v1282 = vand.u32 %v1281, 4294901760
  %v1283 = vsub.f32 %v1281, %v1282
  %v1284 = vand.u32 %v1283, 4294901760
  %1285 = vmatprep.mubr.f32.mxu0 %v1284
  %v1286 = vand.u32 %v1074, 4294901760
  %v1287 = vsub.f32 %v1074, %v1286
  %v1288 = vand.u32 %v1287, 4294901760
  %v1289 = vsub.f32 %v1287, %v1288
  %v1290 = vand.u32 %v1289, 4294901760
  %1291 = vmatmul.mubr.f32.gmra.mrb[0].mxu0 %v1290
  %v1292 = vpop.f32.mrb[0].mxu0
  %v1293 = vadd.f32 %v1145, %v1292
  %v1294 = vpop.f32.mrb[0].mxu0
  %v1295 = vadd.f32 %v1149, %v1294
  %1296 = vdwg.mxu0
  %v1297 = vand.u32 %v1077, 4294901760
  %v1298 = vsub.f32 %v1077, %v1297
  %v1299 = vand.u32 %v1298, 4294901760
  %v1300 = vsub.f32 %v1298, %v1299
  %v1301 = vand.u32 %v1300, 4294901760
  %1302 = vmatprep.subr.mxu0 %v1301
  %v1303 = vand.u32 %v1076, 4294901760
  %v1304 = vsub.f32 %v1076, %v1303
  %v1305 = vand.u32 %v1304, 4294901760
  %v1306 = vsub.f32 %v1304, %v1305
  %v1307 = vand.u32 %v1306, 4294901760
  %1308 = vmatpush1.msra.mxu0 %v1307
  %v1309 = vand.u32 %v1079, 4294901760
  %v1310 = vsub.f32 %v1079, %v1309
  %v1311 = vand.u32 %v1310, 4294901760
  %v1312 = vsub.f32 %v1310, %v1311
  %v1313 = vand.u32 %v1312, 4294901760
  %1314 = vmatprep.subr.mxu0 %v1313
  %v1315 = vand.u32 %v1078, 4294901760
  %v1316 = vsub.f32 %v1078, %v1315
  %v1317 = vand.u32 %v1316, 4294901760
  %v1318 = vsub.f32 %v1316, %v1317
  %v1319 = vand.u32 %v1318, 4294901760
  %1320 = vmatpush1.msra.mxu0 %v1319
  %v1321 = vand.u32 %v1081, 4294901760
  %v1322 = vsub.f32 %v1081, %v1321
  %v1323 = vand.u32 %v1322, 4294901760
  %v1324 = vsub.f32 %v1322, %v1323
  %v1325 = vand.u32 %v1324, 4294901760
  %1326 = vmatprep.subr.mxu0 %v1325
  %v1327 = vand.u32 %v1080, 4294901760
  %v1328 = vsub.f32 %v1080, %v1327
  %v1329 = vand.u32 %v1328, 4294901760
  %v1330 = vsub.f32 %v1328, %v1329
  %v1331 = vand.u32 %v1330, 4294901760
  %1332 = vmatpush1.msra.mxu0 %v1331
  %v1333 = vand.u32 %v1083, 4294901760
  %v1334 = vsub.f32 %v1083, %v1333
  %v1335 = vand.u32 %v1334, 4294901760
  %v1336 = vsub.f32 %v1334, %v1335
  %v1337 = vand.u32 %v1336, 4294901760
  %1338 = vmatprep.subr.mxu0 %v1337
  %v1339 = vand.u32 %v1082, 4294901760
  %v1340 = vsub.f32 %v1082, %v1339
  %v1341 = vand.u32 %v1340, 4294901760
  %v1342 = vsub.f32 %v1340, %v1341
  %v1343 = vand.u32 %v1342, 4294901760
  %1344 = vmatpush1.msra.mxu0 %v1343
  %v1345 = vand.u32 %v1085, 4294901760
  %v1346 = vsub.f32 %v1085, %v1345
  %v1347 = vand.u32 %v1346, 4294901760
  %v1348 = vsub.f32 %v1346, %v1347
  %v1349 = vand.u32 %v1348, 4294901760
  %1350 = vmatprep.subr.mxu0 %v1349
  %v1351 = vand.u32 %v1084, 4294901760
  %v1352 = vsub.f32 %v1084, %v1351
  %v1353 = vand.u32 %v1352, 4294901760
  %v1354 = vsub.f32 %v1352, %v1353
  %v1355 = vand.u32 %v1354, 4294901760
  %1356 = vmatpush1.msra.mxu0 %v1355
  %v1357 = vand.u32 %v1087, 4294901760
  %v1358 = vsub.f32 %v1087, %v1357
  %v1359 = vand.u32 %v1358, 4294901760
  %v1360 = vsub.f32 %v1358, %v1359
  %v1361 = vand.u32 %v1360, 4294901760
  %1362 = vmatprep.subr.mxu0 %v1361
  %v1363 = vand.u32 %v1086, 4294901760
  %v1364 = vsub.f32 %v1086, %v1363
  %v1365 = vand.u32 %v1364, 4294901760
  %v1366 = vsub.f32 %v1364, %v1365
  %v1367 = vand.u32 %v1366, 4294901760
  %1368 = vmatpush1.msra.mxu0 %v1367
  %v1369 = vand.u32 %v1089, 4294901760
  %v1370 = vsub.f32 %v1089, %v1369
  %v1371 = vand.u32 %v1370, 4294901760
  %v1372 = vsub.f32 %v1370, %v1371
  %v1373 = vand.u32 %v1372, 4294901760
  %1374 = vmatprep.subr.mxu0 %v1373
  %v1375 = vand.u32 %v1088, 4294901760
  %v1376 = vsub.f32 %v1088, %v1375
  %v1377 = vand.u32 %v1376, 4294901760
  %v1378 = vsub.f32 %v1376, %v1377
  %v1379 = vand.u32 %v1378, 4294901760
  %1380 = vmatpush1.msra.mxu0 %v1379
  %v1381 = vand.u32 %v1091, 4294901760
  %v1382 = vsub.f32 %v1091, %v1381
  %v1383 = vand.u32 %v1382, 4294901760
  %v1384 = vsub.f32 %v1382, %v1383
  %v1385 = vand.u32 %v1384, 4294901760
  %1386 = vmatprep.subr.mxu0 %v1385
  %v1387 = vand.u32 %v1090, 4294901760
  %v1388 = vsub.f32 %v1090, %v1387
  %v1389 = vand.u32 %v1388, 4294901760
  %v1390 = vsub.f32 %v1388, %v1389
  %v1391 = vand.u32 %v1390, 4294901760
  %1392 = vmatpush1.msra.mxu0 %v1391
  %v1393 = vand.u32 %v1093, 4294901760
  %v1394 = vsub.f32 %v1093, %v1393
  %v1395 = vand.u32 %v1394, 4294901760
  %v1396 = vsub.f32 %v1394, %v1395
  %v1397 = vand.u32 %v1396, 4294901760
  %1398 = vmatprep.subr.mxu0 %v1397
  %v1399 = vand.u32 %v1092, 4294901760
  %v1400 = vsub.f32 %v1092, %v1399
  %v1401 = vand.u32 %v1400, 4294901760
  %v1402 = vsub.f32 %v1400, %v1401
  %v1403 = vand.u32 %v1402, 4294901760
  %1404 = vmatpush1.msra.mxu0 %v1403
  %v1405 = vand.u32 %v1095, 4294901760
  %v1406 = vsub.f32 %v1095, %v1405
  %v1407 = vand.u32 %v1406, 4294901760
  %v1408 = vsub.f32 %v1406, %v1407
  %v1409 = vand.u32 %v1408, 4294901760
  %1410 = vmatprep.subr.mxu0 %v1409
  %v1411 = vand.u32 %v1094, 4294901760
  %v1412 = vsub.f32 %v1094, %v1411
  %v1413 = vand.u32 %v1412, 4294901760
  %v1414 = vsub.f32 %v1412, %v1413
  %v1415 = vand.u32 %v1414, 4294901760
  %1416 = vmatpush1.msra.mxu0 %v1415
  %v1417 = vand.u32 %v1097, 4294901760
  %v1418 = vsub.f32 %v1097, %v1417
  %v1419 = vand.u32 %v1418, 4294901760
  %v1420 = vsub.f32 %v1418, %v1419
  %v1421 = vand.u32 %v1420, 4294901760
  %1422 = vmatprep.subr.mxu0 %v1421
  %v1423 = vand.u32 %v1096, 4294901760
  %v1424 = vsub.f32 %v1096, %v1423
  %v1425 = vand.u32 %v1424, 4294901760
  %v1426 = vsub.f32 %v1424, %v1425
  %v1427 = vand.u32 %v1426, 4294901760
  %1428 = vmatpush1.msra.mxu0 %v1427
  %v1429 = vand.u32 %v1099, 4294901760
  %v1430 = vsub.f32 %v1099, %v1429
  %v1431 = vand.u32 %v1430, 4294901760
  %v1432 = vsub.f32 %v1430, %v1431
  %v1433 = vand.u32 %v1432, 4294901760
  %1434 = vmatprep.subr.mxu0 %v1433
  %v1435 = vand.u32 %v1098, 4294901760
  %v1436 = vsub.f32 %v1098, %v1435
  %v1437 = vand.u32 %v1436, 4294901760
  %v1438 = vsub.f32 %v1436, %v1437
  %v1439 = vand.u32 %v1438, 4294901760
  %1440 = vmatpush1.msra.mxu0 %v1439
  %v1441 = vand.u32 %v1101, 4294901760
  %v1442 = vsub.f32 %v1101, %v1441
  %v1443 = vand.u32 %v1442, 4294901760
  %v1444 = vsub.f32 %v1442, %v1443
  %v1445 = vand.u32 %v1444, 4294901760
  %1446 = vmatprep.subr.mxu0 %v1445
  %v1447 = vand.u32 %v1100, 4294901760
  %v1448 = vsub.f32 %v1100, %v1447
  %v1449 = vand.u32 %v1448, 4294901760
  %v1450 = vsub.f32 %v1448, %v1449
  %v1451 = vand.u32 %v1450, 4294901760
  %1452 = vmatpush1.msra.mxu0 %v1451
  %v1453 = vand.u32 %v1103, 4294901760
  %v1454 = vsub.f32 %v1103, %v1453
  %v1455 = vand.u32 %v1454, 4294901760
  %v1456 = vsub.f32 %v1454, %v1455
  %v1457 = vand.u32 %v1456, 4294901760
  %1458 = vmatprep.subr.mxu0 %v1457
  %v1459 = vand.u32 %v1102, 4294901760
  %v1460 = vsub.f32 %v1102, %v1459
  %v1461 = vand.u32 %v1460, 4294901760
  %v1462 = vsub.f32 %v1460, %v1461
  %v1463 = vand.u32 %v1462, 4294901760
  %1464 = vmatpush1.msra.mxu0 %v1463
  %v1465 = vand.u32 %v1105, 4294901760
  %v1466 = vsub.f32 %v1105, %v1465
  %v1467 = vand.u32 %v1466, 4294901760
  %v1468 = vsub.f32 %v1466, %v1467
  %v1469 = vand.u32 %v1468, 4294901760
  %1470 = vmatprep.subr.mxu0 %v1469
  %v1471 = vand.u32 %v1104, 4294901760
  %v1472 = vsub.f32 %v1104, %v1471
  %v1473 = vand.u32 %v1472, 4294901760
  %v1474 = vsub.f32 %v1472, %v1473
  %v1475 = vand.u32 %v1474, 4294901760
  %1476 = vmatpush1.msra.mxu0 %v1475
  %v1477 = vand.u32 %v1107, 4294901760
  %v1478 = vsub.f32 %v1107, %v1477
  %v1479 = vand.u32 %v1478, 4294901760
  %v1480 = vsub.f32 %v1478, %v1479
  %v1481 = vand.u32 %v1480, 4294901760
  %1482 = vmatprep.subr.mxu0 %v1481
  %v1483 = vand.u32 %v1106, 4294901760
  %v1484 = vsub.f32 %v1106, %v1483
  %v1485 = vand.u32 %v1484, 4294901760
  %v1486 = vsub.f32 %v1484, %v1485
  %v1487 = vand.u32 %v1486, 4294901760
  %1488 = vmatpush1.msra.mxu0 %v1487
  %v1489 = vand.u32 %v1109, 4294901760
  %v1490 = vsub.f32 %v1109, %v1489
  %v1491 = vand.u32 %v1490, 4294901760
  %v1492 = vsub.f32 %v1490, %v1491
  %v1493 = vand.u32 %v1492, 4294901760
  %1494 = vmatprep.subr.mxu0 %v1493
  %v1495 = vand.u32 %v1108, 4294901760
  %v1496 = vsub.f32 %v1108, %v1495
  %v1497 = vand.u32 %v1496, 4294901760
  %v1498 = vsub.f32 %v1496, %v1497
  %v1499 = vand.u32 %v1498, 4294901760
  %1500 = vmatpush1.msra.mxu0 %v1499
  %v1501 = vand.u32 %v1111, 4294901760
  %v1502 = vsub.f32 %v1111, %v1501
  %v1503 = vand.u32 %v1502, 4294901760
  %v1504 = vsub.f32 %v1502, %v1503
  %v1505 = vand.u32 %v1504, 4294901760
  %1506 = vmatprep.subr.mxu0 %v1505
  %v1507 = vand.u32 %v1110, 4294901760
  %v1508 = vsub.f32 %v1110, %v1507
  %v1509 = vand.u32 %v1508, 4294901760
  %v1510 = vsub.f32 %v1508, %v1509
  %v1511 = vand.u32 %v1510, 4294901760
  %1512 = vmatpush1.msra.mxu0 %v1511
  %v1513 = vand.u32 %v1113, 4294901760
  %v1514 = vsub.f32 %v1113, %v1513
  %v1515 = vand.u32 %v1514, 4294901760
  %v1516 = vsub.f32 %v1514, %v1515
  %v1517 = vand.u32 %v1516, 4294901760
  %1518 = vmatprep.subr.mxu0 %v1517
  %v1519 = vand.u32 %v1112, 4294901760
  %v1520 = vsub.f32 %v1112, %v1519
  %v1521 = vand.u32 %v1520, 4294901760
  %v1522 = vsub.f32 %v1520, %v1521
  %v1523 = vand.u32 %v1522, 4294901760
  %1524 = vmatpush1.msra.mxu0 %v1523
  %v1525 = vand.u32 %v1115, 4294901760
  %v1526 = vsub.f32 %v1115, %v1525
  %v1527 = vand.u32 %v1526, 4294901760
  %v1528 = vsub.f32 %v1526, %v1527
  %v1529 = vand.u32 %v1528, 4294901760
  %1530 = vmatprep.subr.mxu0 %v1529
  %v1531 = vand.u32 %v1114, 4294901760
  %v1532 = vsub.f32 %v1114, %v1531
  %v1533 = vand.u32 %v1532, 4294901760
  %v1534 = vsub.f32 %v1532, %v1533
  %v1535 = vand.u32 %v1534, 4294901760
  %1536 = vmatpush1.msra.mxu0 %v1535
  %v1537 = vand.u32 %v1117, 4294901760
  %v1538 = vsub.f32 %v1117, %v1537
  %v1539 = vand.u32 %v1538, 4294901760
  %v1540 = vsub.f32 %v1538, %v1539
  %v1541 = vand.u32 %v1540, 4294901760
  %1542 = vmatprep.subr.mxu0 %v1541
  %v1543 = vand.u32 %v1116, 4294901760
  %v1544 = vsub.f32 %v1116, %v1543
  %v1545 = vand.u32 %v1544, 4294901760
  %v1546 = vsub.f32 %v1544, %v1545
  %v1547 = vand.u32 %v1546, 4294901760
  %1548 = vmatpush1.msra.mxu0 %v1547
  %v1549 = vand.u32 %v1119, 4294901760
  %v1550 = vsub.f32 %v1119, %v1549
  %v1551 = vand.u32 %v1550, 4294901760
  %v1552 = vsub.f32 %v1550, %v1551
  %v1553 = vand.u32 %v1552, 4294901760
  %1554 = vmatprep.subr.mxu0 %v1553
  %v1555 = vand.u32 %v1118, 4294901760
  %v1556 = vsub.f32 %v1118, %v1555
  %v1557 = vand.u32 %v1556, 4294901760
  %v1558 = vsub.f32 %v1556, %v1557
  %v1559 = vand.u32 %v1558, 4294901760
  %1560 = vmatpush1.msra.mxu0 %v1559
  %v1561 = vand.u32 %v1121, 4294901760
  %v1562 = vsub.f32 %v1121, %v1561
  %v1563 = vand.u32 %v1562, 4294901760
  %v1564 = vsub.f32 %v1562, %v1563
  %v1565 = vand.u32 %v1564, 4294901760
  %1566 = vmatprep.subr.mxu0 %v1565
  %v1567 = vand.u32 %v1120, 4294901760
  %v1568 = vsub.f32 %v1120, %v1567
  %v1569 = vand.u32 %v1568, 4294901760
  %v1570 = vsub.f32 %v1568, %v1569
  %v1571 = vand.u32 %v1570, 4294901760
  %1572 = vmatpush1.msra.mxu0 %v1571
  %v1573 = vand.u32 %v1123, 4294901760
  %v1574 = vsub.f32 %v1123, %v1573
  %v1575 = vand.u32 %v1574, 4294901760
  %v1576 = vsub.f32 %v1574, %v1575
  %v1577 = vand.u32 %v1576, 4294901760
  %1578 = vmatprep.subr.mxu0 %v1577
  %v1579 = vand.u32 %v1122, 4294901760
  %v1580 = vsub.f32 %v1122, %v1579
  %v1581 = vand.u32 %v1580, 4294901760
  %v1582 = vsub.f32 %v1580, %v1581
  %v1583 = vand.u32 %v1582, 4294901760
  %1584 = vmatpush1.msra.mxu0 %v1583
  %v1585 = vand.u32 %v1125, 4294901760
  %v1586 = vsub.f32 %v1125, %v1585
  %v1587 = vand.u32 %v1586, 4294901760
  %v1588 = vsub.f32 %v1586, %v1587
  %v1589 = vand.u32 %v1588, 4294901760
  %1590 = vmatprep.subr.mxu0 %v1589
  %v1591 = vand.u32 %v1124, 4294901760
  %v1592 = vsub.f32 %v1124, %v1591
  %v1593 = vand.u32 %v1592, 4294901760
  %v1594 = vsub.f32 %v1592, %v1593
  %v1595 = vand.u32 %v1594, 4294901760
  %1596 = vmatpush1.msra.mxu0 %v1595
  %v1597 = vand.u32 %v1127, 4294901760
  %v1598 = vsub.f32 %v1127, %v1597
  %v1599 = vand.u32 %v1598, 4294901760
  %v1600 = vsub.f32 %v1598, %v1599
  %v1601 = vand.u32 %v1600, 4294901760
  %1602 = vmatprep.subr.mxu0 %v1601
  %v1603 = vand.u32 %v1126, 4294901760
  %v1604 = vsub.f32 %v1126, %v1603
  %v1605 = vand.u32 %v1604, 4294901760
  %v1606 = vsub.f32 %v1604, %v1605
  %v1607 = vand.u32 %v1606, 4294901760
  %1608 = vmatpush1.msra.mxu0 %v1607
  %v1609 = vand.u32 %v1129, 4294901760
  %v1610 = vsub.f32 %v1129, %v1609
  %v1611 = vand.u32 %v1610, 4294901760
  %v1612 = vsub.f32 %v1610, %v1611
  %v1613 = vand.u32 %v1612, 4294901760
  %1614 = vmatprep.subr.mxu0 %v1613
  %v1615 = vand.u32 %v1128, 4294901760
  %v1616 = vsub.f32 %v1128, %v1615
  %v1617 = vand.u32 %v1616, 4294901760
  %v1618 = vsub.f32 %v1616, %v1617
  %v1619 = vand.u32 %v1618, 4294901760
  %1620 = vmatpush1.msra.mxu0 %v1619
  %v1621 = vand.u32 %v1131, 4294901760
  %v1622 = vsub.f32 %v1131, %v1621
  %v1623 = vand.u32 %v1622, 4294901760
  %v1624 = vsub.f32 %v1622, %v1623
  %v1625 = vand.u32 %v1624, 4294901760
  %1626 = vmatprep.subr.mxu0 %v1625
  %v1627 = vand.u32 %v1130, 4294901760
  %v1628 = vsub.f32 %v1130, %v1627
  %v1629 = vand.u32 %v1628, 4294901760
  %v1630 = vsub.f32 %v1628, %v1629
  %v1631 = vand.u32 %v1630, 4294901760
  %1632 = vmatpush1.msra.mxu0 %v1631
  %v1633 = vand.u32 %v1133, 4294901760
  %v1634 = vsub.f32 %v1133, %v1633
  %v1635 = vand.u32 %v1634, 4294901760
  %v1636 = vsub.f32 %v1634, %v1635
  %v1637 = vand.u32 %v1636, 4294901760
  %1638 = vmatprep.subr.mxu0 %v1637
  %v1639 = vand.u32 %v1132, 4294901760
  %v1640 = vsub.f32 %v1132, %v1639
  %v1641 = vand.u32 %v1640, 4294901760
  %v1642 = vsub.f32 %v1640, %v1641
  %v1643 = vand.u32 %v1642, 4294901760
  %1644 = vmatpush1.msra.mxu0 %v1643
  %v1645 = vand.u32 %v1135, 4294901760
  %v1646 = vsub.f32 %v1135, %v1645
  %v1647 = vand.u32 %v1646, 4294901760
  %v1648 = vsub.f32 %v1646, %v1647
  %v1649 = vand.u32 %v1648, 4294901760
  %1650 = vmatprep.subr.mxu0 %v1649
  %v1651 = vand.u32 %v1134, 4294901760
  %v1652 = vsub.f32 %v1134, %v1651
  %v1653 = vand.u32 %v1652, 4294901760
  %v1654 = vsub.f32 %v1652, %v1653
  %v1655 = vand.u32 %v1654, 4294901760
  %1656 = vmatpush1.msra.mxu0 %v1655
  %v1657 = vand.u32 %v1137, 4294901760
  %v1658 = vsub.f32 %v1137, %v1657
  %v1659 = vand.u32 %v1658, 4294901760
  %v1660 = vsub.f32 %v1658, %v1659
  %v1661 = vand.u32 %v1660, 4294901760
  %1662 = vmatprep.subr.mxu0 %v1661
  %v1663 = vand.u32 %v1136, 4294901760
  %v1664 = vsub.f32 %v1136, %v1663
  %v1665 = vand.u32 %v1664, 4294901760
  %v1666 = vsub.f32 %v1664, %v1665
  %v1667 = vand.u32 %v1666, 4294901760
  %1668 = vmatpush1.msra.mxu0 %v1667
  %v1669 = vand.u32 %v1139, 4294901760
  %v1670 = vsub.f32 %v1139, %v1669
  %v1671 = vand.u32 %v1670, 4294901760
  %v1672 = vsub.f32 %v1670, %v1671
  %v1673 = vand.u32 %v1672, 4294901760
  %1674 = vmatprep.subr.mxu0 %v1673
  %v1675 = vand.u32 %v1138, 4294901760
  %v1676 = vsub.f32 %v1138, %v1675
  %v1677 = vand.u32 %v1676, 4294901760
  %v1678 = vsub.f32 %v1676, %v1677
  %v1679 = vand.u32 %v1678, 4294901760
  %1680 = vmatpush1.msra.mxu0 %v1679
  %v1681 = vand.u32 %v1075, 4294901760
  %1682 = vmatprep.mubr.f32.mxu0 %v1681
  %v1683 = vand.u32 %v1074, 4294901760
  %1684 = vmatmul.mubr.f32.gmra.mrb[0].mxu0 %v1683
  %v1685 = vpop.f32.mrb[0].mxu0
  %v1686 = vadd.f32 %v1293, %v1685
  %v1687 = vpop.f32.mrb[0].mxu0
  %v1688 = vadd.f32 %v1295, %v1687
  %1689 = vdwg.mxu0
  %v1690 = vand.u32 %v1077, 4294901760
  %v1691 = vsub.f32 %v1077, %v1690
  %1692 = vmatprep.subr.mxu0 %v1691
  %v1693 = vand.u32 %v1076, 4294901760
  %v1694 = vsub.f32 %v1076, %v1693
  %1695 = vmatpush1.msra.mxu0 %v1694
  %v1696 = vand.u32 %v1079, 4294901760
  %v1697 = vsub.f32 %v1079, %v1696
  %1698 = vmatprep.subr.mxu0 %v1697
  %v1699 = vand.u32 %v1078, 4294901760
  %v1700 = vsub.f32 %v1078, %v1699
  %1701 = vmatpush1.msra.mxu0 %v1700
  %v1702 = vand.u32 %v1081, 4294901760
  %v1703 = vsub.f32 %v1081, %v1702
  %1704 = vmatprep.subr.mxu0 %v1703
  %v1705 = vand.u32 %v1080, 4294901760
  %v1706 = vsub.f32 %v1080, %v1705
  %1707 = vmatpush1.msra.mxu0 %v1706
  %v1708 = vand.u32 %v1083, 4294901760
  %v1709 = vsub.f32 %v1083, %v1708
  %1710 = vmatprep.subr.mxu0 %v1709
  %v1711 = vand.u32 %v1082, 4294901760
  %v1712 = vsub.f32 %v1082, %v1711
  %1713 = vmatpush1.msra.mxu0 %v1712
  %v1714 = vand.u32 %v1085, 4294901760
  %v1715 = vsub.f32 %v1085, %v1714
  %1716 = vmatprep.subr.mxu0 %v1715
  %v1717 = vand.u32 %v1084, 4294901760
  %v1718 = vsub.f32 %v1084, %v1717
  %1719 = vmatpush1.msra.mxu0 %v1718
  %v1720 = vand.u32 %v1087, 4294901760
  %v1721 = vsub.f32 %v1087, %v1720
  %1722 = vmatprep.subr.mxu0 %v1721
  %v1723 = vand.u32 %v1086, 4294901760
  %v1724 = vsub.f32 %v1086, %v1723
  %1725 = vmatpush1.msra.mxu0 %v1724
  %v1726 = vand.u32 %v1089, 4294901760
  %v1727 = vsub.f32 %v1089, %v1726
  %1728 = vmatprep.subr.mxu0 %v1727
  %v1729 = vand.u32 %v1088, 4294901760
  %v1730 = vsub.f32 %v1088, %v1729
  %1731 = vmatpush1.msra.mxu0 %v1730
  %v1732 = vand.u32 %v1091, 4294901760
  %v1733 = vsub.f32 %v1091, %v1732
  %1734 = vmatprep.subr.mxu0 %v1733
  %v1735 = vand.u32 %v1090, 4294901760
  %v1736 = vsub.f32 %v1090, %v1735
  %1737 = vmatpush1.msra.mxu0 %v1736
  %v1738 = vand.u32 %v1093, 4294901760
  %v1739 = vsub.f32 %v1093, %v1738
  %1740 = vmatprep.subr.mxu0 %v1739
  %v1741 = vand.u32 %v1092, 4294901760
  %v1742 = vsub.f32 %v1092, %v1741
  %1743 = vmatpush1.msra.mxu0 %v1742
  %v1744 = vand.u32 %v1095, 4294901760
  %v1745 = vsub.f32 %v1095, %v1744
  %1746 = vmatprep.subr.mxu0 %v1745
  %v1747 = vand.u32 %v1094, 4294901760
  %v1748 = vsub.f32 %v1094, %v1747
  %1749 = vmatpush1.msra.mxu0 %v1748
  %v1750 = vand.u32 %v1097, 4294901760
  %v1751 = vsub.f32 %v1097, %v1750
  %1752 = vmatprep.subr.mxu0 %v1751
  %v1753 = vand.u32 %v1096, 4294901760
  %v1754 = vsub.f32 %v1096, %v1753
  %1755 = vmatpush1.msra.mxu0 %v1754
  %v1756 = vand.u32 %v1099, 4294901760
  %v1757 = vsub.f32 %v1099, %v1756
  %1758 = vmatprep.subr.mxu0 %v1757
  %v1759 = vand.u32 %v1098, 4294901760
  %v1760 = vsub.f32 %v1098, %v1759
  %1761 = vmatpush1.msra.mxu0 %v1760
  %v1762 = vand.u32 %v1101, 4294901760
  %v1763 = vsub.f32 %v1101, %v1762
  %1764 = vmatprep.subr.mxu0 %v1763
  %v1765 = vand.u32 %v1100, 4294901760
  %v1766 = vsub.f32 %v1100, %v1765
  %1767 = vmatpush1.msra.mxu0 %v1766
  %v1768 = vand.u32 %v1103, 4294901760
  %v1769 = vsub.f32 %v1103, %v1768
  %1770 = vmatprep.subr.mxu0 %v1769
  %v1771 = vand.u32 %v1102, 4294901760
  %v1772 = vsub.f32 %v1102, %v1771
  %1773 = vmatpush1.msra.mxu0 %v1772
  %v1774 = vand.u32 %v1105, 4294901760
  %v1775 = vsub.f32 %v1105, %v1774
  %1776 = vmatprep.subr.mxu0 %v1775
  %v1777 = vand.u32 %v1104, 4294901760
  %v1778 = vsub.f32 %v1104, %v1777
  %1779 = vmatpush1.msra.mxu0 %v1778
  %v1780 = vand.u32 %v1107, 4294901760
  %v1781 = vsub.f32 %v1107, %v1780
  %1782 = vmatprep.subr.mxu0 %v1781
  %v1783 = vand.u32 %v1106, 4294901760
  %v1784 = vsub.f32 %v1106, %v1783
  %1785 = vmatpush1.msra.mxu0 %v1784
  %v1786 = vand.u32 %v1109, 4294901760
  %v1787 = vsub.f32 %v1109, %v1786
  %1788 = vmatprep.subr.mxu0 %v1787
  %v1789 = vand.u32 %v1108, 4294901760
  %v1790 = vsub.f32 %v1108, %v1789
  %1791 = vmatpush1.msra.mxu0 %v1790
  %v1792 = vand.u32 %v1111, 4294901760
  %v1793 = vsub.f32 %v1111, %v1792
  %1794 = vmatprep.subr.mxu0 %v1793
  %v1795 = vand.u32 %v1110, 4294901760
  %v1796 = vsub.f32 %v1110, %v1795
  %1797 = vmatpush1.msra.mxu0 %v1796
  %v1798 = vand.u32 %v1113, 4294901760
  %v1799 = vsub.f32 %v1113, %v1798
  %1800 = vmatprep.subr.mxu0 %v1799
  %v1801 = vand.u32 %v1112, 4294901760
  %v1802 = vsub.f32 %v1112, %v1801
  %1803 = vmatpush1.msra.mxu0 %v1802
  %v1804 = vand.u32 %v1115, 4294901760
  %v1805 = vsub.f32 %v1115, %v1804
  %1806 = vmatprep.subr.mxu0 %v1805
  %v1807 = vand.u32 %v1114, 4294901760
  %v1808 = vsub.f32 %v1114, %v1807
  %1809 = vmatpush1.msra.mxu0 %v1808
  %v1810 = vand.u32 %v1117, 4294901760
  %v1811 = vsub.f32 %v1117, %v1810
  %1812 = vmatprep.subr.mxu0 %v1811
  %v1813 = vand.u32 %v1116, 4294901760
  %v1814 = vsub.f32 %v1116, %v1813
  %1815 = vmatpush1.msra.mxu0 %v1814
  %v1816 = vand.u32 %v1119, 4294901760
  %v1817 = vsub.f32 %v1119, %v1816
  %1818 = vmatprep.subr.mxu0 %v1817
  %v1819 = vand.u32 %v1118, 4294901760
  %v1820 = vsub.f32 %v1118, %v1819
  %1821 = vmatpush1.msra.mxu0 %v1820
  %v1822 = vand.u32 %v1121, 4294901760
  %v1823 = vsub.f32 %v1121, %v1822
  %1824 = vmatprep.subr.mxu0 %v1823
  %v1825 = vand.u32 %v1120, 4294901760
  %v1826 = vsub.f32 %v1120, %v1825
  %1827 = vmatpush1.msra.mxu0 %v1826
  %v1828 = vand.u32 %v1123, 4294901760
  %v1829 = vsub.f32 %v1123, %v1828
  %1830 = vmatprep.subr.mxu0 %v1829
  %v1831 = vand.u32 %v1122, 4294901760
  %v1832 = vsub.f32 %v1122, %v1831
  %1833 = vmatpush1.msra.mxu0 %v1832
  %v1834 = vand.u32 %v1125, 4294901760
  %v1835 = vsub.f32 %v1125, %v1834
  %1836 = vmatprep.subr.mxu0 %v1835
  %v1837 = vand.u32 %v1124, 4294901760
  %v1838 = vsub.f32 %v1124, %v1837
  %1839 = vmatpush1.msra.mxu0 %v1838
  %v1840 = vand.u32 %v1127, 4294901760
  %v1841 = vsub.f32 %v1127, %v1840
  %1842 = vmatprep.subr.mxu0 %v1841
  %v1843 = vand.u32 %v1126, 4294901760
  %v1844 = vsub.f32 %v1126, %v1843
  %1845 = vmatpush1.msra.mxu0 %v1844
  %v1846 = vand.u32 %v1129, 4294901760
  %v1847 = vsub.f32 %v1129, %v1846
  %1848 = vmatprep.subr.mxu0 %v1847
  %v1849 = vand.u32 %v1128, 4294901760
  %v1850 = vsub.f32 %v1128, %v1849
  %1851 = vmatpush1.msra.mxu0 %v1850
  %v1852 = vand.u32 %v1131, 4294901760
  %v1853 = vsub.f32 %v1131, %v1852
  %1854 = vmatprep.subr.mxu0 %v1853
  %v1855 = vand.u32 %v1130, 4294901760
  %v1856 = vsub.f32 %v1130, %v1855
  %1857 = vmatpush1.msra.mxu0 %v1856
  %v1858 = vand.u32 %v1133, 4294901760
  %v1859 = vsub.f32 %v1133, %v1858
  %1860 = vmatprep.subr.mxu0 %v1859
  %v1861 = vand.u32 %v1132, 4294901760
  %v1862 = vsub.f32 %v1132, %v1861
  %1863 = vmatpush1.msra.mxu0 %v1862
  %v1864 = vand.u32 %v1135, 4294901760
  %v1865 = vsub.f32 %v1135, %v1864
  %1866 = vmatprep.subr.mxu0 %v1865
  %v1867 = vand.u32 %v1134, 4294901760
  %v1868 = vsub.f32 %v1134, %v1867
  %1869 = vmatpush1.msra.mxu0 %v1868
  %v1870 = vand.u32 %v1137, 4294901760
  %v1871 = vsub.f32 %v1137, %v1870
  %1872 = vmatprep.subr.mxu0 %v1871
  %v1873 = vand.u32 %v1136, 4294901760
  %v1874 = vsub.f32 %v1136, %v1873
  %1875 = vmatpush1.msra.mxu0 %v1874
  %v1876 = vand.u32 %v1139, 4294901760
  %v1877 = vsub.f32 %v1139, %v1876
  %1878 = vmatprep.subr.mxu0 %v1877
  %v1879 = vand.u32 %v1138, 4294901760
  %v1880 = vsub.f32 %v1138, %v1879
  %1881 = vmatpush1.msra.mxu0 %v1880
  %v1882 = vand.u32 %v1075, 4294901760
  %v1883 = vsub.f32 %v1075, %v1882
  %1884 = vmatprep.mubr.f32.mxu0 %v1883
  %v1885 = vand.u32 %v1074, 4294901760
  %v1886 = vsub.f32 %v1074, %v1885
  %1887 = vmatmul.mubr.f32.gmra.mrb[0].mxu0 %v1886
  %v1888 = vpop.f32.mrb[0].mxu0
  %v1889 = vadd.f32 %v1686, %v1888
  %v1890 = vpop.f32.mrb[0].mxu0
  %v1891 = vadd.f32 %v1688, %v1890
  %1892 = vdwg.mxu0
  %v1893 = vand.u32 %v1077, 4294901760
  %1894 = vmatprep.subr.mxu0 %v1893
  %v1895 = vand.u32 %v1076, 4294901760
  %1896 = vmatpush1.msra.mxu0 %v1895
  %v1897 = vand.u32 %v1079, 4294901760
  %1898 = vmatprep.subr.mxu0 %v1897
  %v1899 = vand.u32 %v1078, 4294901760
  %1900 = vmatpush1.msra.mxu0 %v1899
  %v1901 = vand.u32 %v1081, 4294901760
  %1902 = vmatprep.subr.mxu0 %v1901
  %v1903 = vand.u32 %v1080, 4294901760
  %1904 = vmatpush1.msra.mxu0 %v1903
  %v1905 = vand.u32 %v1083, 4294901760
  %1906 = vmatprep.subr.mxu0 %v1905
  %v1907 = vand.u32 %v1082, 4294901760
  %1908 = vmatpush1.msra.mxu0 %v1907
  %v1909 = vand.u32 %v1085, 4294901760
  %1910 = vmatprep.subr.mxu0 %v1909
  %v1911 = vand.u32 %v1084, 4294901760
  %1912 = vmatpush1.msra.mxu0 %v1911
  %v1913 = vand.u32 %v1087, 4294901760
  %1914 = vmatprep.subr.mxu0 %v1913
  %v1915 = vand.u32 %v1086, 4294901760
  %1916 = vmatpush1.msra.mxu0 %v1915
  %v1917 = vand.u32 %v1089, 4294901760
  %1918 = vmatprep.subr.mxu0 %v1917
  %v1919 = vand.u32 %v1088, 4294901760
  %1920 = vmatpush1.msra.mxu0 %v1919
  %v1921 = vand.u32 %v1091, 4294901760
  %1922 = vmatprep.subr.mxu0 %v1921
  %v1923 = vand.u32 %v1090, 4294901760
  %1924 = vmatpush1.msra.mxu0 %v1923
  %v1925 = vand.u32 %v1093, 4294901760
  %1926 = vmatprep.subr.mxu0 %v1925
  %v1927 = vand.u32 %v1092, 4294901760
  %1928 = vmatpush1.msra.mxu0 %v1927
  %v1929 = vand.u32 %v1095, 4294901760
  %1930 = vmatprep.subr.mxu0 %v1929
  %v1931 = vand.u32 %v1094, 4294901760
  %1932 = vmatpush1.msra.mxu0 %v1931
  %v1933 = vand.u32 %v1097, 4294901760
  %1934 = vmatprep.subr.mxu0 %v1933
  %v1935 = vand.u32 %v1096, 4294901760
  %1936 = vmatpush1.msra.mxu0 %v1935
  %v1937 = vand.u32 %v1099, 4294901760
  %1938 = vmatprep.subr.mxu0 %v1937
  %v1939 = vand.u32 %v1098, 4294901760
  %1940 = vmatpush1.msra.mxu0 %v1939
  %v1941 = vand.u32 %v1101, 4294901760
  %1942 = vmatprep.subr.mxu0 %v1941
  %v1943 = vand.u32 %v1100, 4294901760
  %1944 = vmatpush1.msra.mxu0 %v1943
  %v1945 = vand.u32 %v1103, 4294901760
  %1946 = vmatprep.subr.mxu0 %v1945
  %v1947 = vand.u32 %v1102, 4294901760
  %1948 = vmatpush1.msra.mxu0 %v1947
  %v1949 = vand.u32 %v1105, 4294901760
  %1950 = vmatprep.subr.mxu0 %v1949
  %v1951 = vand.u32 %v1104, 4294901760
  %1952 = vmatpush1.msra.mxu0 %v1951
  %v1953 = vand.u32 %v1107, 4294901760
  %1954 = vmatprep.subr.mxu0 %v1953
  %v1955 = vand.u32 %v1106, 4294901760
  %1956 = vmatpush1.msra.mxu0 %v1955
  %v1957 = vand.u32 %v1109, 4294901760
  %1958 = vmatprep.subr.mxu0 %v1957
  %v1959 = vand.u32 %v1108, 4294901760
  %1960 = vmatpush1.msra.mxu0 %v1959
  %v1961 = vand.u32 %v1111, 4294901760
  %1962 = vmatprep.subr.mxu0 %v1961
  %v1963 = vand.u32 %v1110, 4294901760
  %1964 = vmatpush1.msra.mxu0 %v1963
  %v1965 = vand.u32 %v1113, 4294901760
  %1966 = vmatprep.subr.mxu0 %v1965
  %v1967 = vand.u32 %v1112, 4294901760
  %1968 = vmatpush1.msra.mxu0 %v1967
  %v1969 = vand.u32 %v1115, 4294901760
  %1970 = vmatprep.subr.mxu0 %v1969
  %v1971 = vand.u32 %v1114, 4294901760
  %1972 = vmatpush1.msra.mxu0 %v1971
  %v1973 = vand.u32 %v1117, 4294901760
  %1974 = vmatprep.subr.mxu0 %v1973
  %v1975 = vand.u32 %v1116, 4294901760
  %1976 = vmatpush1.msra.mxu0 %v1975
  %v1977 = vand.u32 %v1119, 4294901760
  %1978 = vmatprep.subr.mxu0 %v1977
  %v1979 = vand.u32 %v1118, 4294901760
  %1980 = vmatpush1.msra.mxu0 %v1979
  %v1981 = vand.u32 %v1121, 4294901760
  %1982 = vmatprep.subr.mxu0 %v1981
  %v1983 = vand.u32 %v1120, 4294901760
  %1984 = vmatpush1.msra.mxu0 %v1983
  %v1985 = vand.u32 %v1123, 4294901760
  %1986 = vmatprep.subr.mxu0 %v1985
  %v1987 = vand.u32 %v1122, 4294901760
  %1988 = vmatpush1.msra.mxu0 %v1987
  %v1989 = vand.u32 %v1125, 4294901760
  %1990 = vmatprep.subr.mxu0 %v1989
  %v1991 = vand.u32 %v1124, 4294901760
  %1992 = vmatpush1.msra.mxu0 %v1991
  %v1993 = vand.u32 %v1127, 4294901760
  %1994 = vmatprep.subr.mxu0 %v1993
  %v1995 = vand.u32 %v1126, 4294901760
  %1996 = vmatpush1.msra.mxu0 %v1995
  %v1997 = vand.u32 %v1129, 4294901760
  %1998 = vmatprep.subr.mxu0 %v1997
  %v1999 = vand.u32 %v1128, 4294901760
  %2000 = vmatpush1.msra.mxu0 %v1999
  %v2001 = vand.u32 %v1131, 4294901760
  %2002 = vmatprep.subr.mxu0 %v2001
  %v2003 = vand.u32 %v1130, 4294901760
  %2004 = vmatpush1.msra.mxu0 %v2003
  %v2005 = vand.u32 %v1133, 4294901760
  %2006 = vmatprep.subr.mxu0 %v2005
  %v2007 = vand.u32 %v1132, 4294901760
  %2008 = vmatpush1.msra.mxu0 %v2007
  %v2009 = vand.u32 %v1135, 4294901760
  %2010 = vmatprep.subr.mxu0 %v2009
  %v2011 = vand.u32 %v1134, 4294901760
  %2012 = vmatpush1.msra.mxu0 %v2011
  %v2013 = vand.u32 %v1137, 4294901760
  %2014 = vmatprep.subr.mxu0 %v2013
  %v2015 = vand.u32 %v1136, 4294901760
  %2016 = vmatpush1.msra.mxu0 %v2015
  %v2017 = vand.u32 %v1139, 4294901760
  %2018 = vmatprep.subr.mxu0 %v2017
  %v2019 = vand.u32 %v1138, 4294901760
  %2020 = vmatpush1.msra.mxu0 %v2019
  %v2021 = vand.u32 %v1075, 4294901760
  %v2022 = vsub.f32 %v1075, %v2021
  %v2023 = vand.u32 %v2022, 4294901760
  %2024 = vmatprep.mubr.f32.mxu0 %v2023
  %v2025 = vand.u32 %v1074, 4294901760
  %v2026 = vsub.f32 %v1074, %v2025
  %v2027 = vand.u32 %v2026, 4294901760
  %2028 = vmatmul.mubr.f32.gmra.mrb[0].mxu0 %v2027
  %v2029 = vpop.f32.mrb[0].mxu0
  %v2030 = vadd.f32 %v1889, %v2029
  %v2031 = vpop.f32.mrb[0].mxu0
  %v2032 = vadd.f32 %v1891, %v2031
  %2033 = vdwg.mxu0
  %v2034 = vand.u32 %v1077, 4294901760
  %v2035 = vsub.f32 %v1077, %v2034
  %v2036 = vand.u32 %v2035, 4294901760
  %2037 = vmatprep.subr.mxu0 %v2036
  %v2038 = vand.u32 %v1076, 4294901760
  %v2039 = vsub.f32 %v1076, %v2038
  %v2040 = vand.u32 %v2039, 4294901760
  %2041 = vmatpush1.msra.mxu0 %v2040
  %v2042 = vand.u32 %v1079, 4294901760
  %v2043 = vsub.f32 %v1079, %v2042
  %v2044 = vand.u32 %v2043, 4294901760
  %2045 = vmatprep.subr.mxu0 %v2044
  %v2046 = vand.u32 %v1078, 4294901760
  %v2047 = vsub.f32 %v1078, %v2046
  %v2048 = vand.u32 %v2047, 4294901760
  %2049 = vmatpush1.msra.mxu0 %v2048
  %v2050 = vand.u32 %v1081, 4294901760
  %v2051 = vsub.f32 %v1081, %v2050
  %v2052 = vand.u32 %v2051, 4294901760
  %2053 = vmatprep.subr.mxu0 %v2052
  %v2054 = vand.u32 %v1080, 4294901760
  %v2055 = vsub.f32 %v1080, %v2054
  %v2056 = vand.u32 %v2055, 4294901760
  %2057 = vmatpush1.msra.mxu0 %v2056
  %v2058 = vand.u32 %v1083, 4294901760
  %v2059 = vsub.f32 %v1083, %v2058
  %v2060 = vand.u32 %v2059, 4294901760
  %2061 = vmatprep.subr.mxu0 %v2060
  %v2062 = vand.u32 %v1082, 4294901760
  %v2063 = vsub.f32 %v1082, %v2062
  %v2064 = vand.u32 %v2063, 4294901760
  %2065 = vmatpush1.msra.mxu0 %v2064
  %v2066 = vand.u32 %v1085, 4294901760
  %v2067 = vsub.f32 %v1085, %v2066
  %v2068 = vand.u32 %v2067, 4294901760
  %2069 = vmatprep.subr.mxu0 %v2068
  %v2070 = vand.u32 %v1084, 4294901760
  %v2071 = vsub.f32 %v1084, %v2070
  %v2072 = vand.u32 %v2071, 4294901760
  %2073 = vmatpush1.msra.mxu0 %v2072
  %v2074 = vand.u32 %v1087, 4294901760
  %v2075 = vsub.f32 %v1087, %v2074
  %v2076 = vand.u32 %v2075, 4294901760
  %2077 = vmatprep.subr.mxu0 %v2076
  %v2078 = vand.u32 %v1086, 4294901760
  %v2079 = vsub.f32 %v1086, %v2078
  %v2080 = vand.u32 %v2079, 4294901760
  %2081 = vmatpush1.msra.mxu0 %v2080
  %v2082 = vand.u32 %v1089, 4294901760
  %v2083 = vsub.f32 %v1089, %v2082
  %v2084 = vand.u32 %v2083, 4294901760
  %2085 = vmatprep.subr.mxu0 %v2084
  %v2086 = vand.u32 %v1088, 4294901760
  %v2087 = vsub.f32 %v1088, %v2086
  %v2088 = vand.u32 %v2087, 4294901760
  %2089 = vmatpush1.msra.mxu0 %v2088
  %v2090 = vand.u32 %v1091, 4294901760
  %v2091 = vsub.f32 %v1091, %v2090
  %v2092 = vand.u32 %v2091, 4294901760
  %2093 = vmatprep.subr.mxu0 %v2092
  %v2094 = vand.u32 %v1090, 4294901760
  %v2095 = vsub.f32 %v1090, %v2094
  %v2096 = vand.u32 %v2095, 4294901760
  %2097 = vmatpush1.msra.mxu0 %v2096
  %v2098 = vand.u32 %v1093, 4294901760
  %v2099 = vsub.f32 %v1093, %v2098
  %v2100 = vand.u32 %v2099, 4294901760
  %2101 = vmatprep.subr.mxu0 %v2100
  %v2102 = vand.u32 %v1092, 4294901760
  %v2103 = vsub.f32 %v1092, %v2102
  %v2104 = vand.u32 %v2103, 4294901760
  %2105 = vmatpush1.msra.mxu0 %v2104
  %v2106 = vand.u32 %v1095, 4294901760
  %v2107 = vsub.f32 %v1095, %v2106
  %v2108 = vand.u32 %v2107, 4294901760
  %2109 = vmatprep.subr.mxu0 %v2108
  %v2110 = vand.u32 %v1094, 4294901760
  %v2111 = vsub.f32 %v1094, %v2110
  %v2112 = vand.u32 %v2111, 4294901760
  %2113 = vmatpush1.msra.mxu0 %v2112
  %v2114 = vand.u32 %v1097, 4294901760
  %v2115 = vsub.f32 %v1097, %v2114
  %v2116 = vand.u32 %v2115, 4294901760
  %2117 = vmatprep.subr.mxu0 %v2116
  %v2118 = vand.u32 %v1096, 4294901760
  %v2119 = vsub.f32 %v1096, %v2118
  %v2120 = vand.u32 %v2119, 4294901760
  %2121 = vmatpush1.msra.mxu0 %v2120
  %v2122 = vand.u32 %v1099, 4294901760
  %v2123 = vsub.f32 %v1099, %v2122
  %v2124 = vand.u32 %v2123, 4294901760
  %2125 = vmatprep.subr.mxu0 %v2124
  %v2126 = vand.u32 %v1098, 4294901760
  %v2127 = vsub.f32 %v1098, %v2126
  %v2128 = vand.u32 %v2127, 4294901760
  %2129 = vmatpush1.msra.mxu0 %v2128
  %v2130 = vand.u32 %v1101, 4294901760
  %v2131 = vsub.f32 %v1101, %v2130
  %v2132 = vand.u32 %v2131, 4294901760
  %2133 = vmatprep.subr.mxu0 %v2132
  %v2134 = vand.u32 %v1100, 4294901760
  %v2135 = vsub.f32 %v1100, %v2134
  %v2136 = vand.u32 %v2135, 4294901760
  %2137 = vmatpush1.msra.mxu0 %v2136
  %v2138 = vand.u32 %v1103, 4294901760
  %v2139 = vsub.f32 %v1103, %v2138
  %v2140 = vand.u32 %v2139, 4294901760
  %2141 = vmatprep.subr.mxu0 %v2140
  %v2142 = vand.u32 %v1102, 4294901760
  %v2143 = vsub.f32 %v1102, %v2142
  %v2144 = vand.u32 %v2143, 4294901760
  %2145 = vmatpush1.msra.mxu0 %v2144
  %v2146 = vand.u32 %v1105, 4294901760
  %v2147 = vsub.f32 %v1105, %v2146
  %v2148 = vand.u32 %v2147, 4294901760
  %2149 = vmatprep.subr.mxu0 %v2148
  %v2150 = vand.u32 %v1104, 4294901760
  %v2151 = vsub.f32 %v1104, %v2150
  %v2152 = vand.u32 %v2151, 4294901760
  %2153 = vmatpush1.msra.mxu0 %v2152
  %v2154 = vand.u32 %v1107, 4294901760
  %v2155 = vsub.f32 %v1107, %v2154
  %v2156 = vand.u32 %v2155, 4294901760
  %2157 = vmatprep.subr.mxu0 %v2156
  %v2158 = vand.u32 %v1106, 4294901760
  %v2159 = vsub.f32 %v1106, %v2158
  %v2160 = vand.u32 %v2159, 4294901760
  %2161 = vmatpush1.msra.mxu0 %v2160
  %v2162 = vand.u32 %v1109, 4294901760
  %v2163 = vsub.f32 %v1109, %v2162
  %v2164 = vand.u32 %v2163, 4294901760
  %2165 = vmatprep.subr.mxu0 %v2164
  %v2166 = vand.u32 %v1108, 4294901760
  %v2167 = vsub.f32 %v1108, %v2166
  %v2168 = vand.u32 %v2167, 4294901760
  %2169 = vmatpush1.msra.mxu0 %v2168
  %v2170 = vand.u32 %v1111, 4294901760
  %v2171 = vsub.f32 %v1111, %v2170
  %v2172 = vand.u32 %v2171, 4294901760
  %2173 = vmatprep.subr.mxu0 %v2172
  %v2174 = vand.u32 %v1110, 4294901760
  %v2175 = vsub.f32 %v1110, %v2174
  %v2176 = vand.u32 %v2175, 4294901760
  %2177 = vmatpush1.msra.mxu0 %v2176
  %v2178 = vand.u32 %v1113, 4294901760
  %v2179 = vsub.f32 %v1113, %v2178
  %v2180 = vand.u32 %v2179, 4294901760
  %2181 = vmatprep.subr.mxu0 %v2180
  %v2182 = vand.u32 %v1112, 4294901760
  %v2183 = vsub.f32 %v1112, %v2182
  %v2184 = vand.u32 %v2183, 4294901760
  %2185 = vmatpush1.msra.mxu0 %v2184
  %v2186 = vand.u32 %v1115, 4294901760
  %v2187 = vsub.f32 %v1115, %v2186
  %v2188 = vand.u32 %v2187, 4294901760
  %2189 = vmatprep.subr.mxu0 %v2188
  %v2190 = vand.u32 %v1114, 4294901760
  %v2191 = vsub.f32 %v1114, %v2190
  %v2192 = vand.u32 %v2191, 4294901760
  %2193 = vmatpush1.msra.mxu0 %v2192
  %v2194 = vand.u32 %v1117, 4294901760
  %v2195 = vsub.f32 %v1117, %v2194
  %v2196 = vand.u32 %v2195, 4294901760
  %2197 = vmatprep.subr.mxu0 %v2196
  %v2198 = vand.u32 %v1116, 4294901760
  %v2199 = vsub.f32 %v1116, %v2198
  %v2200 = vand.u32 %v2199, 4294901760
  %2201 = vmatpush1.msra.mxu0 %v2200
  %v2202 = vand.u32 %v1119, 4294901760
  %v2203 = vsub.f32 %v1119, %v2202
  %v2204 = vand.u32 %v2203, 4294901760
  %2205 = vmatprep.subr.mxu0 %v2204
  %v2206 = vand.u32 %v1118, 4294901760
  %v2207 = vsub.f32 %v1118, %v2206
  %v2208 = vand.u32 %v2207, 4294901760
  %2209 = vmatpush1.msra.mxu0 %v2208
  %v2210 = vand.u32 %v1121, 4294901760
  %v2211 = vsub.f32 %v1121, %v2210
  %v2212 = vand.u32 %v2211, 4294901760
  %2213 = vmatprep.subr.mxu0 %v2212
  %v2214 = vand.u32 %v1120, 4294901760
  %v2215 = vsub.f32 %v1120, %v2214
  %v2216 = vand.u32 %v2215, 4294901760
  %2217 = vmatpush1.msra.mxu0 %v2216
  %v2218 = vand.u32 %v1123, 4294901760
  %v2219 = vsub.f32 %v1123, %v2218
  %v2220 = vand.u32 %v2219, 4294901760
  %2221 = vmatprep.subr.mxu0 %v2220
  %v2222 = vand.u32 %v1122, 4294901760
  %v2223 = vsub.f32 %v1122, %v2222
  %v2224 = vand.u32 %v2223, 4294901760
  %2225 = vmatpush1.msra.mxu0 %v2224
  %v2226 = vand.u32 %v1125, 4294901760
  %v2227 = vsub.f32 %v1125, %v2226
  %v2228 = vand.u32 %v2227, 4294901760
  %2229 = vmatprep.subr.mxu0 %v2228
  %v2230 = vand.u32 %v1124, 4294901760
  %v2231 = vsub.f32 %v1124, %v2230
  %v2232 = vand.u32 %v2231, 4294901760
  %2233 = vmatpush1.msra.mxu0 %v2232
  %v2234 = vand.u32 %v1127, 4294901760
  %v2235 = vsub.f32 %v1127, %v2234
  %v2236 = vand.u32 %v2235, 4294901760
  %2237 = vmatprep.subr.mxu0 %v2236
  %v2238 = vand.u32 %v1126, 4294901760
  %v2239 = vsub.f32 %v1126, %v2238
  %v2240 = vand.u32 %v2239, 4294901760
  %2241 = vmatpush1.msra.mxu0 %v2240
  %v2242 = vand.u32 %v1129, 4294901760
  %v2243 = vsub.f32 %v1129, %v2242
  %v2244 = vand.u32 %v2243, 4294901760
  %2245 = vmatprep.subr.mxu0 %v2244
  %v2246 = vand.u32 %v1128, 4294901760
  %v2247 = vsub.f32 %v1128, %v2246
  %v2248 = vand.u32 %v2247, 4294901760
  %2249 = vmatpush1.msra.mxu0 %v2248
  %v2250 = vand.u32 %v1131, 4294901760
  %v2251 = vsub.f32 %v1131, %v2250
  %v2252 = vand.u32 %v2251, 4294901760
  %2253 = vmatprep.subr.mxu0 %v2252
  %v2254 = vand.u32 %v1130, 4294901760
  %v2255 = vsub.f32 %v1130, %v2254
  %v2256 = vand.u32 %v2255, 4294901760
  %2257 = vmatpush1.msra.mxu0 %v2256
  %v2258 = vand.u32 %v1133, 4294901760
  %v2259 = vsub.f32 %v1133, %v2258
  %v2260 = vand.u32 %v2259, 4294901760
  %2261 = vmatprep.subr.mxu0 %v2260
  %v2262 = vand.u32 %v1132, 4294901760
  %v2263 = vsub.f32 %v1132, %v2262
  %v2264 = vand.u32 %v2263, 4294901760
  %2265 = vmatpush1.msra.mxu0 %v2264
  %v2266 = vand.u32 %v1135, 4294901760
  %v2267 = vsub.f32 %v1135, %v2266
  %v2268 = vand.u32 %v2267, 4294901760
  %2269 = vmatprep.subr.mxu0 %v2268
  %v2270 = vand.u32 %v1134, 4294901760
  %v2271 = vsub.f32 %v1134, %v2270
  %v2272 = vand.u32 %v2271, 4294901760
  %2273 = vmatpush1.msra.mxu0 %v2272
  %v2274 = vand.u32 %v1137, 4294901760
  %v2275 = vsub.f32 %v1137, %v2274
  %v2276 = vand.u32 %v2275, 4294901760
  %2277 = vmatprep.subr.mxu0 %v2276
  %v2278 = vand.u32 %v1136, 4294901760
  %v2279 = vsub.f32 %v1136, %v2278
  %v2280 = vand.u32 %v2279, 4294901760
  %2281 = vmatpush1.msra.mxu0 %v2280
  %v2282 = vand.u32 %v1139, 4294901760
  %v2283 = vsub.f32 %v1139, %v2282
  %v2284 = vand.u32 %v2283, 4294901760
  %2285 = vmatprep.subr.mxu0 %v2284
  %v2286 = vand.u32 %v1138, 4294901760
  %v2287 = vsub.f32 %v1138, %v2286
  %v2288 = vand.u32 %v2287, 4294901760
  %2289 = vmatpush1.msra.mxu0 %v2288
  %v2290 = vand.u32 %v1075, 4294901760
  %2291 = vmatprep.mubr.f32.mxu0 %v2290
  %v2292 = vand.u32 %v1074, 4294901760
  %2293 = vmatmul.mubr.f32.gmra.mrb[0].mxu0 %v2292
  %v2294 = vpop.f32.mrb[0].mxu0
  %v2295 = vadd.f32 %v2030, %v2294
  %v2296 = vpop.f32.mrb[0].mxu0
  %v2297 = vadd.f32 %v2032, %v2296
  %2298 = vdwg.mxu0
  %v2299 = vand.u32 %v1077, 4294901760
  %2300 = vmatprep.subr.mxu0 %v2299
  %v2301 = vand.u32 %v1076, 4294901760
  %2302 = vmatpush1.msra.mxu0 %v2301
  %v2303 = vand.u32 %v1079, 4294901760
  %2304 = vmatprep.subr.mxu0 %v2303
  %v2305 = vand.u32 %v1078, 4294901760
  %2306 = vmatpush1.msra.mxu0 %v2305
  %v2307 = vand.u32 %v1081, 4294901760
  %2308 = vmatprep.subr.mxu0 %v2307
  %v2309 = vand.u32 %v1080, 4294901760
  %2310 = vmatpush1.msra.mxu0 %v2309
  %v2311 = vand.u32 %v1083, 4294901760
  %2312 = vmatprep.subr.mxu0 %v2311
  %v2313 = vand.u32 %v1082, 4294901760
  %2314 = vmatpush1.msra.mxu0 %v2313
  %v2315 = vand.u32 %v1085, 4294901760
  %2316 = vmatprep.subr.mxu0 %v2315
  %v2317 = vand.u32 %v1084, 4294901760
  %2318 = vmatpush1.msra.mxu0 %v2317
  %v2319 = vand.u32 %v1087, 4294901760
  %2320 = vmatprep.subr.mxu0 %v2319
  %v2321 = vand.u32 %v1086, 4294901760
  %2322 = vmatpush1.msra.mxu0 %v2321
  %v2323 = vand.u32 %v1089, 4294901760
  %2324 = vmatprep.subr.mxu0 %v2323
  %v2325 = vand.u32 %v1088, 4294901760
  %2326 = vmatpush1.msra.mxu0 %v2325
  %v2327 = vand.u32 %v1091, 4294901760
  %2328 = vmatprep.subr.mxu0 %v2327
  %v2329 = vand.u32 %v1090, 4294901760
  %2330 = vmatpush1.msra.mxu0 %v2329
  %v2331 = vand.u32 %v1093, 4294901760
  %2332 = vmatprep.subr.mxu0 %v2331
  %v2333 = vand.u32 %v1092, 4294901760
  %2334 = vmatpush1.msra.mxu0 %v2333
  %v2335 = vand.u32 %v1095, 4294901760
  %2336 = vmatprep.subr.mxu0 %v2335
  %v2337 = vand.u32 %v1094, 4294901760
  %2338 = vmatpush1.msra.mxu0 %v2337
  %v2339 = vand.u32 %v1097, 4294901760
  %2340 = vmatprep.subr.mxu0 %v2339
  %v2341 = vand.u32 %v1096, 4294901760
  %2342 = vmatpush1.msra.mxu0 %v2341
  %v2343 = vand.u32 %v1099, 4294901760
  %2344 = vmatprep.subr.mxu0 %v2343
  %v2345 = vand.u32 %v1098, 4294901760
  %2346 = vmatpush1.msra.mxu0 %v2345
  %v2347 = vand.u32 %v1101, 4294901760
  %2348 = vmatprep.subr.mxu0 %v2347
  %v2349 = vand.u32 %v1100, 4294901760
  %2350 = vmatpush1.msra.mxu0 %v2349
  %v2351 = vand.u32 %v1103, 4294901760
  %2352 = vmatprep.subr.mxu0 %v2351
  %v2353 = vand.u32 %v1102, 4294901760
  %2354 = vmatpush1.msra.mxu0 %v2353
  %v2355 = vand.u32 %v1105, 4294901760
  %2356 = vmatprep.subr.mxu0 %v2355
  %v2357 = vand.u32 %v1104, 4294901760
  %2358 = vmatpush1.msra.mxu0 %v2357
  %v2359 = vand.u32 %v1107, 4294901760
  %2360 = vmatprep.subr.mxu0 %v2359
  %v2361 = vand.u32 %v1106, 4294901760
  %2362 = vmatpush1.msra.mxu0 %v2361
  %v2363 = vand.u32 %v1109, 4294901760
  %2364 = vmatprep.subr.mxu0 %v2363
  %v2365 = vand.u32 %v1108, 4294901760
  %2366 = vmatpush1.msra.mxu0 %v2365
  %v2367 = vand.u32 %v1111, 4294901760
  %2368 = vmatprep.subr.mxu0 %v2367
  %v2369 = vand.u32 %v1110, 4294901760
  %2370 = vmatpush1.msra.mxu0 %v2369
  %v2371 = vand.u32 %v1113, 4294901760
  %2372 = vmatprep.subr.mxu0 %v2371
  %v2373 = vand.u32 %v1112, 4294901760
  %2374 = vmatpush1.msra.mxu0 %v2373
  %v2375 = vand.u32 %v1115, 4294901760
  %2376 = vmatprep.subr.mxu0 %v2375
  %v2377 = vand.u32 %v1114, 4294901760
  %2378 = vmatpush1.msra.mxu0 %v2377
  %v2379 = vand.u32 %v1117, 4294901760
  %2380 = vmatprep.subr.mxu0 %v2379
  %v2381 = vand.u32 %v1116, 4294901760
  %2382 = vmatpush1.msra.mxu0 %v2381
  %v2383 = vand.u32 %v1119, 4294901760
  %2384 = vmatprep.subr.mxu0 %v2383
  %v2385 = vand.u32 %v1118, 4294901760
  %2386 = vmatpush1.msra.mxu0 %v2385
  %v2387 = vand.u32 %v1121, 4294901760
  %2388 = vmatprep.subr.mxu0 %v2387
  %v2389 = vand.u32 %v1120, 4294901760
  %2390 = vmatpush1.msra.mxu0 %v2389
  %v2391 = vand.u32 %v1123, 4294901760
  %2392 = vmatprep.subr.mxu0 %v2391
  %v2393 = vand.u32 %v1122, 4294901760
  %2394 = vmatpush1.msra.mxu0 %v2393
  %v2395 = vand.u32 %v1125, 4294901760
  %2396 = vmatprep.subr.mxu0 %v2395
  %v2397 = vand.u32 %v1124, 4294901760
  %2398 = vmatpush1.msra.mxu0 %v2397
  %v2399 = vand.u32 %v1127, 4294901760
  %2400 = vmatprep.subr.mxu0 %v2399
  %v2401 = vand.u32 %v1126, 4294901760
  %2402 = vmatpush1.msra.mxu0 %v2401
  %v2403 = vand.u32 %v1129, 4294901760
  %2404 = vmatprep.subr.mxu0 %v2403
  %v2405 = vand.u32 %v1128, 4294901760
  %2406 = vmatpush1.msra.mxu0 %v2405
  %v2407 = vand.u32 %v1131, 4294901760
  %2408 = vmatprep.subr.mxu0 %v2407
  %v2409 = vand.u32 %v1130, 4294901760
  %2410 = vmatpush1.msra.mxu0 %v2409
  %v2411 = vand.u32 %v1133, 4294901760
  %2412 = vmatprep.subr.mxu0 %v2411
  %v2413 = vand.u32 %v1132, 4294901760
  %2414 = vmatpush1.msra.mxu0 %v2413
  %v2415 = vand.u32 %v1135, 4294901760
  %2416 = vmatprep.subr.mxu0 %v2415
  %v2417 = vand.u32 %v1134, 4294901760
  %2418 = vmatpush1.msra.mxu0 %v2417
  %v2419 = vand.u32 %v1137, 4294901760
  %2420 = vmatprep.subr.mxu0 %v2419
  %v2421 = vand.u32 %v1136, 4294901760
  %2422 = vmatpush1.msra.mxu0 %v2421
  %v2423 = vand.u32 %v1139, 4294901760
  %2424 = vmatprep.subr.mxu0 %v2423
  %v2425 = vand.u32 %v1138, 4294901760
  %2426 = vmatpush1.msra.mxu0 %v2425
  %v2427 = vand.u32 %v1075, 4294901760
  %2428 = vmatprep.mubr.f32.mxu0 %v2427
  %v2429 = vand.u32 %v1074, 4294901760
  %2430 = vmatmul.mubr.f32.gmra.mrb[0].mxu0 %v2429
  %v2431 = vpop.f32.mrb[0].mxu0
  %v2432 = vadd.f32 %v2295, %v2431
  %v2433 = vpop.f32.mrb[0].mxu0
  %v2434 = vadd.f32 %v2297, %v2433
  %2435 = vdwg.mxu0
  %v2436 = vmax.f32 %v2432, 0.0
  %v2437 = vmax.f32 %v2434, 0.0
  %v2438 = vld [vmem:[%s5] sm:$0xff]
  %v2439 = vld [vmem:[%s5 + $0x8] sm:$0xff]
  %v2440 = vld [vmem:[%s5 + $0x10] sm:$0xff]
  %v2441 = vld [vmem:[%s5 + $0x18] sm:$0xff]
  %v2442 = vld [vmem:[%s5 + $0x20] sm:$0xff]
  %v2443 = vld [vmem:[%s5 + $0x28] sm:$0xff]
  %v2444 = vld [vmem:[%s5 + $0x30] sm:$0xff]
  %v2445 = vld [vmem:[%s5 + $0x38] sm:$0xff]
  %v2446 = vld [vmem:[%s5 + $0x40] sm:$0xff]
  %v2447 = vld [vmem:[%s5 + $0x48] sm:$0xff]
  %v2448 = vld [vmem:[%s5 + $0x50] sm:$0xff]
  %v2449 = vld [vmem:[%s5 + $0x58] sm:$0xff]
  %v2450 = vld [vmem:[%s5 + $0x60] sm:$0xff]
  %v2451 = vld [vmem:[%s5 + $0x68] sm:$0xff]
  %v2452 = vld [vmem:[%s5 + $0x70] sm:$0xff]
  %v2453 = vld [vmem:[%s5 + $0x78] sm:$0xff]
  %v2454 = vld [vmem:[%s5 + $0x80] sm:$0xff]
  %v2455 = vld [vmem:[%s5 + $0x88] sm:$0xff]
  %v2456 = vld [vmem:[%s5 + $0x90] sm:$0xff]
  %v2457 = vld [vmem:[%s5 + $0x98] sm:$0xff]
  %v2458 = vld [vmem:[%s5 + $0xa0] sm:$0xff]
  %v2459 = vld [vmem:[%s5 + $0xa8] sm:$0xff]
  %v2460 = vld [vmem:[%s5 + $0xb0] sm:$0xff]
  %v2461 = vld [vmem:[%s5 + $0xb8] sm:$0xff]
  %v2462 = vld [vmem:[%s5 + $0xc0] sm:$0xff]
  %v2463 = vld [vmem:[%s5 + $0xc8] sm:$0xff]
  %v2464 = vld [vmem:[%s5 + $0xd0] sm:$0xff]
  %v2465 = vld [vmem:[%s5 + $0xd8] sm:$0xff]
  %v2466 = vld [vmem:[%s5 + $0xe0] sm:$0xff]
  %v2467 = vld [vmem:[%s5 + $0xe8] sm:$0xff]
  %v2468 = vld [vmem:[%s5 + $0xf0] sm:$0xff]
  %v2469 = vld [vmem:[%s5 + $0xf8] sm:$0xff]
  %v2470 = vld [vmem:[%s8] sm:$0x1]
  %v2472 = vlaneseq
  %v2473 = vshrl.u32 %v2472, 7
  %v2474 = vsub.s32 0, %v2473
  %v2475 = vrot.slane %v2470, %v2474
  %2477 = vmatprep.subr.mxu0 0.0
  %v2478 = vand.u32 %v2438, 4294901760
  %2479 = vmatpush1.msra.mxu0 %v2478
  %2480 = vmatprep.subr.mxu0 0.0
  %v2481 = vand.u32 %v2439, 4294901760
  %2482 = vmatpush1.msra.mxu0 %v2481
  %2483 = vmatprep.subr.mxu0 0.0
  %v2484 = vand.u32 %v2440, 4294901760
  %2485 = vmatpush1.msra.mxu0 %v2484
  %2486 = vmatprep.subr.mxu0 0.0
  %v2487 = vand.u32 %v2441, 4294901760
  %2488 = vmatpush1.msra.mxu0 %v2487
  %2489 = vmatprep.subr.mxu0 0.0
  %v2490 = vand.u32 %v2442, 4294901760
  %2491 = vmatpush1.msra.mxu0 %v2490
  %2492 = vmatprep.subr.mxu0 0.0
  %v2493 = vand.u32 %v2443, 4294901760
  %2494 = vmatpush1.msra.mxu0 %v2493
  %2495 = vmatprep.subr.mxu0 0.0
  %v2496 = vand.u32 %v2444, 4294901760
  %2497 = vmatpush1.msra.mxu0 %v2496
  %2498 = vmatprep.subr.mxu0 0.0
  %v2499 = vand.u32 %v2445, 4294901760
  %2500 = vmatpush1.msra.mxu0 %v2499
  %2501 = vmatprep.subr.mxu0 0.0
  %v2502 = vand.u32 %v2446, 4294901760
  %2503 = vmatpush1.msra.mxu0 %v2502
  %2504 = vmatprep.subr.mxu0 0.0
  %v2505 = vand.u32 %v2447, 4294901760
  %2506 = vmatpush1.msra.mxu0 %v2505
  %2507 = vmatprep.subr.mxu0 0.0
  %v2508 = vand.u32 %v2448, 4294901760
  %2509 = vmatpush1.msra.mxu0 %v2508
  %2510 = vmatprep.subr.mxu0 0.0
  %v2511 = vand.u32 %v2449, 4294901760
  %2512 = vmatpush1.msra.mxu0 %v2511
  %2513 = vmatprep.subr.mxu0 0.0
  %v2514 = vand.u32 %v2450, 4294901760
  %2515 = vmatpush1.msra.mxu0 %v2514
  %2516 = vmatprep.subr.mxu0 0.0
  %v2517 = vand.u32 %v2451, 4294901760
  %2518 = vmatpush1.msra.mxu0 %v2517
  %2519 = vmatprep.subr.mxu0 0.0
  %v2520 = vand.u32 %v2452, 4294901760
  %2521 = vmatpush1.msra.mxu0 %v2520
  %2522 = vmatprep.subr.mxu0 0.0
  %v2523 = vand.u32 %v2453, 4294901760
  %2524 = vmatpush1.msra.mxu0 %v2523
  %2525 = vmatprep.subr.mxu0 0.0
  %v2526 = vand.u32 %v2454, 4294901760
  %2527 = vmatpush1.msra.mxu0 %v2526
  %2528 = vmatprep.subr.mxu0 0.0
  %v2529 = vand.u32 %v2455, 4294901760
  %2530 = vmatpush1.msra.mxu0 %v2529
  %2531 = vmatprep.subr.mxu0 0.0
  %v2532 = vand.u32 %v2456, 4294901760
  %2533 = vmatpush1.msra.mxu0 %v2532
  %2534 = vmatprep.subr.mxu0 0.0
  %v2535 = vand.u32 %v2457, 4294901760
  %2536 = vmatpush1.msra.mxu0 %v2535
  %2537 = vmatprep.subr.mxu0 0.0
  %v2538 = vand.u32 %v2458, 4294901760
  %2539 = vmatpush1.msra.mxu0 %v2538
  %2540 = vmatprep.subr.mxu0 0.0
  %v2541 = vand.u32 %v2459, 4294901760
  %2542 = vmatpush1.msra.mxu0 %v2541
  %2543 = vmatprep.subr.mxu0 0.0
  %v2544 = vand.u32 %v2460, 4294901760
  %2545 = vmatpush1.msra.mxu0 %v2544
  %2546 = vmatprep.subr.mxu0 0.0
  %v2547 = vand.u32 %v2461, 4294901760
  %2548 = vmatpush1.msra.mxu0 %v2547
  %2549 = vmatprep.subr.mxu0 0.0
  %v2550 = vand.u32 %v2462, 4294901760
  %2551 = vmatpush1.msra.mxu0 %v2550
  %2552 = vmatprep.subr.mxu0 0.0
  %v2553 = vand.u32 %v2463, 4294901760
  %2554 = vmatpush1.msra.mxu0 %v2553
  %2555 = vmatprep.subr.mxu0 0.0
  %v2556 = vand.u32 %v2464, 4294901760
  %2557 = vmatpush1.msra.mxu0 %v2556
  %2558 = vmatprep.subr.mxu0 0.0
  %v2559 = vand.u32 %v2465, 4294901760
  %2560 = vmatpush1.msra.mxu0 %v2559
  %2561 = vmatprep.subr.mxu0 0.0
  %v2562 = vand.u32 %v2466, 4294901760
  %2563 = vmatpush1.msra.mxu0 %v2562
  %2564 = vmatprep.subr.mxu0 0.0
  %v2565 = vand.u32 %v2467, 4294901760
  %2566 = vmatpush1.msra.mxu0 %v2565
  %2567 = vmatprep.subr.mxu0 0.0
  %v2568 = vand.u32 %v2468, 4294901760
  %2569 = vmatpush1.msra.mxu0 %v2568
  %2570 = vmatprep.subr.mxu0 0.0
  %v2571 = vand.u32 %v2469, 4294901760
  %2572 = vmatpush1.msra.mxu0 %v2571
  %v2573 = vand.u32 %v2437, 4294901760
  %v2574 = vsub.f32 %v2437, %v2573
  %v2575 = vand.u32 %v2574, 4294901760
  %v2576 = vsub.f32 %v2574, %v2575
  %v2577 = vand.u32 %v2576, 4294901760
  %2578 = vmatprep.mubr.f32.mxu0 %v2577
  %v2579 = vand.u32 %v2436, 4294901760
  %v2580 = vsub.f32 %v2436, %v2579
  %v2581 = vand.u32 %v2580, 4294901760
  %v2582 = vsub.f32 %v2580, %v2581
  %v2583 = vand.u32 %v2582, 4294901760
  %2584 = vmatmul.mubr.f32.gmra.mrb[0].mxu0 %v2583
  %v2585 = vpop.f32.mrb[0].mxu0
  %v2586 = vadd.f32 %v2475, %v2585
  %v2587 = vpop.f32.mrb[0].mxu0
  %2588 = vdwg.mxu0
  %2589 = vmatprep.subr.mxu0 0.0
  %v2590 = vand.u32 %v2438, 4294901760
  %v2591 = vsub.f32 %v2438, %v2590
  %v2592 = vand.u32 %v2591, 4294901760
  %v2593 = vsub.f32 %v2591, %v2592
  %v2594 = vand.u32 %v2593, 4294901760
  %2595 = vmatpush1.msra.mxu0 %v2594
  %2596 = vmatprep.subr.mxu0 0.0
  %v2597 = vand.u32 %v2439, 4294901760
  %v2598 = vsub.f32 %v2439, %v2597
  %v2599 = vand.u32 %v2598, 4294901760
  %v2600 = vsub.f32 %v2598, %v2599
  %v2601 = vand.u32 %v2600, 4294901760
  %2602 = vmatpush1.msra.mxu0 %v2601
  %2603 = vmatprep.subr.mxu0 0.0
  %v2604 = vand.u32 %v2440, 4294901760
  %v2605 = vsub.f32 %v2440, %v2604
  %v2606 = vand.u32 %v2605, 4294901760
  %v2607 = vsub.f32 %v2605, %v2606
  %v2608 = vand.u32 %v2607, 4294901760
  %2609 = vmatpush1.msra.mxu0 %v2608
  %2610 = vmatprep.subr.mxu0 0.0
  %v2611 = vand.u32 %v2441, 4294901760
  %v2612 = vsub.f32 %v2441, %v2611
  %v2613 = vand.u32 %v2612, 4294901760
  %v2614 = vsub.f32 %v2612, %v2613
  %v2615 = vand.u32 %v2614, 4294901760
  %2616 = vmatpush1.msra.mxu0 %v2615
  %2617 = vmatprep.subr.mxu0 0.0
  %v2618 = vand.u32 %v2442, 4294901760
  %v2619 = vsub.f32 %v2442, %v2618
  %v2620 = vand.u32 %v2619, 4294901760
  %v2621 = vsub.f32 %v2619, %v2620
  %v2622 = vand.u32 %v2621, 4294901760
  %2623 = vmatpush1.msra.mxu0 %v2622
  %2624 = vmatprep.subr.mxu0 0.0
  %v2625 = vand.u32 %v2443, 4294901760
  %v2626 = vsub.f32 %v2443, %v2625
  %v2627 = vand.u32 %v2626, 4294901760
  %v2628 = vsub.f32 %v2626, %v2627
  %v2629 = vand.u32 %v2628, 4294901760
  %2630 = vmatpush1.msra.mxu0 %v2629
  %2631 = vmatprep.subr.mxu0 0.0
  %v2632 = vand.u32 %v2444, 4294901760
  %v2633 = vsub.f32 %v2444, %v2632
  %v2634 = vand.u32 %v2633, 4294901760
  %v2635 = vsub.f32 %v2633, %v2634
  %v2636 = vand.u32 %v2635, 4294901760
  %2637 = vmatpush1.msra.mxu0 %v2636
  %2638 = vmatprep.subr.mxu0 0.0
  %v2639 = vand.u32 %v2445, 4294901760
  %v2640 = vsub.f32 %v2445, %v2639
  %v2641 = vand.u32 %v2640, 4294901760
  %v2642 = vsub.f32 %v2640, %v2641
  %v2643 = vand.u32 %v2642, 4294901760
  %2644 = vmatpush1.msra.mxu0 %v2643
  %2645 = vmatprep.subr.mxu0 0.0
  %v2646 = vand.u32 %v2446, 4294901760
  %v2647 = vsub.f32 %v2446, %v2646
  %v2648 = vand.u32 %v2647, 4294901760
  %v2649 = vsub.f32 %v2647, %v2648
  %v2650 = vand.u32 %v2649, 4294901760
  %2651 = vmatpush1.msra.mxu0 %v2650
  %2652 = vmatprep.subr.mxu0 0.0
  %v2653 = vand.u32 %v2447, 4294901760
  %v2654 = vsub.f32 %v2447, %v2653
  %v2655 = vand.u32 %v2654, 4294901760
  %v2656 = vsub.f32 %v2654, %v2655
  %v2657 = vand.u32 %v2656, 4294901760
  %2658 = vmatpush1.msra.mxu0 %v2657
  %2659 = vmatprep.subr.mxu0 0.0
  %v2660 = vand.u32 %v2448, 4294901760
  %v2661 = vsub.f32 %v2448, %v2660
  %v2662 = vand.u32 %v2661, 4294901760
  %v2663 = vsub.f32 %v2661, %v2662
  %v2664 = vand.u32 %v2663, 4294901760
  %2665 = vmatpush1.msra.mxu0 %v2664
  %2666 = vmatprep.subr.mxu0 0.0
  %v2667 = vand.u32 %v2449, 4294901760
  %v2668 = vsub.f32 %v2449, %v2667
  %v2669 = vand.u32 %v2668, 4294901760
  %v2670 = vsub.f32 %v2668, %v2669
  %v2671 = vand.u32 %v2670, 4294901760
  %2672 = vmatpush1.msra.mxu0 %v2671
  %2673 = vmatprep.subr.mxu0 0.0
  %v2674 = vand.u32 %v2450, 4294901760
  %v2675 = vsub.f32 %v2450, %v2674
  %v2676 = vand.u32 %v2675, 4294901760
  %v2677 = vsub.f32 %v2675, %v2676
  %v2678 = vand.u32 %v2677, 4294901760
  %2679 = vmatpush1.msra.mxu0 %v2678
  %2680 = vmatprep.subr.mxu0 0.0
  %v2681 = vand.u32 %v2451, 4294901760
  %v2682 = vsub.f32 %v2451, %v2681
  %v2683 = vand.u32 %v2682, 4294901760
  %v2684 = vsub.f32 %v2682, %v2683
  %v2685 = vand.u32 %v2684, 4294901760
  %2686 = vmatpush1.msra.mxu0 %v2685
  %2687 = vmatprep.subr.mxu0 0.0
  %v2688 = vand.u32 %v2452, 4294901760
  %v2689 = vsub.f32 %v2452, %v2688
  %v2690 = vand.u32 %v2689, 4294901760
  %v2691 = vsub.f32 %v2689, %v2690
  %v2692 = vand.u32 %v2691, 4294901760
  %2693 = vmatpush1.msra.mxu0 %v2692
  %2694 = vmatprep.subr.mxu0 0.0
  %v2695 = vand.u32 %v2453, 4294901760
  %v2696 = vsub.f32 %v2453, %v2695
  %v2697 = vand.u32 %v2696, 4294901760
  %v2698 = vsub.f32 %v2696, %v2697
  %v2699 = vand.u32 %v2698, 4294901760
  %2700 = vmatpush1.msra.mxu0 %v2699
  %2701 = vmatprep.subr.mxu0 0.0
  %v2702 = vand.u32 %v2454, 4294901760
  %v2703 = vsub.f32 %v2454, %v2702
  %v2704 = vand.u32 %v2703, 4294901760
  %v2705 = vsub.f32 %v2703, %v2704
  %v2706 = vand.u32 %v2705, 4294901760
  %2707 = vmatpush1.msra.mxu0 %v2706
  %2708 = vmatprep.subr.mxu0 0.0
  %v2709 = vand.u32 %v2455, 4294901760
  %v2710 = vsub.f32 %v2455, %v2709
  %v2711 = vand.u32 %v2710, 4294901760
  %v2712 = vsub.f32 %v2710, %v2711
  %v2713 = vand.u32 %v2712, 4294901760
  %2714 = vmatpush1.msra.mxu0 %v2713
  %2715 = vmatprep.subr.mxu0 0.0
  %v2716 = vand.u32 %v2456, 4294901760
  %v2717 = vsub.f32 %v2456, %v2716
  %v2718 = vand.u32 %v2717, 4294901760
  %v2719 = vsub.f32 %v2717, %v2718
  %v2720 = vand.u32 %v2719, 4294901760
  %2721 = vmatpush1.msra.mxu0 %v2720
  %2722 = vmatprep.subr.mxu0 0.0
  %v2723 = vand.u32 %v2457, 4294901760
  %v2724 = vsub.f32 %v2457, %v2723
  %v2725 = vand.u32 %v2724, 4294901760
  %v2726 = vsub.f32 %v2724, %v2725
  %v2727 = vand.u32 %v2726, 4294901760
  %2728 = vmatpush1.msra.mxu0 %v2727
  %2729 = vmatprep.subr.mxu0 0.0
  %v2730 = vand.u32 %v2458, 4294901760
  %v2731 = vsub.f32 %v2458, %v2730
  %v2732 = vand.u32 %v2731, 4294901760
  %v2733 = vsub.f32 %v2731, %v2732
  %v2734 = vand.u32 %v2733, 4294901760
  %2735 = vmatpush1.msra.mxu0 %v2734
  %2736 = vmatprep.subr.mxu0 0.0
  %v2737 = vand.u32 %v2459, 4294901760
  %v2738 = vsub.f32 %v2459, %v2737
  %v2739 = vand.u32 %v2738, 4294901760
  %v2740 = vsub.f32 %v2738, %v2739
  %v2741 = vand.u32 %v2740, 4294901760
  %2742 = vmatpush1.msra.mxu0 %v2741
  %2743 = vmatprep.subr.mxu0 0.0
  %v2744 = vand.u32 %v2460, 4294901760
  %v2745 = vsub.f32 %v2460, %v2744
  %v2746 = vand.u32 %v2745, 4294901760
  %v2747 = vsub.f32 %v2745, %v2746
  %v2748 = vand.u32 %v2747, 4294901760
  %2749 = vmatpush1.msra.mxu0 %v2748
  %2750 = vmatprep.subr.mxu0 0.0
  %v2751 = vand.u32 %v2461, 4294901760
  %v2752 = vsub.f32 %v2461, %v2751
  %v2753 = vand.u32 %v2752, 4294901760
  %v2754 = vsub.f32 %v2752, %v2753
  %v2755 = vand.u32 %v2754, 4294901760
  %2756 = vmatpush1.msra.mxu0 %v2755
  %2757 = vmatprep.subr.mxu0 0.0
  %v2758 = vand.u32 %v2462, 4294901760
  %v2759 = vsub.f32 %v2462, %v2758
  %v2760 = vand.u32 %v2759, 4294901760
  %v2761 = vsub.f32 %v2759, %v2760
  %v2762 = vand.u32 %v2761, 4294901760
  %2763 = vmatpush1.msra.mxu0 %v2762
  %2764 = vmatprep.subr.mxu0 0.0
  %v2765 = vand.u32 %v2463, 4294901760
  %v2766 = vsub.f32 %v2463, %v2765
  %v2767 = vand.u32 %v2766, 4294901760
  %v2768 = vsub.f32 %v2766, %v2767
  %v2769 = vand.u32 %v2768, 4294901760
  %2770 = vmatpush1.msra.mxu0 %v2769
  %2771 = vmatprep.subr.mxu0 0.0
  %v2772 = vand.u32 %v2464, 4294901760
  %v2773 = vsub.f32 %v2464, %v2772
  %v2774 = vand.u32 %v2773, 4294901760
  %v2775 = vsub.f32 %v2773, %v2774
  %v2776 = vand.u32 %v2775, 4294901760
  %2777 = vmatpush1.msra.mxu0 %v2776
  %2778 = vmatprep.subr.mxu0 0.0
  %v2779 = vand.u32 %v2465, 4294901760
  %v2780 = vsub.f32 %v2465, %v2779
  %v2781 = vand.u32 %v2780, 4294901760
  %v2782 = vsub.f32 %v2780, %v2781
  %v2783 = vand.u32 %v2782, 4294901760
  %2784 = vmatpush1.msra.mxu0 %v2783
  %2785 = vmatprep.subr.mxu0 0.0
  %v2786 = vand.u32 %v2466, 4294901760
  %v2787 = vsub.f32 %v2466, %v2786
  %v2788 = vand.u32 %v2787, 4294901760
  %v2789 = vsub.f32 %v2787, %v2788
  %v2790 = vand.u32 %v2789, 4294901760
  %2791 = vmatpush1.msra.mxu0 %v2790
  %2792 = vmatprep.subr.mxu0 0.0
  %v2793 = vand.u32 %v2467, 4294901760
  %v2794 = vsub.f32 %v2467, %v2793
  %v2795 = vand.u32 %v2794, 4294901760
  %v2796 = vsub.f32 %v2794, %v2795
  %v2797 = vand.u32 %v2796, 4294901760
  %2798 = vmatpush1.msra.mxu0 %v2797
  %2799 = vmatprep.subr.mxu0 0.0
  %v2800 = vand.u32 %v2468, 4294901760
  %v2801 = vsub.f32 %v2468, %v2800
  %v2802 = vand.u32 %v2801, 4294901760
  %v2803 = vsub.f32 %v2801, %v2802
  %v2804 = vand.u32 %v2803, 4294901760
  %2805 = vmatpush1.msra.mxu0 %v2804
  %2806 = vmatprep.subr.mxu0 0.0
  %v2807 = vand.u32 %v2469, 4294901760
  %v2808 = vsub.f32 %v2469, %v2807
  %v2809 = vand.u32 %v2808, 4294901760
  %v2810 = vsub.f32 %v2808, %v2809
  %v2811 = vand.u32 %v2810, 4294901760
  %2812 = vmatpush1.msra.mxu0 %v2811
  %v2813 = vand.u32 %v2437, 4294901760
  %2814 = vmatprep.mubr.f32.mxu0 %v2813
  %v2815 = vand.u32 %v2436, 4294901760
  %2816 = vmatmul.mubr.f32.gmra.mrb[0].mxu0 %v2815
  %v2817 = vpop.f32.mrb[0].mxu0
  %v2818 = vadd.f32 %v2586, %v2817
  %v2819 = vpop.f32.mrb[0].mxu0
  %2820 = vdwg.mxu0
  %2821 = vmatprep.subr.mxu0 0.0
  %v2822 = vand.u32 %v2438, 4294901760
  %v2823 = vsub.f32 %v2438, %v2822
  %2824 = vmatpush1.msra.mxu0 %v2823
  %2825 = vmatprep.subr.mxu0 0.0
  %v2826 = vand.u32 %v2439, 4294901760
  %v2827 = vsub.f32 %v2439, %v2826
  %2828 = vmatpush1.msra.mxu0 %v2827
  %2829 = vmatprep.subr.mxu0 0.0
  %v2830 = vand.u32 %v2440, 4294901760
  %v2831 = vsub.f32 %v2440, %v2830
  %2832 = vmatpush1.msra.mxu0 %v2831
  %2833 = vmatprep.subr.mxu0 0.0
  %v2834 = vand.u32 %v2441, 4294901760
  %v2835 = vsub.f32 %v2441, %v2834
  %2836 = vmatpush1.msra.mxu0 %v2835
  %2837 = vmatprep.subr.mxu0 0.0
  %v2838 = vand.u32 %v2442, 4294901760
  %v2839 = vsub.f32 %v2442, %v2838
  %2840 = vmatpush1.msra.mxu0 %v2839
  %2841 = vmatprep.subr.mxu0 0.0
  %v2842 = vand.u32 %v2443, 4294901760
  %v2843 = vsub.f32 %v2443, %v2842
  %2844 = vmatpush1.msra.mxu0 %v2843
  %2845 = vmatprep.subr.mxu0 0.0
  %v2846 = vand.u32 %v2444, 4294901760
  %v2847 = vsub.f32 %v2444, %v2846
  %2848 = vmatpush1.msra.mxu0 %v2847
  %2849 = vmatprep.subr.mxu0 0.0
  %v2850 = vand.u32 %v2445, 4294901760
  %v2851 = vsub.f32 %v2445, %v2850
  %2852 = vmatpush1.msra.mxu0 %v2851
  %2853 = vmatprep.subr.mxu0 0.0
  %v2854 = vand.u32 %v2446, 4294901760
  %v2855 = vsub.f32 %v2446, %v2854
  %2856 = vmatpush1.msra.mxu0 %v2855
  %2857 = vmatprep.subr.mxu0 0.0
  %v2858 = vand.u32 %v2447, 4294901760
  %v2859 = vsub.f32 %v2447, %v2858
  %2860 = vmatpush1.msra.mxu0 %v2859
  %2861 = vmatprep.subr.mxu0 0.0
  %v2862 = vand.u32 %v2448, 4294901760
  %v2863 = vsub.f32 %v2448, %v2862
  %2864 = vmatpush1.msra.mxu0 %v2863
  %2865 = vmatprep.subr.mxu0 0.0
  %v2866 = vand.u32 %v2449, 4294901760
  %v2867 = vsub.f32 %v2449, %v2866
  %2868 = vmatpush1.msra.mxu0 %v2867
  %2869 = vmatprep.subr.mxu0 0.0
  %v2870 = vand.u32 %v2450, 4294901760
  %v2871 = vsub.f32 %v2450, %v2870
  %2872 = vmatpush1.msra.mxu0 %v2871
  %2873 = vmatprep.subr.mxu0 0.0
  %v2874 = vand.u32 %v2451, 4294901760
  %v2875 = vsub.f32 %v2451, %v2874
  %2876 = vmatpush1.msra.mxu0 %v2875
  %2877 = vmatprep.subr.mxu0 0.0
  %v2878 = vand.u32 %v2452, 4294901760
  %v2879 = vsub.f32 %v2452, %v2878
  %2880 = vmatpush1.msra.mxu0 %v2879
  %2881 = vmatprep.subr.mxu0 0.0
  %v2882 = vand.u32 %v2453, 4294901760
  %v2883 = vsub.f32 %v2453, %v2882
  %2884 = vmatpush1.msra.mxu0 %v2883
  %2885 = vmatprep.subr.mxu0 0.0
  %v2886 = vand.u32 %v2454, 4294901760
  %v2887 = vsub.f32 %v2454, %v2886
  %2888 = vmatpush1.msra.mxu0 %v2887
  %2889 = vmatprep.subr.mxu0 0.0
  %v2890 = vand.u32 %v2455, 4294901760
  %v2891 = vsub.f32 %v2455, %v2890
  %2892 = vmatpush1.msra.mxu0 %v2891
  %2893 = vmatprep.subr.mxu0 0.0
  %v2894 = vand.u32 %v2456, 4294901760
  %v2895 = vsub.f32 %v2456, %v2894
  %2896 = vmatpush1.msra.mxu0 %v2895
  %2897 = vmatprep.subr.mxu0 0.0
  %v2898 = vand.u32 %v2457, 4294901760
  %v2899 = vsub.f32 %v2457, %v2898
  %2900 = vmatpush1.msra.mxu0 %v2899
  %2901 = vmatprep.subr.mxu0 0.0
  %v2902 = vand.u32 %v2458, 4294901760
  %v2903 = vsub.f32 %v2458, %v2902
  %2904 = vmatpush1.msra.mxu0 %v2903
  %2905 = vmatprep.subr.mxu0 0.0
  %v2906 = vand.u32 %v2459, 4294901760
  %v2907 = vsub.f32 %v2459, %v2906
  %2908 = vmatpush1.msra.mxu0 %v2907
  %2909 = vmatprep.subr.mxu0 0.0
  %v2910 = vand.u32 %v2460, 4294901760
  %v2911 = vsub.f32 %v2460, %v2910
  %2912 = vmatpush1.msra.mxu0 %v2911
  %2913 = vmatprep.subr.mxu0 0.0
  %v2914 = vand.u32 %v2461, 4294901760
  %v2915 = vsub.f32 %v2461, %v2914
  %2916 = vmatpush1.msra.mxu0 %v2915
  %2917 = vmatprep.subr.mxu0 0.0
  %v2918 = vand.u32 %v2462, 4294901760
  %v2919 = vsub.f32 %v2462, %v2918
  %2920 = vmatpush1.msra.mxu0 %v2919
  %2921 = vmatprep.subr.mxu0 0.0
  %v2922 = vand.u32 %v2463, 4294901760
  %v2923 = vsub.f32 %v2463, %v2922
  %2924 = vmatpush1.msra.mxu0 %v2923
  %2925 = vmatprep.subr.mxu0 0.0
  %v2926 = vand.u32 %v2464, 4294901760
  %v2927 = vsub.f32 %v2464, %v2926
  %2928 = vmatpush1.msra.mxu0 %v2927
  %2929 = vmatprep.subr.mxu0 0.0
  %v2930 = vand.u32 %v2465, 4294901760
  %v2931 = vsub.f32 %v2465, %v2930
  %2932 = vmatpush1.msra.mxu0 %v2931
  %2933 = vmatprep.subr.mxu0 0.0
  %v2934 = vand.u32 %v2466, 4294901760
  %v2935 = vsub.f32 %v2466, %v2934
  %2936 = vmatpush1.msra.mxu0 %v2935
  %2937 = vmatprep.subr.mxu0 0.0
  %v2938 = vand.u32 %v2467, 4294901760
  %v2939 = vsub.f32 %v2467, %v2938
  %2940 = vmatpush1.msra.mxu0 %v2939
  %2941 = vmatprep.subr.mxu0 0.0
  %v2942 = vand.u32 %v2468, 4294901760
  %v2943 = vsub.f32 %v2468, %v2942
  %2944 = vmatpush1.msra.mxu0 %v2943
  %2945 = vmatprep.subr.mxu0 0.0
  %v2946 = vand.u32 %v2469, 4294901760
  %v2947 = vsub.f32 %v2469, %v2946
  %2948 = vmatpush1.msra.mxu0 %v2947
  %v2949 = vand.u32 %v2437, 4294901760
  %v2950 = vsub.f32 %v2437, %v2949
  %2951 = vmatprep.mubr.f32.mxu0 %v2950
  %v2952 = vand.u32 %v2436, 4294901760
  %v2953 = vsub.f32 %v2436, %v2952
  %2954 = vmatmul.mubr.f32.gmra.mrb[0].mxu0 %v2953
  %v2955 = vpop.f32.mrb[0].mxu0
  %v2956 = vadd.f32 %v2818, %v2955
  %v2957 = vpop.f32.mrb[0].mxu0
  %2958 = vdwg.mxu0
  %2959 = vmatprep.subr.mxu0 0.0
  %v2960 = vand.u32 %v2438, 4294901760
  %2961 = vmatpush1.msra.mxu0 %v2960
  %2962 = vmatprep.subr.mxu0 0.0
  %v2963 = vand.u32 %v2439, 4294901760
  %2964 = vmatpush1.msra.mxu0 %v2963
  %2965 = vmatprep.subr.mxu0 0.0
  %v2966 = vand.u32 %v2440, 4294901760
  %2967 = vmatpush1.msra.mxu0 %v2966
  %2968 = vmatprep.subr.mxu0 0.0
  %v2969 = vand.u32 %v2441, 4294901760
  %2970 = vmatpush1.msra.mxu0 %v2969
  %2971 = vmatprep.subr.mxu0 0.0
  %v2972 = vand.u32 %v2442, 4294901760
  %2973 = vmatpush1.msra.mxu0 %v2972
  %2974 = vmatprep.subr.mxu0 0.0
  %v2975 = vand.u32 %v2443, 4294901760
  %2976 = vmatpush1.msra.mxu0 %v2975
  %2977 = vmatprep.subr.mxu0 0.0
  %v2978 = vand.u32 %v2444, 4294901760
  %2979 = vmatpush1.msra.mxu0 %v2978
  %2980 = vmatprep.subr.mxu0 0.0
  %v2981 = vand.u32 %v2445, 4294901760
  %2982 = vmatpush1.msra.mxu0 %v2981
  %2983 = vmatprep.subr.mxu0 0.0
  %v2984 = vand.u32 %v2446, 4294901760
  %2985 = vmatpush1.msra.mxu0 %v2984
  %2986 = vmatprep.subr.mxu0 0.0
  %v2987 = vand.u32 %v2447, 4294901760
  %2988 = vmatpush1.msra.mxu0 %v2987
  %2989 = vmatprep.subr.mxu0 0.0
  %v2990 = vand.u32 %v2448, 4294901760
  %2991 = vmatpush1.msra.mxu0 %v2990
  %2992 = vmatprep.subr.mxu0 0.0
  %v2993 = vand.u32 %v2449, 4294901760
  %2994 = vmatpush1.msra.mxu0 %v2993
  %2995 = vmatprep.subr.mxu0 0.0
  %v2996 = vand.u32 %v2450, 4294901760
  %2997 = vmatpush1.msra.mxu0 %v2996
  %2998 = vmatprep.subr.mxu0 0.0
  %v2999 = vand.u32 %v2451, 4294901760
  %3000 = vmatpush1.msra.mxu0 %v2999
  %3001 = vmatprep.subr.mxu0 0.0
  %v3002 = vand.u32 %v2452, 4294901760
  %3003 = vmatpush1.msra.mxu0 %v3002
  %3004 = vmatprep.subr.mxu0 0.0
  %v3005 = vand.u32 %v2453, 4294901760
  %3006 = vmatpush1.msra.mxu0 %v3005
  %3007 = vmatprep.subr.mxu0 0.0
  %v3008 = vand.u32 %v2454, 4294901760
  %3009 = vmatpush1.msra.mxu0 %v3008
  %3010 = vmatprep.subr.mxu0 0.0
  %v3011 = vand.u32 %v2455, 4294901760
  %3012 = vmatpush1.msra.mxu0 %v3011
  %3013 = vmatprep.subr.mxu0 0.0
  %v3014 = vand.u32 %v2456, 4294901760
  %3015 = vmatpush1.msra.mxu0 %v3014
  %3016 = vmatprep.subr.mxu0 0.0
  %v3017 = vand.u32 %v2457, 4294901760
  %3018 = vmatpush1.msra.mxu0 %v3017
  %3019 = vmatprep.subr.mxu0 0.0
  %v3020 = vand.u32 %v2458, 4294901760
  %3021 = vmatpush1.msra.mxu0 %v3020
  %3022 = vmatprep.subr.mxu0 0.0
  %v3023 = vand.u32 %v2459, 4294901760
  %3024 = vmatpush1.msra.mxu0 %v3023
  %3025 = vmatprep.subr.mxu0 0.0
  %v3026 = vand.u32 %v2460, 4294901760
  %3027 = vmatpush1.msra.mxu0 %v3026
  %3028 = vmatprep.subr.mxu0 0.0
  %v3029 = vand.u32 %v2461, 4294901760
  %3030 = vmatpush1.msra.mxu0 %v3029
  %3031 = vmatprep.subr.mxu0 0.0
  %v3032 = vand.u32 %v2462, 4294901760
  %3033 = vmatpush1.msra.mxu0 %v3032
  %3034 = vmatprep.subr.mxu0 0.0
  %v3035 = vand.u32 %v2463, 4294901760
  %3036 = vmatpush1.msra.mxu0 %v3035
  %3037 = vmatprep.subr.mxu0 0.0
  %v3038 = vand.u32 %v2464, 4294901760
  %3039 = vmatpush1.msra.mxu0 %v3038
  %3040 = vmatprep.subr.mxu0 0.0
  %v3041 = vand.u32 %v2465, 4294901760
  %3042 = vmatpush1.msra.mxu0 %v3041
  %3043 = vmatprep.subr.mxu0 0.0
  %v3044 = vand.u32 %v2466, 4294901760
  %3045 = vmatpush1.msra.mxu0 %v3044
  %3046 = vmatprep.subr.mxu0 0.0
  %v3047 = vand.u32 %v2467, 4294901760
  %3048 = vmatpush1.msra.mxu0 %v3047
  %3049 = vmatprep.subr.mxu0 0.0
  %v3050 = vand.u32 %v2468, 4294901760
  %3051 = vmatpush1.msra.mxu0 %v3050
  %3052 = vmatprep.subr.mxu0 0.0
  %v3053 = vand.u32 %v2469, 4294901760
  %3054 = vmatpush1.msra.mxu0 %v3053
  %v3055 = vand.u32 %v2437, 4294901760
  %v3056 = vsub.f32 %v2437, %v3055
  %v3057 = vand.u32 %v3056, 4294901760
  %3058 = vmatprep.mubr.f32.mxu0 %v3057
  %v3059 = vand.u32 %v2436, 4294901760
  %v3060 = vsub.f32 %v2436, %v3059
  %v3061 = vand.u32 %v3060, 4294901760
  %3062 = vmatmul.mubr.f32.gmra.mrb[0].mxu0 %v3061
  %v3063 = vpop.f32.mrb[0].mxu0
  %v3064 = vadd.f32 %v2956, %v3063
  %v3065 = vpop.f32.mrb[0].mxu0
  %3066 = vdwg.mxu0
  %3067 = vmatprep.subr.mxu0 0.0
  %v3068 = vand.u32 %v2438, 4294901760
  %v3069 = vsub.f32 %v2438, %v3068
  %v3070 = vand.u32 %v3069, 4294901760
  %3071 = vmatpush1.msra.mxu0 %v3070
  %3072 = vmatprep.subr.mxu0 0.0
  %v3073 = vand.u32 %v2439, 4294901760
  %v3074 = vsub.f32 %v2439, %v3073
  %v3075 = vand.u32 %v3074, 4294901760
  %3076 = vmatpush1.msra.mxu0 %v3075
  %3077 = vmatprep.subr.mxu0 0.0
  %v3078 = vand.u32 %v2440, 4294901760
  %v3079 = vsub.f32 %v2440, %v3078
  %v3080 = vand.u32 %v3079, 4294901760
  %3081 = vmatpush1.msra.mxu0 %v3080
  %3082 = vmatprep.subr.mxu0 0.0
  %v3083 = vand.u32 %v2441, 4294901760
  %v3084 = vsub.f32 %v2441, %v3083
  %v3085 = vand.u32 %v3084, 4294901760
  %3086 = vmatpush1.msra.mxu0 %v3085
  %3087 = vmatprep.subr.mxu0 0.0
  %v3088 = vand.u32 %v2442, 4294901760
  %v3089 = vsub.f32 %v2442, %v3088
  %v3090 = vand.u32 %v3089, 4294901760
  %3091 = vmatpush1.msra.mxu0 %v3090
  %3092 = vmatprep.subr.mxu0 0.0
  %v3093 = vand.u32 %v2443, 4294901760
  %v3094 = vsub.f32 %v2443, %v3093
  %v3095 = vand.u32 %v3094, 4294901760
  %3096 = vmatpush1.msra.mxu0 %v3095
  %3097 = vmatprep.subr.mxu0 0.0
  %v3098 = vand.u32 %v2444, 4294901760
  %v3099 = vsub.f32 %v2444, %v3098
  %v3100 = vand.u32 %v3099, 4294901760
  %3101 = vmatpush1.msra.mxu0 %v3100
  %3102 = vmatprep.subr.mxu0 0.0
  %v3103 = vand.u32 %v2445, 4294901760
  %v3104 = vsub.f32 %v2445, %v3103
  %v3105 = vand.u32 %v3104, 4294901760
  %3106 = vmatpush1.msra.mxu0 %v3105
  %3107 = vmatprep.subr.mxu0 0.0
  %v3108 = vand.u32 %v2446, 4294901760
  %v3109 = vsub.f32 %v2446, %v3108
  %v3110 = vand.u32 %v3109, 4294901760
  %3111 = vmatpush1.msra.mxu0 %v3110
  %3112 = vmatprep.subr.mxu0 0.0
  %v3113 = vand.u32 %v2447, 4294901760
  %v3114 = vsub.f32 %v2447, %v3113
  %v3115 = vand.u32 %v3114, 4294901760
  %3116 = vmatpush1.msra.mxu0 %v3115
  %3117 = vmatprep.subr.mxu0 0.0
  %v3118 = vand.u32 %v2448, 4294901760
  %v3119 = vsub.f32 %v2448, %v3118
  %v3120 = vand.u32 %v3119, 4294901760
  %3121 = vmatpush1.msra.mxu0 %v3120
  %3122 = vmatprep.subr.mxu0 0.0
  %v3123 = vand.u32 %v2449, 4294901760
  %v3124 = vsub.f32 %v2449, %v3123
  %v3125 = vand.u32 %v3124, 4294901760
  %3126 = vmatpush1.msra.mxu0 %v3125
  %3127 = vmatprep.subr.mxu0 0.0
  %v3128 = vand.u32 %v2450, 4294901760
  %v3129 = vsub.f32 %v2450, %v3128
  %v3130 = vand.u32 %v3129, 4294901760
  %3131 = vmatpush1.msra.mxu0 %v3130
  %3132 = vmatprep.subr.mxu0 0.0
  %v3133 = vand.u32 %v2451, 4294901760
  %v3134 = vsub.f32 %v2451, %v3133
  %v3135 = vand.u32 %v3134, 4294901760
  %3136 = vmatpush1.msra.mxu0 %v3135
  %3137 = vmatprep.subr.mxu0 0.0
  %v3138 = vand.u32 %v2452, 4294901760
  %v3139 = vsub.f32 %v2452, %v3138
  %v3140 = vand.u32 %v3139, 4294901760
  %3141 = vmatpush1.msra.mxu0 %v3140
  %3142 = vmatprep.subr.mxu0 0.0
  %v3143 = vand.u32 %v2453, 4294901760
  %v3144 = vsub.f32 %v2453, %v3143
  %v3145 = vand.u32 %v3144, 4294901760
  %3146 = vmatpush1.msra.mxu0 %v3145
  %3147 = vmatprep.subr.mxu0 0.0
  %v3148 = vand.u32 %v2454, 4294901760
  %v3149 = vsub.f32 %v2454, %v3148
  %v3150 = vand.u32 %v3149, 4294901760
  %3151 = vmatpush1.msra.mxu0 %v3150
  %3152 = vmatprep.subr.mxu0 0.0
  %v3153 = vand.u32 %v2455, 4294901760
  %v3154 = vsub.f32 %v2455, %v3153
  %v3155 = vand.u32 %v3154, 4294901760
  %3156 = vmatpush1.msra.mxu0 %v3155
  %3157 = vmatprep.subr.mxu0 0.0
  %v3158 = vand.u32 %v2456, 4294901760
  %v3159 = vsub.f32 %v2456, %v3158
  %v3160 = vand.u32 %v3159, 4294901760
  %3161 = vmatpush1.msra.mxu0 %v3160
  %3162 = vmatprep.subr.mxu0 0.0
  %v3163 = vand.u32 %v2457, 4294901760
  %v3164 = vsub.f32 %v2457, %v3163
  %v3165 = vand.u32 %v3164, 4294901760
  %3166 = vmatpush1.msra.mxu0 %v3165
  %3167 = vmatprep.subr.mxu0 0.0
  %v3168 = vand.u32 %v2458, 4294901760
  %v3169 = vsub.f32 %v2458, %v3168
  %v3170 = vand.u32 %v3169, 4294901760
  %3171 = vmatpush1.msra.mxu0 %v3170
  %3172 = vmatprep.subr.mxu0 0.0
  %v3173 = vand.u32 %v2459, 4294901760
  %v3174 = vsub.f32 %v2459, %v3173
  %v3175 = vand.u32 %v3174, 4294901760
  %3176 = vmatpush1.msra.mxu0 %v3175
  %3177 = vmatprep.subr.mxu0 0.0
  %v3178 = vand.u32 %v2460, 4294901760
  %v3179 = vsub.f32 %v2460, %v3178
  %v3180 = vand.u32 %v3179, 4294901760
  %3181 = vmatpush1.msra.mxu0 %v3180
  %3182 = vmatprep.subr.mxu0 0.0
  %v3183 = vand.u32 %v2461, 4294901760
  %v3184 = vsub.f32 %v2461, %v3183
  %v3185 = vand.u32 %v3184, 4294901760
  %3186 = vmatpush1.msra.mxu0 %v3185
  %3187 = vmatprep.subr.mxu0 0.0
  %v3188 = vand.u32 %v2462, 4294901760
  %v3189 = vsub.f32 %v2462, %v3188
  %v3190 = vand.u32 %v3189, 4294901760
  %3191 = vmatpush1.msra.mxu0 %v3190
  %3192 = vmatprep.subr.mxu0 0.0
  %v3193 = vand.u32 %v2463, 4294901760
  %v3194 = vsub.f32 %v2463, %v3193
  %v3195 = vand.u32 %v3194, 4294901760
  %3196 = vmatpush1.msra.mxu0 %v3195
  %3197 = vmatprep.subr.mxu0 0.0
  %v3198 = vand.u32 %v2464, 4294901760
  %v3199 = vsub.f32 %v2464, %v3198
  %v3200 = vand.u32 %v3199, 4294901760
  %3201 = vmatpush1.msra.mxu0 %v3200
  %3202 = vmatprep.subr.mxu0 0.0
  %v3203 = vand.u32 %v2465, 4294901760
  %v3204 = vsub.f32 %v2465, %v3203
  %v3205 = vand.u32 %v3204, 4294901760
  %3206 = vmatpush1.msra.mxu0 %v3205
  %3207 = vmatprep.subr.mxu0 0.0
  %v3208 = vand.u32 %v2466, 4294901760
  %v3209 = vsub.f32 %v2466, %v3208
  %v3210 = vand.u32 %v3209, 4294901760
  %3211 = vmatpush1.msra.mxu0 %v3210
  %3212 = vmatprep.subr.mxu0 0.0
  %v3213 = vand.u32 %v2467, 4294901760
  %v3214 = vsub.f32 %v2467, %v3213
  %v3215 = vand.u32 %v3214, 4294901760
  %3216 = vmatpush1.msra.mxu0 %v3215
  %3217 = vmatprep.subr.mxu0 0.0
  %v3218 = vand.u32 %v2468, 4294901760
  %v3219 = vsub.f32 %v2468, %v3218
  %v3220 = vand.u32 %v3219, 4294901760
  %3221 = vmatpush1.msra.mxu0 %v3220
  %3222 = vmatprep.subr.mxu0 0.0
  %v3223 = vand.u32 %v2469, 4294901760
  %v3224 = vsub.f32 %v2469, %v3223
  %v3225 = vand.u32 %v3224, 4294901760
  %3226 = vmatpush1.msra.mxu0 %v3225
  %v3227 = vand.u32 %v2437, 4294901760
  %3228 = vmatprep.mubr.f32.mxu0 %v3227
  %v3229 = vand.u32 %v2436, 4294901760
  %3230 = vmatmul.mubr.f32.gmra.mrb[0].mxu0 %v3229
  %v3231 = vpop.f32.mrb[0].mxu0
  %v3232 = vadd.f32 %v3064, %v3231
  %v3233 = vpop.f32.mrb[0].mxu0
  %3234 = vdwg.mxu0
  %3235 = vmatprep.subr.mxu0 0.0
  %v3236 = vand.u32 %v2438, 4294901760
  %3237 = vmatpush1.msra.mxu0 %v3236
  %3238 = vmatprep.subr.mxu0 0.0
  %v3239 = vand.u32 %v2439, 4294901760
  %3240 = vmatpush1.msra.mxu0 %v3239
  %3241 = vmatprep.subr.mxu0 0.0
  %v3242 = vand.u32 %v2440, 4294901760
  %3243 = vmatpush1.msra.mxu0 %v3242
  %3244 = vmatprep.subr.mxu0 0.0
  %v3245 = vand.u32 %v2441, 4294901760
  %3246 = vmatpush1.msra.mxu0 %v3245
  %3247 = vmatprep.subr.mxu0 0.0
  %v3248 = vand.u32 %v2442, 4294901760
  %3249 = vmatpush1.msra.mxu0 %v3248
  %3250 = vmatprep.subr.mxu0 0.0
  %v3251 = vand.u32 %v2443, 4294901760
  %3252 = vmatpush1.msra.mxu0 %v3251
  %3253 = vmatprep.subr.mxu0 0.0
  %v3254 = vand.u32 %v2444, 4294901760
  %3255 = vmatpush1.msra.mxu0 %v3254
  %3256 = vmatprep.subr.mxu0 0.0
  %v3257 = vand.u32 %v2445, 4294901760
  %3258 = vmatpush1.msra.mxu0 %v3257
  %3259 = vmatprep.subr.mxu0 0.0
  %v3260 = vand.u32 %v2446, 4294901760
  %3261 = vmatpush1.msra.mxu0 %v3260
  %3262 = vmatprep.subr.mxu0 0.0
  %v3263 = vand.u32 %v2447, 4294901760
  %3264 = vmatpush1.msra.mxu0 %v3263
  %3265 = vmatprep.subr.mxu0 0.0
  %v3266 = vand.u32 %v2448, 4294901760
  %3267 = vmatpush1.msra.mxu0 %v3266
  %3268 = vmatprep.subr.mxu0 0.0
  %v3269 = vand.u32 %v2449, 4294901760
  %3270 = vmatpush1.msra.mxu0 %v3269
  %3271 = vmatprep.subr.mxu0 0.0
  %v3272 = vand.u32 %v2450, 4294901760
  %3273 = vmatpush1.msra.mxu0 %v3272
  %3274 = vmatprep.subr.mxu0 0.0
  %v3275 = vand.u32 %v2451, 4294901760
  %3276 = vmatpush1.msra.mxu0 %v3275
  %3277 = vmatprep.subr.mxu0 0.0
  %v3278 = vand.u32 %v2452, 4294901760
  %3279 = vmatpush1.msra.mxu0 %v3278
  %3280 = vmatprep.subr.mxu0 0.0
  %v3281 = vand.u32 %v2453, 4294901760
  %3282 = vmatpush1.msra.mxu0 %v3281
  %3283 = vmatprep.subr.mxu0 0.0
  %v3284 = vand.u32 %v2454, 4294901760
  %3285 = vmatpush1.msra.mxu0 %v3284
  %3286 = vmatprep.subr.mxu0 0.0
  %v3287 = vand.u32 %v2455, 4294901760
  %3288 = vmatpush1.msra.mxu0 %v3287
  %3289 = vmatprep.subr.mxu0 0.0
  %v3290 = vand.u32 %v2456, 4294901760
  %3291 = vmatpush1.msra.mxu0 %v3290
  %3292 = vmatprep.subr.mxu0 0.0
  %v3293 = vand.u32 %v2457, 4294901760
  %3294 = vmatpush1.msra.mxu0 %v3293
  %3295 = vmatprep.subr.mxu0 0.0
  %v3296 = vand.u32 %v2458, 4294901760
  %3297 = vmatpush1.msra.mxu0 %v3296
  %3298 = vmatprep.subr.mxu0 0.0
  %v3299 = vand.u32 %v2459, 4294901760
  %3300 = vmatpush1.msra.mxu0 %v3299
  %3301 = vmatprep.subr.mxu0 0.0
  %v3302 = vand.u32 %v2460, 4294901760
  %3303 = vmatpush1.msra.mxu0 %v3302
  %3304 = vmatprep.subr.mxu0 0.0
  %v3305 = vand.u32 %v2461, 4294901760
  %3306 = vmatpush1.msra.mxu0 %v3305
  %3307 = vmatprep.subr.mxu0 0.0
  %v3308 = vand.u32 %v2462, 4294901760
  %3309 = vmatpush1.msra.mxu0 %v3308
  %3310 = vmatprep.subr.mxu0 0.0
  %v3311 = vand.u32 %v2463, 4294901760
  %3312 = vmatpush1.msra.mxu0 %v3311
  %3313 = vmatprep.subr.mxu0 0.0
  %v3314 = vand.u32 %v2464, 4294901760
  %3315 = vmatpush1.msra.mxu0 %v3314
  %3316 = vmatprep.subr.mxu0 0.0
  %v3317 = vand.u32 %v2465, 4294901760
  %3318 = vmatpush1.msra.mxu0 %v3317
  %3319 = vmatprep.subr.mxu0 0.0
  %v3320 = vand.u32 %v2466, 4294901760
  %3321 = vmatpush1.msra.mxu0 %v3320
  %3322 = vmatprep.subr.mxu0 0.0
  %v3323 = vand.u32 %v2467, 4294901760
  %3324 = vmatpush1.msra.mxu0 %v3323
  %3325 = vmatprep.subr.mxu0 0.0
  %v3326 = vand.u32 %v2468, 4294901760
  %3327 = vmatpush1.msra.mxu0 %v3326
  %3328 = vmatprep.subr.mxu0 0.0
  %v3329 = vand.u32 %v2469, 4294901760
  %3330 = vmatpush1.msra.mxu0 %v3329
  %v3331 = vand.u32 %v2437, 4294901760
  %3332 = vmatprep.mubr.f32.mxu0 %v3331
  %v3333 = vand.u32 %v2436, 4294901760
  %3334 = vmatmul.mubr.f32.gmra.mrb[0].mxu0 %v3333
  %v3335 = vpop.f32.mrb[0].mxu0
  %v3336 = vadd.f32 %v3232, %v3335
  %v3337 = vpop.f32.mrb[0].mxu0
  %3338 = vdwg.mxu0
  %3339 = vst.msk [vmem:[%s9] sm:$0xff] %vm565, %v3336
  // Predicated region
  $region38: #{node_model_forward.1} parent=0 // pred_check
    _
  $region39: #{node_model_forward.1} parent=0 // pred_check_branch
    %3341 = sbr.rel (0) target = $region41
  $region40: #{node_model_forward.1} parent=0 // pred_region
    _
  $region41: #{node_model_forward.1} parent=0 // pred_fallthru
    _
  // Predicated region
  $region42: #{node_model_forward.1} parent=0 // pred_check
    _
  $region43: #{node_model_forward.1} parent=0 // pred_check_branch
    %3343 = sbr.rel (0) target = $region45
  $region44: #{node_model_forward.1} parent=0 // pred_region
    _
  $region45: #{node_model_forward.1} parent=0 // pred_fallthru
    _

</llo_original>
